<compile_context>
chip_gen: v6e
topology: v6e:2x2x1
jax: 0.10.0
libtpu: 0.0.40
codegen_flags: <defaults>
</compile_context>

<pallas_src>
import functools

import jax
import jax.numpy as jnp
from jax.experimental import pallas as pl
from jax.experimental.pallas import tpu as pltpu

HIDDEN_DIM = 2
# Logical (PyTorch) feature dims and their lane-padded (multiple-of-128) versions.
D1, D2, D3, D4 = 50, 500, 1000, 1000
D1P, D2P, D3P, D4P = 128, 512, 1024, 1024


def _round_up(n, m):
    return ((n + m - 1) // m) * m


def _bf16_epilogue_ok():
    """bf16 tanh only on chips with a bf16 EUP/VPU path (v6e, v7x)."""
    try:
        kind = jax.devices()[0].device_kind.lower()
    except Exception:  # pragma: no cover - defensive
        return False
    return not any(t in kind for t in ("v2", "v3", "v4", "v5"))


def _mlp_kernel(x_ref,
                w1_ref, b1_ref,
                w2_ref, b2_ref,
                w3_ref, b3_ref,
                w4_ref, b4_ref,
                o_ref, *, tanh_bf16):
    # Layer 1: (TB, 2) @ (2, 128). Done on the VPU as two broadcast FMAs in f32
    # (a K=2 MXU pass is pure push/pop latency for 2 MACs per output).
    x = x_ref[...].astype(jnp.float32)              # (TB, 2)
    w1 = w1_ref[...].astype(jnp.float32)            # (2, D1P)
    h = x[:, 0:1] * w1[0:1, :] + x[:, 1:2] * w1[1:2, :] + b1_ref[...]
    h = jnp.maximum(h, 0.0)

    # Layers 2-4: bf16 MXU matmuls with f32 accumulation; bias/ReLU in f32.
    h = jnp.dot(h.astype(jnp.bfloat16), w2_ref[...],
                preferred_element_type=jnp.float32) + b2_ref[...]
    h = jnp.maximum(h, 0.0)

    h = jnp.dot(h.astype(jnp.bfloat16), w3_ref[...],
                preferred_element_type=jnp.float32) + b3_ref[...]
    h = jnp.maximum(h, 0.0)

    h = jnp.dot(h.astype(jnp.bfloat16), w4_ref[...],
                preferred_element_type=jnp.float32) + b4_ref[...]

    # tanh epilogue: bf16 on v6e/v7x (bf16 EUP ~2x rate), f32 on v5e and older.
    if tanh_bf16:
        out = jnp.tanh(h.astype(jnp.bfloat16))
    else:
        out = jnp.tanh(h)
    o_ref[...] = out.astype(o_ref.dtype)


def _resident(a):
    """Weights/biases: full-array block, constant index_map -> DMA'd once and
    kept resident across all batch-grid steps; Buffered(1) avoids the default
    double-buffer (no second copy is ever needed for a constant block)."""
    return pl.BlockSpec(a.shape, lambda i: (0, 0), pipeline_mode=pl.Buffered(1))


def _pick_batch_tile(B, max_batch_tile):
    # bf16 MXU operands pack 16 rows per sublane tile -> round to 16, not 8.
    b_min = max(16, _round_up(B, 16))
    if b_min <= 256:
        return b_min                      # single grid step for small batches
    # Mid/large batch: at least 2 grid steps so ("parallel",) can shard across
    # both v7x TensorCores; tile rounded to 16 rows to minimize dead-row
    # padding (e.g. B=300 -> 2 x 160 rather than 1 x 512), capped for VMEM.
    return min(max_batch_tile, _round_up(pl.cdiv(b_min, 2), 16))


def medium_if_forward(x, padded_params, *, max_batch_tile=512,
                      out_dtype=jnp.float32, slice_output=True):
    """x: (B, HIDDEN_DIM) f32. padded_params: lane-padded weights (bf16) / biases (f32).

    Returns (B, 1000) `out_dtype` (or (B, 1024) if slice_output=False),
    numerically matching the PyTorch forward up to bf16 weight precision.
    """
    B = x.shape[0]
    tb = _pick_batch_tile(B, max_batch_tile)
    b_pad = _round_up(max(B, tb), tb)
    if b_pad != B:
        x = jnp.pad(x, ((0, b_pad - B), (0, 0)))
    grid = (b_pad // tb,)

    w1, b1 = padded_params["w1"], padded_params["b1"]
    w2, b2 = padded_params["w2"], padded_params["b2"]
    w3, b3 = padded_params["w3"], padded_params["b3"]
    w4, b4 = padded_params["w4"], padded_params["b4"]

    flops = 2 * b_pad * (HIDDEN_DIM * D1P + D1P * D2P + D2P * D3P + D3P * D4P)
    weight_bytes = sum(int(a.size) * a.dtype.itemsize
                       for a in (w1, b1, w2, b2, w3, b3, w4, b4))
    out_itemsize = jnp.dtype(out_dtype).itemsize
    bytes_accessed = weight_bytes + int(x.size) * 4 + b_pad * D4P * out_itemsize

    kernel = functools.partial(_mlp_kernel, tanh_bf16=_bf16_epilogue_ok())

    out = pl.pallas_call(
        kernel,
        out_shape=jax.ShapeDtypeStruct((b_pad, D4P), out_dtype),
        grid_spec=pltpu.PrefetchScalarGridSpec(
            num_scalar_prefetch=0,
            grid=grid,
            in_specs=[pl.BlockSpec((tb, HIDDEN_DIM), lambda i: (i, 0)),
                      _resident(w1), _resident(b1),
                      _resident(w2), _resident(b2),
                      _resident(w3), _resident(b3),
                      _resident(w4), _resident(b4)],
            out_specs=pl.BlockSpec((tb, D4P), lambda i: (i, 0)),
        ),
        compiler_params=pltpu.CompilerParams(
            dimension_semantics=("parallel",),
            vmem_limit_bytes=40 << 20,
        ),
        cost_estimate=pl.CostEstimate(
            flops=flops,
            transcendentals=b_pad * D4P,
            bytes_accessed=bytes_accessed,
        ),
    )(x, w1, b1, w2, b2, w3, b3, w4, b4)

    if slice_output:
        # Strip batch padding and the 24 padded output lanes (1024 -> 1000).
        # NOTE: the lane slice is non-lane-aligned and costs an extra read+write
        # of the output slab at large B; pass slice_output=False to avoid it.
        return out[:B, :D4]
    return out[:B]


def init_params(key):
    """Deterministic f32 init mimicking nn.Linear default: U(-1/sqrt(fan_in), 1/sqrt(fan_in))."""
    dims = [(HIDDEN_DIM, D1), (D1, D2), (D2, D3), (D3, D4)]
    params = {}
    for idx, (fin, fout) in enumerate(dims, start=1):
        key, kw, kb = jax.random.split(key, 3)
        bound = 1.0 / jnp.sqrt(float(fin))
        params[f"w{idx}"] = jax.random.uniform(
            kw, (fin, fout), jnp.float32, minval=-bound, maxval=bound)
        params[f"b{idx}"] = jax.random.uniform(
            kb, (1, fout), jnp.float32, minval=-bound, maxval=bound)
    return params


def pad_and_cast_params(params):
    """Zero-pad feature dims to lane multiples; weights -> bf16, biases stay f32.

    Zero padding is numerically safe: padded output columns get ReLU(0 + 0) = 0,
    padded input rows of the next weight matrix are zero so they contribute
    nothing, and padded final columns are tanh(0) = 0 and are sliced off.
    """
    padded_dims = [(HIDDEN_DIM, D1P), (D1P, D2P), (D2P, D3P), (D3P, D4P)]
    pp = {}
    for idx, (fin_p, fout_p) in enumerate(padded_dims, start=1):
        w = params[f"w{idx}"]
        b = params[f"b{idx}"]
        w = jnp.pad(w, ((0, fin_p - w.shape[0]), (0, fout_p - w.shape[1])))
        b = jnp.pad(b, ((0, 0), (0, fout_p - b.shape[1])))
        pp[f"w{idx}"] = w.astype(jnp.bfloat16)
        pp[f"b{idx}"] = b.astype(jnp.float32)
    return pp


def reference_forward_f32(x, params):
    """Pure-f32 reference identical to the PyTorch module's forward."""
    h = jnp.maximum(x @ params["w1"] + params["b1"], 0.0)
    h = jnp.maximum(h @ params["w2"] + params["b2"], 0.0)
    h = jnp.maximum(h @ params["w3"] + params["b3"], 0.0)
    return jnp.tanh(h @ params["w4"] + params["b4"])


def reference_forward_bf16(x, pp):
    """Reference using the same bf16 weights / bf16 matmul inputs as the kernel."""
    h = jnp.maximum(x @ pp["w1"].astype(jnp.float32) + pp["b1"], 0.0)
    h = jnp.maximum(jnp.dot(h.astype(jnp.bfloat16), pp["w2"],
                            preferred_element_type=jnp.float32) + pp["b2"], 0.0)
    h = jnp.maximum(jnp.dot(h.astype(jnp.bfloat16), pp["w3"],
                            preferred_element_type=jnp.float32) + pp["b3"], 0.0)
    h = jnp.dot(h.astype(jnp.bfloat16), pp["w4"],
                preferred_element_type=jnp.float32) + pp["b4"]
    return jnp.tanh(h)[:, :D4]


if __name__ == "__main__":
    key = jax.random.PRNGKey(0)
    key, kx = jax.random.split(key)
    batch = 4
    x = jax.random.normal(kx, (batch, HIDDEN_DIM), jnp.float32)

    params = init_params(key)                    # f32, PyTorch-shaped
    padded_params = pad_and_cast_params(params)  # lane-padded, bf16 weights

    # Small (serving-like) batch: single grid step.
    out = jax.block_until_ready(medium_if_forward(x, padded_params))
    assert out.shape == (batch, D4)

    ref_bf16 = reference_forward_bf16(x, padded_params)
    assert jnp.allclose(out, ref_bf16, atol=2e-2, rtol=2e-2), (
        float(jnp.max(jnp.abs(out - ref_bf16))))
    ref_f32 = reference_forward_f32(x, params)
    assert jnp.allclose(out, ref_f32, atol=5e-2, rtol=5e-2), (
        float(jnp.max(jnp.abs(out - ref_f32))))

    # Mid-size batch: exercises the >=2-step "parallel" grid path (v7x megacore)
    # and the minimal-padding tile selection (300 -> 2 tiles of 160 rows).
    key, kx2 = jax.random.split(key)
    x2 = jax.random.normal(kx2, (300, HIDDEN_DIM), jnp.float32)
    out2 = jax.block_until_ready(medium_if_forward(x2, padded_params))
    assert out2.shape == (300, D4)
    ref2 = reference_forward_bf16(x2, padded_params)
    assert jnp.allclose(out2, ref2, atol=2e-2, rtol=2e-2), (
        float(jnp.max(jnp.abs(out2 - ref2))))

    print("KERNEL_OK")
</pallas_src>

<mosaic_0001>
module attributes {stable_mosaic.version = 11 : i64} {
  func.func @_mlp_kernel(%arg0: i32, %arg1: memref<16x2xf32, #tpu.memory_space<vmem>>, %arg2: memref<2x128xbf16, #tpu.memory_space<vmem>>, %arg3: memref<1x128xf32, #tpu.memory_space<vmem>>, %arg4: memref<128x512xbf16, #tpu.memory_space<vmem>>, %arg5: memref<1x512xf32, #tpu.memory_space<vmem>>, %arg6: memref<512x1024xbf16, #tpu.memory_space<vmem>>, %arg7: memref<1x1024xf32, #tpu.memory_space<vmem>>, %arg8: memref<1024x1024xbf16, #tpu.memory_space<vmem>>, %arg9: memref<1x1024xf32, #tpu.memory_space<vmem>>, %arg10: memref<16x1024xf32, #tpu.memory_space<vmem>>) attributes {dimension_semantics = [#tpu.dimension_semantics<parallel>], iteration_bounds = array<i64: 1>, scalar_prefetch = 0 : i64, scratch_operands = 0 : i64, tpu.core_type = #tpu.core_type<tc>, window_params = [{transform_indices = @transform_0, window_bounds = array<i64: 16, 2>}, {pipeline_mode = #tpu.pipeline_mode<synchronous>, transform_indices = @transform_1, window_bounds = array<i64: 2, 128>}, {pipeline_mode = #tpu.pipeline_mode<synchronous>, transform_indices = @transform_2, window_bounds = array<i64: 1, 128>}, {pipeline_mode = #tpu.pipeline_mode<synchronous>, transform_indices = @transform_3, window_bounds = array<i64: 128, 512>}, {pipeline_mode = #tpu.pipeline_mode<synchronous>, transform_indices = @transform_4, window_bounds = array<i64: 1, 512>}, {pipeline_mode = #tpu.pipeline_mode<synchronous>, transform_indices = @transform_5, window_bounds = array<i64: 512, 1024>}, {pipeline_mode = #tpu.pipeline_mode<synchronous>, transform_indices = @transform_6, window_bounds = array<i64: 1, 1024>}, {pipeline_mode = #tpu.pipeline_mode<synchronous>, transform_indices = @transform_7, window_bounds = array<i64: 1024, 1024>}, {pipeline_mode = #tpu.pipeline_mode<synchronous>, transform_indices = @transform_8, window_bounds = array<i64: 1, 1024>}, {transform_indices = @transform_9, window_bounds = array<i64: 16, 1024>}]} {
    %c0 = arith.constant 0 : index
    %c0_0 = arith.constant 0 : index
    %0 = vector.load %arg1[%c0, %c0_0] : memref<16x2xf32, #tpu.memory_space<vmem>>, vector<16x2xf32>
    %c0_1 = arith.constant 0 : index
    %c0_2 = arith.constant 0 : index
    %1 = vector.load %arg2[%c0_1, %c0_2] : memref<2x128xbf16, #tpu.memory_space<vmem>>, vector<2x128xbf16>
    %2 = arith.extf %1 : vector<2x128xbf16> to vector<2x128xf32>
    %3 = vector.extract_strided_slice %0 {offsets = [0, 0], sizes = [16, 1], strides = [1, 1]} : vector<16x2xf32> to vector<16x1xf32>
    %4 = vector.extract_strided_slice %2 {offsets = [0, 0], sizes = [1, 128], strides = [1, 1]} : vector<2x128xf32> to vector<1x128xf32>
    %5 = vector.broadcast %3 : vector<16x1xf32> to vector<16x128xf32>
    %6 = vector.broadcast %4 : vector<1x128xf32> to vector<16x128xf32>
    %7 = arith.mulf %5, %6 : vector<16x128xf32>
    %8 = vector.extract_strided_slice %0 {offsets = [0, 1], sizes = [16, 1], strides = [1, 1]} : vector<16x2xf32> to vector<16x1xf32>
    %9 = vector.extract_strided_slice %2 {offsets = [1, 0], sizes = [1, 128], strides = [1, 1]} : vector<2x128xf32> to vector<1x128xf32>
    %10 = vector.broadcast %8 : vector<16x1xf32> to vector<16x128xf32>
    %11 = vector.broadcast %9 : vector<1x128xf32> to vector<16x128xf32>
    %12 = arith.mulf %10, %11 : vector<16x128xf32>
    %13 = arith.addf %7, %12 : vector<16x128xf32>
    %c0_3 = arith.constant 0 : index
    %c0_4 = arith.constant 0 : index
    %14 = vector.load %arg3[%c0_3, %c0_4] : memref<1x128xf32, #tpu.memory_space<vmem>>, vector<1x128xf32>
    %15 = vector.broadcast %14 : vector<1x128xf32> to vector<16x128xf32>
    %16 = arith.addf %13, %15 : vector<16x128xf32>
    %cst = arith.constant 0.000000e+00 : f32
    %17 = vector.broadcast %cst : f32 to vector<16x128xf32>
    %18 = arith.maximumf %16, %17 : vector<16x128xf32>
    %19 = arith.truncf %18 : vector<16x128xf32> to vector<16x128xbf16>
    %c0_5 = arith.constant 0 : index
    %c0_6 = arith.constant 0 : index
    %20 = vector.load %arg4[%c0_5, %c0_6] : memref<128x512xbf16, #tpu.memory_space<vmem>>, vector<128x512xbf16>
    %cst_7 = arith.constant dense<0.000000e+00> : vector<16x512xf32>
    %21 = tpu.matmul %19, %20, %cst_7 {dimension_numbers = #tpu.dot_dimension_numbers<[1], [0], [0], [1], [0, 0, 1, 1], [], []>} : vector<16x128xbf16>, vector<128x512xbf16>, vector<16x512xf32> -> vector<16x512xf32>
    %c0_8 = arith.constant 0 : index
    %c0_9 = arith.constant 0 : index
    %22 = vector.load %arg5[%c0_8, %c0_9] : memref<1x512xf32, #tpu.memory_space<vmem>>, vector<1x512xf32>
    %23 = vector.broadcast %22 : vector<1x512xf32> to vector<16x512xf32>
    %24 = arith.addf %21, %23 : vector<16x512xf32>
    %cst_10 = arith.constant 0.000000e+00 : f32
    %25 = vector.broadcast %cst_10 : f32 to vector<16x512xf32>
    %26 = arith.maximumf %24, %25 : vector<16x512xf32>
    %27 = arith.truncf %26 : vector<16x512xf32> to vector<16x512xbf16>
    %c0_11 = arith.constant 0 : index
    %c0_12 = arith.constant 0 : index
    %28 = vector.load %arg6[%c0_11, %c0_12] : memref<512x1024xbf16, #tpu.memory_space<vmem>>, vector<512x1024xbf16>
    %cst_13 = arith.constant dense<0.000000e+00> : vector<16x1024xf32>
    %29 = tpu.matmul %27, %28, %cst_13 {dimension_numbers = #tpu.dot_dimension_numbers<[1], [0], [0], [1], [0, 0, 1, 1], [], []>} : vector<16x512xbf16>, vector<512x1024xbf16>, vector<16x1024xf32> -> vector<16x1024xf32>
    %c0_14 = arith.constant 0 : index
    %c0_15 = arith.constant 0 : index
    %30 = vector.load %arg7[%c0_14, %c0_15] : memref<1x1024xf32, #tpu.memory_space<vmem>>, vector<1x1024xf32>
    %31 = vector.broadcast %30 : vector<1x1024xf32> to vector<16x1024xf32>
    %32 = arith.addf %29, %31 : vector<16x1024xf32>
    %cst_16 = arith.constant 0.000000e+00 : f32
    %33 = vector.broadcast %cst_16 : f32 to vector<16x1024xf32>
    %34 = arith.maximumf %32, %33 : vector<16x1024xf32>
    %35 = arith.truncf %34 : vector<16x1024xf32> to vector<16x1024xbf16>
    %c0_17 = arith.constant 0 : index
    %c0_18 = arith.constant 0 : index
    %36 = vector.load %arg8[%c0_17, %c0_18] : memref<1024x1024xbf16, #tpu.memory_space<vmem>>, vector<1024x1024xbf16>
    %cst_19 = arith.constant dense<0.000000e+00> : vector<16x1024xf32>
    %37 = tpu.matmul %35, %36, %cst_19 {dimension_numbers = #tpu.dot_dimension_numbers<[1], [0], [0], [1], [0, 0, 1, 1], [], []>} : vector<16x1024xbf16>, vector<1024x1024xbf16>, vector<16x1024xf32> -> vector<16x1024xf32>
    %c0_20 = arith.constant 0 : index
    %c0_21 = arith.constant 0 : index
    %38 = vector.load %arg9[%c0_20, %c0_21] : memref<1x1024xf32, #tpu.memory_space<vmem>>, vector<1x1024xf32>
    %39 = vector.broadcast %38 : vector<1x1024xf32> to vector<16x1024xf32>
    %40 = arith.addf %37, %39 : vector<16x1024xf32>
    %41 = arith.truncf %40 : vector<16x1024xf32> to vector<16x1024xbf16>
    %42 = math.tanh %41 : vector<16x1024xbf16>
    %43 = arith.extf %42 : vector<16x1024xbf16> to vector<16x1024xf32>
    %c0_22 = arith.constant 0 : index
    %c0_23 = arith.constant 0 : index
    %44 = vector.load %arg10[%c0_22, %c0_23] : memref<16x1024xf32, #tpu.memory_space<vmem>>, vector<16x1024xf32>
    tpu.vector_store %arg10[%c0_22, %c0_23], %43 {strides = array<i32>} : memref<16x1024xf32, #tpu.memory_space<vmem>>, vector<16x1024xf32>,
    return
  }
  func.func @transform_0(%arg0: i32) -> (i32, i32) {
    %c0_i32 = arith.constant 0 : i32
    %c0_i32_0 = arith.constant 0 : i32
    return %arg0, %c0_i32 : i32, i32
  }
  func.func @transform_1(%arg0: i32) -> (i32, i32) {
    %c0_i32 = arith.constant 0 : i32
    %c0_i32_0 = arith.constant 0 : i32
    %c0_i32_1 = arith.constant 0 : i32
    return %c0_i32, %c0_i32_0 : i32, i32
  }
  func.func @transform_2(%arg0: i32) -> (i32, i32) {
    %c0_i32 = arith.constant 0 : i32
    %c0_i32_0 = arith.constant 0 : i32
    %c0_i32_1 = arith.constant 0 : i32
    return %c0_i32, %c0_i32_0 : i32, i32
  }
  func.func @transform_3(%arg0: i32) -> (i32, i32) {
    %c0_i32 = arith.constant 0 : i32
    %c0_i32_0 = arith.constant 0 : i32
    %c0_i32_1 = arith.constant 0 : i32
    return %c0_i32, %c0_i32_0 : i32, i32
  }
  func.func @transform_4(%arg0: i32) -> (i32, i32) {
    %c0_i32 = arith.constant 0 : i32
    %c0_i32_0 = arith.constant 0 : i32
    %c0_i32_1 = arith.constant 0 : i32
    return %c0_i32, %c0_i32_0 : i32, i32
  }
  func.func @transform_5(%arg0: i32) -> (i32, i32) {
    %c0_i32 = arith.constant 0 : i32
    %c0_i32_0 = arith.constant 0 : i32
    %c0_i32_1 = arith.constant 0 : i32
    return %c0_i32, %c0_i32_0 : i32, i32
  }
  func.func @transform_6(%arg0: i32) -> (i32, i32) {
    %c0_i32 = arith.constant 0 : i32
    %c0_i32_0 = arith.constant 0 : i32
    %c0_i32_1 = arith.constant 0 : i32
    return %c0_i32, %c0_i32_0 : i32, i32
  }
  func.func @transform_7(%arg0: i32) -> (i32, i32) {
    %c0_i32 = arith.constant 0 : i32
    %c0_i32_0 = arith.constant 0 : i32
    %c0_i32_1 = arith.constant 0 : i32
    return %c0_i32, %c0_i32_0 : i32, i32
  }
  func.func @transform_8(%arg0: i32) -> (i32, i32) {
    %c0_i32 = arith.constant 0 : i32
    %c0_i32_0 = arith.constant 0 : i32
    %c0_i32_1 = arith.constant 0 : i32
    return %c0_i32, %c0_i32_0 : i32, i32
  }
  func.func @transform_9(%arg0: i32) -> (i32, i32) {
    %c0_i32 = arith.constant 0 : i32
    %c0_i32_0 = arith.constant 0 : i32
    return %arg0, %c0_i32 : i32, i32
  }
}

</mosaic_0001>

<llo_original>
// kernel: tpu_custom_call.1
$region0: #{tpu_custom_call.1}
  #allocation0 [shape = 'u32[]', space=smem, size = 0x4, offset = 0x4, fixed_abs, tag = 'smem constant byte address 0x4 - core index']
  #allocation1 [shape = 'u32[144,128]{1,0:T(1,128)}', space=vmem, size = 0x12000, scoped, tag = 'internal scratch']
  %s0 = inlined_call_operand.vmem [shape: f32[16,2], index: 0, kind: input, shape index: {}]
  %s1 = inlined_call_operand.hbm [shape: bf16[2,128], index: 1, kind: input, shape index: {}]
  %s2 = inlined_call_operand.hbm [shape: f32[1,128], index: 2, kind: input, shape index: {}]
  %s3 = inlined_call_operand.hbm [shape: bf16[128,512], index: 3, kind: input, shape index: {}]
  %s4 = inlined_call_operand.hbm [shape: f32[1,512], index: 4, kind: input, shape index: {}]
  %s5 = inlined_call_operand.hbm [shape: bf16[512,1024], index: 5, kind: input, shape index: {}]
  %s6 = inlined_call_operand.hbm [shape: f32[1,1024], index: 6, kind: input, shape index: {}]
  %s7 = inlined_call_operand.hbm [shape: bf16[1024,1024], index: 7, kind: input, shape index: {}]
  %s8 = inlined_call_operand.hbm [shape: f32[1,1024], index: 8, kind: input, shape index: {}]
  %s9 = inlined_call_operand.hbm [shape: f32[16,1024], index: 9, kind: output, shape index: {}]
  %s10 = sld [smem:[#allocation0]]
  $region78: #{tpu_custom_call.1} parent=0
    _
  %s12 = ssub.s32 1, %s10
  %s13 = scalar_select 0, %s12, %s10
  $region1: #{tpu_custom_call.1} parent=0
    #allocation2 [shape = 'u8[512]{0}', space=vmem, size = 0x400, scoped, tag = 'input window, operand 1, single buffered']
    #allocation3 [shape = 's32[1]{0}', space=sflag, size = 0x4, scoped, tag = 'scoped memory for tpu_custom_call.1']
    #allocation4 [shape = 's32[1]{0}', space=sflag, size = 0x4, scoped, tag = 'scoped memory for tpu_custom_call.1']
    #allocation5 [shape = 'u8[512]{0}', space=vmem, size = 0x400, scoped, tag = 'input window, operand 2, single buffered']
    #allocation6 [shape = 's32[1]{0}', space=sflag, size = 0x4, scoped, tag = 'scoped memory for tpu_custom_call.1']
    #allocation7 [shape = 'u8[131072]{0}', space=vmem, size = 0x20000, scoped, tag = 'input window, operand 3, single buffered']
    #allocation8 [shape = 'u8[2048]{0}', space=vmem, size = 0x800, scoped, tag = 'input window, operand 4, single buffered']
    #allocation9 [shape = 's32[1]{0}', space=sflag, size = 0x4, scoped, tag = 'scoped memory for tpu_custom_call.1']
    #allocation10 [shape = 'u8[1048576]{0}', space=vmem, size = 0x100000, scoped, tag = 'input window, operand 5, single buffered']
    #allocation11 [shape = 'u8[4096]{0}', space=vmem, size = 0x1000, scoped, tag = 'input window, operand 6, single buffered']
    #allocation12 [shape = 's32[1]{0}', space=sflag, size = 0x4, scoped, tag = 'scoped memory for tpu_custom_call.1']
    #allocation13 [shape = 'u8[2097152]{0}', space=vmem, size = 0x200000, scoped, tag = 'input window, operand 7, single buffered']
    #allocation14 [shape = 'u8[4096]{0}', space=vmem, size = 0x1000, scoped, tag = 'input window, operand 8, single buffered']
    #allocation15 [shape = 's32[1]{0}', space=sflag, size = 0x4, scoped, tag = 'scoped memory for tpu_custom_call.1']
    #allocation16 [shape = 'u8[65536]{0}', space=vmem, size = 0x10000, scoped, tag = 'output window, operand 0, single buffered']
    %14 = vsyncpa [#allocation3], 0
    %15 = vsyncpa [#allocation6], 0
    %16 = vsyncpa [#allocation9], 0
    %17 = vsyncpa [#allocation12], 0
    %18 = vsyncpa [#allocation15], 0
    %19 = vsyncpa [#allocation4], 0
    // Predicated region
    $region2: #{tpu_custom_call.1} parent=1 // pred_check
      _
    $region3: #{tpu_custom_call.1} parent=1 // pred_check_branch
      %21 = sbr.rel (0) target = $region5
    $region4: #{tpu_custom_call.1} parent=1 // pred_region
      _
    $region5: #{tpu_custom_call.1} parent=1 // pred_fallthru
      _
    // Predicated region
    $region6: #{tpu_custom_call.1} parent=1 // pred_check
      _
    $region7: #{tpu_custom_call.1} parent=1 // pred_check_branch
      %23 = sbr.rel (0) target = $region9
    $region8: #{tpu_custom_call.1} parent=1 // pred_region
      %s25 = ssub.s32 16, 16
      %26 = vsyncadd [#allocation3], %s25
      %s28 = sshll.u32 [#allocation2], 4
      %s29 = int_to_ptr.vmem [resolvable:$true] %s28
      %31 = dma.hbm_to_vmem [thread:$0]  %s1, 16, %s29, [#allocation3]
    $region9: #{tpu_custom_call.1} parent=1 // pred_fallthru
      _
    // Predicated region
    $region10: #{tpu_custom_call.1} parent=1 // pred_check
      _
    $region11: #{tpu_custom_call.1} parent=1 // pred_check_branch
      %33 = sbr.rel (0) target = $region13
    $region12: #{tpu_custom_call.1} parent=1 // pred_region
      %s35 = ssub.s32 16, 16
      %36 = vsyncadd [#allocation6], %s35
      %s38 = sshll.u32 [#allocation5], 4
      %s39 = int_to_ptr.vmem [resolvable:$true] %s38
      %41 = dma.hbm_to_vmem [thread:$0]  %s2, 16, %s39, [#allocation6]
    $region13: #{tpu_custom_call.1} parent=1 // pred_fallthru
      _
    // Predicated region
    $region14: #{tpu_custom_call.1} parent=1 // pred_check
      _
    $region15: #{tpu_custom_call.1} parent=1 // pred_check_branch
      %43 = sbr.rel (0) target = $region17
    $region16: #{tpu_custom_call.1} parent=1 // pred_region
      %s45 = ssub.s32 4096, 4096
      %46 = vsyncadd [#allocation6], %s45
      %s47 = sshll.u32 [#allocation7], 4
      %s48 = int_to_ptr.vmem [resolvable:$true] %s47
      %53 = dma.hbm_to_vmem [thread:$0]  %s3, 4096, %s48, [#allocation6], 256, 256, 16
    $region17: #{tpu_custom_call.1} parent=1 // pred_fallthru
      _
    // Predicated region
    $region18: #{tpu_custom_call.1} parent=1 // pred_check
      _
    $region19: #{tpu_custom_call.1} parent=1 // pred_check_branch
      %55 = sbr.rel (0) target = $region21
    $region20: #{tpu_custom_call.1} parent=1 // pred_region
      %s57 = ssub.s32 64, 64
      %58 = vsyncadd [#allocation9], %s57
      %s60 = sshll.u32 [#allocation8], 4
      %s61 = int_to_ptr.vmem [resolvable:$true] %s60
      %63 = dma.hbm_to_vmem [thread:$0]  %s4, 64, %s61, [#allocation9]
    $region21: #{tpu_custom_call.1} parent=1 // pred_fallthru
      _
    // Predicated region
    $region22: #{tpu_custom_call.1} parent=1 // pred_check
      _
    $region23: #{tpu_custom_call.1} parent=1 // pred_check_branch
      %65 = sbr.rel (0) target = $region25
    $region24: #{tpu_custom_call.1} parent=1 // pred_region
      %s67 = ssub.s32 32768, 32768
      %68 = vsyncadd [#allocation9], %s67
      %s69 = sshll.u32 [#allocation10], 4
      %s70 = int_to_ptr.vmem [resolvable:$true] %s69
      %75 = dma.hbm_to_vmem [thread:$0]  %s5, 32768, %s70, [#allocation9], 512, 512, 32
    $region25: #{tpu_custom_call.1} parent=1 // pred_fallthru
      _
    // Predicated region
    $region26: #{tpu_custom_call.1} parent=1 // pred_check
      _
    $region27: #{tpu_custom_call.1} parent=1 // pred_check_branch
      %77 = sbr.rel (0) target = $region29
    $region28: #{tpu_custom_call.1} parent=1 // pred_region
      %s79 = ssub.s32 128, 128
      %80 = vsyncadd [#allocation12], %s79
      %s82 = sshll.u32 [#allocation11], 4
      %s83 = int_to_ptr.vmem [resolvable:$true] %s82
      %85 = dma.hbm_to_vmem [thread:$0]  %s6, 128, %s83, [#allocation12]
    $region29: #{tpu_custom_call.1} parent=1 // pred_fallthru
      _
    // Predicated region
    $region30: #{tpu_custom_call.1} parent=1 // pred_check
      _
    $region31: #{tpu_custom_call.1} parent=1 // pred_check_branch
      %87 = sbr.rel (0) target = $region33
    $region32: #{tpu_custom_call.1} parent=1 // pred_region
      %s89 = ssub.s32 65536, 65536
      %90 = vsyncadd [#allocation12], %s89
      %s91 = sshll.u32 [#allocation13], 4
      %s92 = int_to_ptr.vmem [resolvable:$true] %s91
      %97 = dma.hbm_to_vmem [thread:$0]  %s7, 65536, %s92, [#allocation12], 512, 512, 32
    $region33: #{tpu_custom_call.1} parent=1 // pred_fallthru
      _
    // Predicated region
    $region34: #{tpu_custom_call.1} parent=1 // pred_check
      _
    $region35: #{tpu_custom_call.1} parent=1 // pred_check_branch
      %99 = sbr.rel (0) target = $region37
    $region36: #{tpu_custom_call.1} parent=1 // pred_region
      %s101 = ssub.s32 128, 128
      %102 = vsyncadd [#allocation15], %s101
      %s104 = sshll.u32 [#allocation14], 4
      %s105 = int_to_ptr.vmem [resolvable:$true] %s104
      %107 = dma.hbm_to_vmem [thread:$0]  %s8, 128, %s105, [#allocation15]
    $region37: #{tpu_custom_call.1} parent=1 // pred_fallthru
      _
    // Predicated region
    $region38: #{tpu_custom_call.1} parent=1 // pred_check
      _
    $region39: #{tpu_custom_call.1} parent=1 // pred_check_branch
      %109 = sbr.rel (0) target = $region41
    $region40: #{tpu_custom_call.1} parent=1 // pred_region
      %110 = dma.done [#allocation3], 16
    $region41: #{tpu_custom_call.1} parent=1 // pred_fallthru
      _
    // Predicated region
    $region42: #{tpu_custom_call.1} parent=1 // pred_check
      _
    $region43: #{tpu_custom_call.1} parent=1 // pred_check_branch
      %112 = sbr.rel (0) target = $region45
    $region44: #{tpu_custom_call.1} parent=1 // pred_region
      %113 = dma.done [#allocation6], 16
    $region45: #{tpu_custom_call.1} parent=1 // pred_fallthru
      _
    // Predicated region
    $region46: #{tpu_custom_call.1} parent=1 // pred_check
      _
    $region47: #{tpu_custom_call.1} parent=1 // pred_check_branch
      %115 = sbr.rel (0) target = $region49
    $region48: #{tpu_custom_call.1} parent=1 // pred_region
      %116 = dma.done [#allocation6], 4096
    $region49: #{tpu_custom_call.1} parent=1 // pred_fallthru
      _
    // Predicated region
    $region50: #{tpu_custom_call.1} parent=1 // pred_check
      _
    $region51: #{tpu_custom_call.1} parent=1 // pred_check_branch
      %118 = sbr.rel (0) target = $region53
    $region52: #{tpu_custom_call.1} parent=1 // pred_region
      %119 = dma.done [#allocation9], 64
    $region53: #{tpu_custom_call.1} parent=1 // pred_fallthru
      _
    // Predicated region
    $region54: #{tpu_custom_call.1} parent=1 // pred_check
      _
    $region55: #{tpu_custom_call.1} parent=1 // pred_check_branch
      %121 = sbr.rel (0) target = $region57
    $region56: #{tpu_custom_call.1} parent=1 // pred_region
      %122 = dma.done [#allocation9], 32768
    $region57: #{tpu_custom_call.1} parent=1 // pred_fallthru
      _
    // Predicated region
    $region58: #{tpu_custom_call.1} parent=1 // pred_check
      _
    $region59: #{tpu_custom_call.1} parent=1 // pred_check_branch
      %124 = sbr.rel (0) target = $region61
    $region60: #{tpu_custom_call.1} parent=1 // pred_region
      %125 = dma.done [#allocation12], 128
    $region61: #{tpu_custom_call.1} parent=1 // pred_fallthru
      _
    // Predicated region
    $region62: #{tpu_custom_call.1} parent=1 // pred_check
      _
    $region63: #{tpu_custom_call.1} parent=1 // pred_check_branch
      %127 = sbr.rel (0) target = $region65
    $region64: #{tpu_custom_call.1} parent=1 // pred_region
      %128 = dma.done [#allocation12], 65536
    $region65: #{tpu_custom_call.1} parent=1 // pred_fallthru
      _
    // Predicated region
    $region66: #{tpu_custom_call.1} parent=1 // pred_check
      _
    $region67: #{tpu_custom_call.1} parent=1 // pred_check_branch
      %130 = sbr.rel (0) target = $region69
    $region68: #{tpu_custom_call.1} parent=1 // pred_region
      %131 = dma.done [#allocation15], 128
    $region69: #{tpu_custom_call.1} parent=1 // pred_fallthru
      _
    %v133 = vld [vmem:[%s0] sm:$0xff]
    %v134 = vld [vmem:[%s0 + $0x8] sm:$0xff]
    %v135 = vld [vmem:[#allocation2] sm:$0x1]
    %v136 = vunpack.c.l.bf16 %v135
    %138 = vset.pattern.permute.xlu0 0
    %139 = vperm.xlu0 %138, %v133
    %v140 = vpop.permute.xlu0 %139
    %143 = vset.pattern.permute.xlu0 0
    %144 = vperm.xlu0 %143, %v134
    %v145 = vpop.permute.xlu0 %144
    %v147 = vlaneseq
    %v148 = vshrl.u32 %v147, 7
    %v149 = vsub.s32 0, %v148
    %v150 = vrot.slane %v136, %v149
    %v151 = vmul.f32 %v140, %v150
    %v152 = vmul.f32 %v145, %v150
    %153 = vset.pattern.permute.xlu0 1
    %154 = vperm.xlu0 %153, %v133
    %v155 = vpop.permute.xlu0 %154
    %157 = vset.pattern.permute.xlu0 1
    %158 = vperm.xlu0 %157, %v134
    %v159 = vpop.permute.xlu0 %158
    %v161 = vlaneseq
    %v162 = vshrl.u32 %v161, 7
    %v163 = vsub.s32 1, %v162
    %v164 = vrot.slane %v136, %v163
    %v165 = vmul.f32 %v155, %v164
    %v166 = vmul.f32 %v159, %v164
    %v167 = vadd.f32 %v151, %v165
    %v168 = vadd.f32 %v152, %v166
    %v169 = vld [vmem:[#allocation5] sm:$0x1]
    %v171 = vlaneseq
    %v172 = vshrl.u32 %v171, 7
    %v173 = vsub.s32 0, %v172
    %v174 = vrot.slane %v169, %v173
    %v176 = vadd.f32 %v167, %v174
    %v177 = vadd.f32 %v168, %v174
    %v178 = vmax.f32 %v176, 0.0
    %v179 = vmax.f32 %v177, 0.0
    %v180 = vpack.c.bf16 %v179, %v178
    %v181 = vld [vmem:[#allocation7] sm:$0xff]
    %v182 = vld [vmem:[#allocation7 + $0x8] sm:$0xff]
    %v183 = vld [vmem:[#allocation7 + $0x10] sm:$0xff]
    %v184 = vld [vmem:[#allocation7 + $0x18] sm:$0xff]
    %v185 = vld [vmem:[#allocation7 + $0x20] sm:$0xff]
    %v186 = vld [vmem:[#allocation7 + $0x28] sm:$0xff]
    %v187 = vld [vmem:[#allocation7 + $0x30] sm:$0xff]
    %v188 = vld [vmem:[#allocation7 + $0x38] sm:$0xff]
    %v189 = vld [vmem:[#allocation7 + $0x40] sm:$0xff]
    %v190 = vld [vmem:[#allocation7 + $0x48] sm:$0xff]
    %v191 = vld [vmem:[#allocation7 + $0x50] sm:$0xff]
    %v192 = vld [vmem:[#allocation7 + $0x58] sm:$0xff]
    %v193 = vld [vmem:[#allocation7 + $0x60] sm:$0xff]
    %v194 = vld [vmem:[#allocation7 + $0x68] sm:$0xff]
    %v195 = vld [vmem:[#allocation7 + $0x70] sm:$0xff]
    %v196 = vld [vmem:[#allocation7 + $0x78] sm:$0xff]
    %v197 = vld [vmem:[#allocation7 + $0x80] sm:$0xff]
    %v198 = vld [vmem:[#allocation7 + $0x88] sm:$0xff]
    %v199 = vld [vmem:[#allocation7 + $0x90] sm:$0xff]
    %v200 = vld [vmem:[#allocation7 + $0x98] sm:$0xff]
    %v201 = vld [vmem:[#allocation7 + $0xa0] sm:$0xff]
    %v202 = vld [vmem:[#allocation7 + $0xa8] sm:$0xff]
    %v203 = vld [vmem:[#allocation7 + $0xb0] sm:$0xff]
    %v204 = vld [vmem:[#allocation7 + $0xb8] sm:$0xff]
    %v205 = vld [vmem:[#allocation7 + $0xc0] sm:$0xff]
    %v206 = vld [vmem:[#allocation7 + $0xc8] sm:$0xff]
    %v207 = vld [vmem:[#allocation7 + $0xd0] sm:$0xff]
    %v208 = vld [vmem:[#allocation7 + $0xd8] sm:$0xff]
    %v209 = vld [vmem:[#allocation7 + $0xe0] sm:$0xff]
    %v210 = vld [vmem:[#allocation7 + $0xe8] sm:$0xff]
    %v211 = vld [vmem:[#allocation7 + $0xf0] sm:$0xff]
    %v212 = vld [vmem:[#allocation7 + $0xf8] sm:$0xff]
    %v213 = vld [vmem:[#allocation8] sm:$0xf]
    %v215 = vlaneseq
    %v216 = vshrl.u32 %v215, 7
    %v217 = vsub.s32 0, %v216
    %v218 = vrot.slane %v213, %v217
    %v219 = vlaneseq
    %v220 = vshrl.u32 %v219, 7
    %v221 = vsub.s32 1, %v220
    %v222 = vrot.slane %v213, %v221
    %v223 = vlaneseq
    %v224 = vshrl.u32 %v223, 7
    %v225 = vsub.s32 2, %v224
    %v226 = vrot.slane %v213, %v225
    %v227 = vlaneseq
    %v228 = vshrl.u32 %v227, 7
    %v229 = vsub.s32 3, %v228
    %v230 = vrot.slane %v213, %v229
    %v267 = vunpack.c.l.b16 %v181
    %v268 = vunpack.c.h.b16 %v181
    %v269 = vunpack.c.l.b16 %v182
    %v270 = vunpack.c.h.b16 %v182
    %v271 = vunpack.c.l.b16 %v183
    %v272 = vunpack.c.h.b16 %v183
    %v273 = vunpack.c.l.b16 %v184
    %v274 = vunpack.c.h.b16 %v184
    %v275 = vunpack.c.l.b16 %v185
    %v276 = vunpack.c.h.b16 %v185
    %v277 = vunpack.c.l.b16 %v186
    %v278 = vunpack.c.h.b16 %v186
    %v279 = vunpack.c.l.b16 %v187
    %v280 = vunpack.c.h.b16 %v187
    %v281 = vunpack.c.l.b16 %v188
    %v282 = vunpack.c.h.b16 %v188
    %v283 = vunpack.c.l.b16 %v189
    %v284 = vunpack.c.h.b16 %v189
    %v285 = vunpack.c.l.b16 %v190
    %v286 = vunpack.c.h.b16 %v190
    %v287 = vunpack.c.l.b16 %v191
    %v288 = vunpack.c.h.b16 %v191
    %v289 = vunpack.c.l.b16 %v192
    %v290 = vunpack.c.h.b16 %v192
    %v291 = vunpack.c.l.b16 %v193
    %v292 = vunpack.c.h.b16 %v193
    %v293 = vunpack.c.l.b16 %v194
    %v294 = vunpack.c.h.b16 %v194
    %v295 = vunpack.c.l.b16 %v195
    %v296 = vunpack.c.h.b16 %v195
    %v297 = vunpack.c.l.b16 %v196
    %v298 = vunpack.c.h.b16 %v196
    %v299 = vunpack.c.l.b16 %v197
    %v300 = vunpack.c.h.b16 %v197
    %v301 = vunpack.c.l.b16 %v198
    %v302 = vunpack.c.h.b16 %v198
    %v303 = vunpack.c.l.b16 %v199
    %v304 = vunpack.c.h.b16 %v199
    %v305 = vunpack.c.l.b16 %v200
    %v306 = vunpack.c.h.b16 %v200
    %v307 = vunpack.c.l.b16 %v201
    %v308 = vunpack.c.h.b16 %v201
    %v309 = vunpack.c.l.b16 %v202
    %v310 = vunpack.c.h.b16 %v202
    %v311 = vunpack.c.l.b16 %v203
    %v312 = vunpack.c.h.b16 %v203
    %v313 = vunpack.c.l.b16 %v204
    %v314 = vunpack.c.h.b16 %v204
    %v315 = vunpack.c.l.b16 %v205
    %v316 = vunpack.c.h.b16 %v205
    %v317 = vunpack.c.l.b16 %v206
    %v318 = vunpack.c.h.b16 %v206
    %v319 = vunpack.c.l.b16 %v207
    %v320 = vunpack.c.h.b16 %v207
    %v321 = vunpack.c.l.b16 %v208
    %v322 = vunpack.c.h.b16 %v208
    %v323 = vunpack.c.l.b16 %v209
    %v324 = vunpack.c.h.b16 %v209
    %v325 = vunpack.c.l.b16 %v210
    %v326 = vunpack.c.h.b16 %v210
    %v327 = vunpack.c.l.b16 %v211
    %v328 = vunpack.c.h.b16 %v211
    %v329 = vunpack.c.l.b16 %v212
    %v330 = vunpack.c.h.b16 %v212
    %v331 = vpack.c.b16 %v271, %v267
    %v332 = vpack.c.b16 %v272, %v268
    %v333 = vpack.c.b16 %v273, %v269
    %v334 = vpack.c.b16 %v274, %v270
    %v335 = vpack.c.b16 %v279, %v275
    %v336 = vpack.c.b16 %v280, %v276
    %v337 = vpack.c.b16 %v281, %v277
    %v338 = vpack.c.b16 %v282, %v278
    %v339 = vpack.c.b16 %v287, %v283
    %v340 = vpack.c.b16 %v288, %v284
    %v341 = vpack.c.b16 %v289, %v285
    %v342 = vpack.c.b16 %v290, %v286
    %v343 = vpack.c.b16 %v295, %v291
    %v344 = vpack.c.b16 %v296, %v292
    %v345 = vpack.c.b16 %v297, %v293
    %v346 = vpack.c.b16 %v298, %v294
    %v347 = vpack.c.b16 %v303, %v299
    %v348 = vpack.c.b16 %v304, %v300
    %v349 = vpack.c.b16 %v305, %v301
    %v350 = vpack.c.b16 %v306, %v302
    %v351 = vpack.c.b16 %v311, %v307
    %v352 = vpack.c.b16 %v312, %v308
    %v353 = vpack.c.b16 %v313, %v309
    %v354 = vpack.c.b16 %v314, %v310
    %v355 = vpack.c.b16 %v319, %v315
    %v356 = vpack.c.b16 %v320, %v316
    %v357 = vpack.c.b16 %v321, %v317
    %v358 = vpack.c.b16 %v322, %v318
    %v359 = vpack.c.b16 %v327, %v323
    %v360 = vpack.c.b16 %v328, %v324
    %v361 = vpack.c.b16 %v329, %v325
    %v362 = vpack.c.b16 %v330, %v326
    %395 = vmatprep.subr.bf16.mxu0 %v360
    %396 = vmatpush1.bf16.msra.mxu0 %v359
    %397 = vmatprep.subr.bf16.mxu0 %v356
    %398 = vmatpush1.bf16.msra.mxu0 %v355
    %399 = vmatprep.subr.bf16.mxu0 %v352
    %400 = vmatpush1.bf16.msra.mxu0 %v351
    %401 = vmatprep.subr.bf16.mxu0 %v348
    %402 = vmatpush1.bf16.msra.mxu0 %v347
    %403 = vmatprep.subr.bf16.mxu0 %v344
    %404 = vmatpush1.bf16.msra.mxu0 %v343
    %405 = vmatprep.subr.bf16.mxu0 %v340
    %406 = vmatpush1.bf16.msra.mxu0 %v339
    %407 = vmatprep.subr.bf16.mxu0 %v336
    %408 = vmatpush1.bf16.msra.mxu0 %v335
    %409 = vmatprep.subr.bf16.mxu0 %v332
    %410 = vmatpush1.bf16.msra.mxu0 %v331
    %411 = vmatprep.subr.bf16.mxu0 0
    %412 = vmatpush2.bf16.msra.mxu0 0
    %413 = vmatprep.subr.bf16.mxu0 0
    %414 = vmatpush2.bf16.msra.mxu0 0
    %415 = vmatprep.subr.bf16.mxu0 0
    %416 = vmatpush2.bf16.msra.mxu0 0
    %417 = vmatprep.subr.bf16.mxu0 0
    %418 = vmatpush2.bf16.msra.mxu0 0
    %419 = vmatprep.subr.bf16.mxu0 0
    %420 = vmatpush2.bf16.msra.mxu0 0
    %421 = vmatprep.subr.bf16.mxu0 0
    %422 = vmatpush2.bf16.msra.mxu0 0
    %423 = vmatprep.subr.bf16.mxu0 0
    %424 = vmatpush2.bf16.msra.mxu0 0
    %425 = vmatprep.subr.bf16.mxu0 0
    %426 = vmatpush2.bf16.msra.mxu0 0
    %427 = vmatprep.mubr.bf16.mxu0 0
    %428 = vmatmul.mubr.bf16.gmra.mxu0 %v180
    %v429 = vpop.f32.mrf.mxu0
    %v430 = vadd.f32 %v218, %v429
    %v431 = vpop.f32.mrf.mxu0
    %v432 = vadd.f32 %v222, %v431
    %v433 = vpop.f32.mrf.mxu0
    %v434 = vadd.f32 %v218, %v433
    %v435 = vpop.f32.mrf.mxu0
    %v436 = vadd.f32 %v222, %v435
    %437 = vdwg.mxu0
    %438 = vmatprep.subr.bf16.mxu0 %v362
    %439 = vmatpush1.bf16.msra.mxu0 %v361
    %440 = vmatprep.subr.bf16.mxu0 %v358
    %441 = vmatpush1.bf16.msra.mxu0 %v357
    %442 = vmatprep.subr.bf16.mxu0 %v354
    %443 = vmatpush1.bf16.msra.mxu0 %v353
    %444 = vmatprep.subr.bf16.mxu0 %v350
    %445 = vmatpush1.bf16.msra.mxu0 %v349
    %446 = vmatprep.subr.bf16.mxu0 %v346
    %447 = vmatpush1.bf16.msra.mxu0 %v345
    %448 = vmatprep.subr.bf16.mxu0 %v342
    %449 = vmatpush1.bf16.msra.mxu0 %v341
    %450 = vmatprep.subr.bf16.mxu0 %v338
    %451 = vmatpush1.bf16.msra.mxu0 %v337
    %452 = vmatprep.subr.bf16.mxu0 %v334
    %453 = vmatpush1.bf16.msra.mxu0 %v333
    %454 = vmatprep.subr.bf16.mxu0 0
    %455 = vmatpush2.bf16.msra.mxu0 0
    %456 = vmatprep.subr.bf16.mxu0 0
    %457 = vmatpush2.bf16.msra.mxu0 0
    %458 = vmatprep.subr.bf16.mxu0 0
    %459 = vmatpush2.bf16.msra.mxu0 0
    %460 = vmatprep.subr.bf16.mxu0 0
    %461 = vmatpush2.bf16.msra.mxu0 0
    %462 = vmatprep.subr.bf16.mxu0 0
    %463 = vmatpush2.bf16.msra.mxu0 0
    %464 = vmatprep.subr.bf16.mxu0 0
    %465 = vmatpush2.bf16.msra.mxu0 0
    %466 = vmatprep.subr.bf16.mxu0 0
    %467 = vmatpush2.bf16.msra.mxu0 0
    %468 = vmatprep.subr.bf16.mxu0 0
    %469 = vmatpush2.bf16.msra.mxu0 0
    %470 = vmatprep.mubr.bf16.mxu0 0
    %471 = vmatmul.mubr.bf16.gmra.mxu0 %v180
    %v472 = vpop.f32.mrf.mxu0
    %v473 = vadd.f32 %v226, %v472
    %v474 = vpop.f32.mrf.mxu0
    %v475 = vadd.f32 %v230, %v474
    %v476 = vpop.f32.mrf.mxu0
    %v477 = vadd.f32 %v226, %v476
    %v478 = vpop.f32.mrf.mxu0
    %v479 = vadd.f32 %v230, %v478
    %480 = vdwg.mxu0
    %v481 = vmax.f32 %v430, 0.0
    %v482 = vmax.f32 %v432, 0.0
    %v483 = vmax.f32 %v473, 0.0
    %v484 = vmax.f32 %v475, 0.0
    %v485 = vmax.f32 %v434, 0.0
    %v486 = vmax.f32 %v436, 0.0
    %v487 = vmax.f32 %v477, 0.0
    %v488 = vmax.f32 %v479, 0.0
    %v489 = vpack.c.bf16 %v485, %v481
    %v490 = vpack.c.bf16 %v486, %v482
    %v491 = vpack.c.bf16 %v487, %v483
    %v492 = vpack.c.bf16 %v488, %v484
    %v493 = vld [vmem:[#allocation10] sm:$0xff]
    %v494 = vld [vmem:[#allocation10 + $0x8] sm:$0xff]
    %v495 = vld [vmem:[#allocation10 + $0x10] sm:$0xff]
    %v496 = vld [vmem:[#allocation10 + $0x18] sm:$0xff]
    %v497 = vld [vmem:[#allocation10 + $0x20] sm:$0xff]
    %v498 = vld [vmem:[#allocation10 + $0x28] sm:$0xff]
    %v499 = vld [vmem:[#allocation10 + $0x30] sm:$0xff]
    %v500 = vld [vmem:[#allocation10 + $0x38] sm:$0xff]
    %v501 = vld [vmem:[#allocation10 + $0x40] sm:$0xff]
    %v502 = vld [vmem:[#allocation10 + $0x48] sm:$0xff]
    %v503 = vld [vmem:[#allocation10 + $0x50] sm:$0xff]
    %v504 = vld [vmem:[#allocation10 + $0x58] sm:$0xff]
    %v505 = vld [vmem:[#allocation10 + $0x60] sm:$0xff]
    %v506 = vld [vmem:[#allocation10 + $0x68] sm:$0xff]
    %v507 = vld [vmem:[#allocation10 + $0x70] sm:$0xff]
    %v508 = vld [vmem:[#allocation10 + $0x78] sm:$0xff]
    %v509 = vld [vmem:[#allocation10 + $0x80] sm:$0xff]
    %v510 = vld [vmem:[#allocation10 + $0x88] sm:$0xff]
    %v511 = vld [vmem:[#allocation10 + $0x90] sm:$0xff]
    %v512 = vld [vmem:[#allocation10 + $0x98] sm:$0xff]
    %v513 = vld [vmem:[#allocation10 + $0xa0] sm:$0xff]
    %v514 = vld [vmem:[#allocation10 + $0xa8] sm:$0xff]
    %v515 = vld [vmem:[#allocation10 + $0xb0] sm:$0xff]
    %v516 = vld [vmem:[#allocation10 + $0xb8] sm:$0xff]
    %v517 = vld [vmem:[#allocation10 + $0xc0] sm:$0xff]
    %v518 = vld [vmem:[#allocation10 + $0xc8] sm:$0xff]
    %v519 = vld [vmem:[#allocation10 + $0xd0] sm:$0xff]
    %v520 = vld [vmem:[#allocation10 + $0xd8] sm:$0xff]
    %v521 = vld [vmem:[#allocation10 + $0xe0] sm:$0xff]
    %v522 = vld [vmem:[#allocation10 + $0xe8] sm:$0xff]
    %v523 = vld [vmem:[#allocation10 + $0xf0] sm:$0xff]
    %v524 = vld [vmem:[#allocation10 + $0xf8] sm:$0xff]
    %v525 = vld [vmem:[#allocation10 + $0x100] sm:$0xff]
    %v526 = vld [vmem:[#allocation10 + $0x108] sm:$0xff]
    %v527 = vld [vmem:[#allocation10 + $0x110] sm:$0xff]
    %v528 = vld [vmem:[#allocation10 + $0x118] sm:$0xff]
    %v529 = vld [vmem:[#allocation10 + $0x120] sm:$0xff]
    %v530 = vld [vmem:[#allocation10 + $0x128] sm:$0xff]
    %v531 = vld [vmem:[#allocation10 + $0x130] sm:$0xff]
    %v532 = vld [vmem:[#allocation10 + $0x138] sm:$0xff]
    %v533 = vld [vmem:[#allocation10 + $0x140] sm:$0xff]
    %v534 = vld [vmem:[#allocation10 + $0x148] sm:$0xff]
    %v535 = vld [vmem:[#allocation10 + $0x150] sm:$0xff]
    %v536 = vld [vmem:[#allocation10 + $0x158] sm:$0xff]
    %v537 = vld [vmem:[#allocation10 + $0x160] sm:$0xff]
    %v538 = vld [vmem:[#allocation10 + $0x168] sm:$0xff]
    %v539 = vld [vmem:[#allocation10 + $0x170] sm:$0xff]
    %v540 = vld [vmem:[#allocation10 + $0x178] sm:$0xff]
    %v541 = vld [vmem:[#allocation10 + $0x180] sm:$0xff]
    %v542 = vld [vmem:[#allocation10 + $0x188] sm:$0xff]
    %v543 = vld [vmem:[#allocation10 + $0x190] sm:$0xff]
    %v544 = vld [vmem:[#allocation10 + $0x198] sm:$0xff]
    %v545 = vld [vmem:[#allocation10 + $0x1a0] sm:$0xff]
    %v546 = vld [vmem:[#allocation10 + $0x1a8] sm:$0xff]
    %v547 = vld [vmem:[#allocation10 + $0x1b0] sm:$0xff]
    %v548 = vld [vmem:[#allocation10 + $0x1b8] sm:$0xff]
    %v549 = vld [vmem:[#allocation10 + $0x1c0] sm:$0xff]
    %v550 = vld [vmem:[#allocation10 + $0x1c8] sm:$0xff]
    %v551 = vld [vmem:[#allocation10 + $0x1d0] sm:$0xff]
    %v552 = vld [vmem:[#allocation10 + $0x1d8] sm:$0xff]
    %v553 = vld [vmem:[#allocation10 + $0x1e0] sm:$0xff]
    %v554 = vld [vmem:[#allocation10 + $0x1e8] sm:$0xff]
    %v555 = vld [vmem:[#allocation10 + $0x1f0] sm:$0xff]
    %v556 = vld [vmem:[#allocation10 + $0x1f8] sm:$0xff]
    %v557 = vld [vmem:[#allocation10 + $0x200] sm:$0xff]
    %v558 = vld [vmem:[#allocation10 + $0x208] sm:$0xff]
    %v559 = vld [vmem:[#allocation10 + $0x210] sm:$0xff]
    %v560 = vld [vmem:[#allocation10 + $0x218] sm:$0xff]
    %v561 = vld [vmem:[#allocation10 + $0x220] sm:$0xff]
    %v562 = vld [vmem:[#allocation10 + $0x228] sm:$0xff]
    %v563 = vld [vmem:[#allocation10 + $0x230] sm:$0xff]
    %v564 = vld [vmem:[#allocation10 + $0x238] sm:$0xff]
    %v565 = vld [vmem:[#allocation10 + $0x240] sm:$0xff]
    %v566 = vld [vmem:[#allocation10 + $0x248] sm:$0xff]
    %v567 = vld [vmem:[#allocation10 + $0x250] sm:$0xff]
    %v568 = vld [vmem:[#allocation10 + $0x258] sm:$0xff]
    %v569 = vld [vmem:[#allocation10 + $0x260] sm:$0xff]
    %v570 = vld [vmem:[#allocation10 + $0x268] sm:$0xff]
    %v571 = vld [vmem:[#allocation10 + $0x270] sm:$0xff]
    %v572 = vld [vmem:[#allocation10 + $0x278] sm:$0xff]
    %v573 = vld [vmem:[#allocation10 + $0x280] sm:$0xff]
    %v574 = vld [vmem:[#allocation10 + $0x288] sm:$0xff]
    %v575 = vld [vmem:[#allocation10 + $0x290] sm:$0xff]
    %v576 = vld [vmem:[#allocation10 + $0x298] sm:$0xff]
    %v577 = vld [vmem:[#allocation10 + $0x2a0] sm:$0xff]
    %v578 = vld [vmem:[#allocation10 + $0x2a8] sm:$0xff]
    %v579 = vld [vmem:[#allocation10 + $0x2b0] sm:$0xff]
    %v580 = vld [vmem:[#allocation10 + $0x2b8] sm:$0xff]
    %v581 = vld [vmem:[#allocation10 + $0x2c0] sm:$0xff]
    %v582 = vld [vmem:[#allocation10 + $0x2c8] sm:$0xff]
    %v583 = vld [vmem:[#allocation10 + $0x2d0] sm:$0xff]
    %v584 = vld [vmem:[#allocation10 + $0x2d8] sm:$0xff]
    %v585 = vld [vmem:[#allocation10 + $0x2e0] sm:$0xff]
    %v586 = vld [vmem:[#allocation10 + $0x2e8] sm:$0xff]
    %v587 = vld [vmem:[#allocation10 + $0x2f0] sm:$0xff]
    %v588 = vld [vmem:[#allocation10 + $0x2f8] sm:$0xff]
    %v589 = vld [vmem:[#allocation10 + $0x300] sm:$0xff]
    %v590 = vld [vmem:[#allocation10 + $0x308] sm:$0xff]
    %v591 = vld [vmem:[#allocation10 + $0x310] sm:$0xff]
    %v592 = vld [vmem:[#allocation10 + $0x318] sm:$0xff]
    %v593 = vld [vmem:[#allocation10 + $0x320] sm:$0xff]
    %v594 = vld [vmem:[#allocation10 + $0x328] sm:$0xff]
    %v595 = vld [vmem:[#allocation10 + $0x330] sm:$0xff]
    %v596 = vld [vmem:[#allocation10 + $0x338] sm:$0xff]
    %v597 = vld [vmem:[#allocation10 + $0x340] sm:$0xff]
    %v598 = vld [vmem:[#allocation10 + $0x348] sm:$0xff]
    %v599 = vld [vmem:[#allocation10 + $0x350] sm:$0xff]
    %v600 = vld [vmem:[#allocation10 + $0x358] sm:$0xff]
    %v601 = vld [vmem:[#allocation10 + $0x360] sm:$0xff]
    %v602 = vld [vmem:[#allocation10 + $0x368] sm:$0xff]
    %v603 = vld [vmem:[#allocation10 + $0x370] sm:$0xff]
    %v604 = vld [vmem:[#allocation10 + $0x378] sm:$0xff]
    %v605 = vld [vmem:[#allocation10 + $0x380] sm:$0xff]
    %v606 = vld [vmem:[#allocation10 + $0x388] sm:$0xff]
    %v607 = vld [vmem:[#allocation10 + $0x390] sm:$0xff]
    %v608 = vld [vmem:[#allocation10 + $0x398] sm:$0xff]
    %v609 = vld [vmem:[#allocation10 + $0x3a0] sm:$0xff]
    %v610 = vld [vmem:[#allocation10 + $0x3a8] sm:$0xff]
    %v611 = vld [vmem:[#allocation10 + $0x3b0] sm:$0xff]
    %v612 = vld [vmem:[#allocation10 + $0x3b8] sm:$0xff]
    %v613 = vld [vmem:[#allocation10 + $0x3c0] sm:$0xff]
    %v614 = vld [vmem:[#allocation10 + $0x3c8] sm:$0xff]
    %v615 = vld [vmem:[#allocation10 + $0x3d0] sm:$0xff]
    %v616 = vld [vmem:[#allocation10 + $0x3d8] sm:$0xff]
    %v617 = vld [vmem:[#allocation10 + $0x3e0] sm:$0xff]
    %v618 = vld [vmem:[#allocation10 + $0x3e8] sm:$0xff]
    %v619 = vld [vmem:[#allocation10 + $0x3f0] sm:$0xff]
    %v620 = vld [vmem:[#allocation10 + $0x3f8] sm:$0xff]
    %v621 = vld [vmem:[#allocation10 + $0x400] sm:$0xff]
    %v622 = vld [vmem:[#allocation10 + $0x408] sm:$0xff]
    %v623 = vld [vmem:[#allocation10 + $0x410] sm:$0xff]
    %v624 = vld [vmem:[#allocation10 + $0x418] sm:$0xff]
    %v625 = vld [vmem:[#allocation10 + $0x420] sm:$0xff]
    %v626 = vld [vmem:[#allocation10 + $0x428] sm:$0xff]
    %v627 = vld [vmem:[#allocation10 + $0x430] sm:$0xff]
    %v628 = vld [vmem:[#allocation10 + $0x438] sm:$0xff]
    %v629 = vld [vmem:[#allocation10 + $0x440] sm:$0xff]
    %v630 = vld [vmem:[#allocation10 + $0x448] sm:$0xff]
    %v631 = vld [vmem:[#allocation10 + $0x450] sm:$0xff]
    %v632 = vld [vmem:[#allocation10 + $0x458] sm:$0xff]
    %v633 = vld [vmem:[#allocation10 + $0x460] sm:$0xff]
    %v634 = vld [vmem:[#allocation10 + $0x468] sm:$0xff]
    %v635 = vld [vmem:[#allocation10 + $0x470] sm:$0xff]
    %v636 = vld [vmem:[#allocation10 + $0x478] sm:$0xff]
    %v637 = vld [vmem:[#allocation10 + $0x480] sm:$0xff]
    %v638 = vld [vmem:[#allocation10 + $0x488] sm:$0xff]
    %v639 = vld [vmem:[#allocation10 + $0x490] sm:$0xff]
    %v640 = vld [vmem:[#allocation10 + $0x498] sm:$0xff]
    %v641 = vld [vmem:[#allocation10 + $0x4a0] sm:$0xff]
    %v642 = vld [vmem:[#allocation10 + $0x4a8] sm:$0xff]
    %v643 = vld [vmem:[#allocation10 + $0x4b0] sm:$0xff]
    %v644 = vld [vmem:[#allocation10 + $0x4b8] sm:$0xff]
    %v645 = vld [vmem:[#allocation10 + $0x4c0] sm:$0xff]
    %v646 = vld [vmem:[#allocation10 + $0x4c8] sm:$0xff]
    %v647 = vld [vmem:[#allocation10 + $0x4d0] sm:$0xff]
    %v648 = vld [vmem:[#allocation10 + $0x4d8] sm:$0xff]
    %v649 = vld [vmem:[#allocation10 + $0x4e0] sm:$0xff]
    %v650 = vld [vmem:[#allocation10 + $0x4e8] sm:$0xff]
    %v651 = vld [vmem:[#allocation10 + $0x4f0] sm:$0xff]
    %v652 = vld [vmem:[#allocation10 + $0x4f8] sm:$0xff]
    %v653 = vld [vmem:[#allocation10 + $0x500] sm:$0xff]
    %v654 = vld [vmem:[#allocation10 + $0x508] sm:$0xff]
    %v655 = vld [vmem:[#allocation10 + $0x510] sm:$0xff]
    %v656 = vld [vmem:[#allocation10 + $0x518] sm:$0xff]
    %v657 = vld [vmem:[#allocation10 + $0x520] sm:$0xff]
    %v658 = vld [vmem:[#allocation10 + $0x528] sm:$0xff]
    %v659 = vld [vmem:[#allocation10 + $0x530] sm:$0xff]
    %v660 = vld [vmem:[#allocation10 + $0x538] sm:$0xff]
    %v661 = vld [vmem:[#allocation10 + $0x540] sm:$0xff]
    %v662 = vld [vmem:[#allocation10 + $0x548] sm:$0xff]
    %v663 = vld [vmem:[#allocation10 + $0x550] sm:$0xff]
    %v664 = vld [vmem:[#allocation10 + $0x558] sm:$0xff]
    %v665 = vld [vmem:[#allocation10 + $0x560] sm:$0xff]
    %v666 = vld [vmem:[#allocation10 + $0x568] sm:$0xff]
    %v667 = vld [vmem:[#allocation10 + $0x570] sm:$0xff]
    %v668 = vld [vmem:[#allocation10 + $0x578] sm:$0xff]
    %v669 = vld [vmem:[#allocation10 + $0x580] sm:$0xff]
    %v670 = vld [vmem:[#allocation10 + $0x588] sm:$0xff]
    %v671 = vld [vmem:[#allocation10 + $0x590] sm:$0xff]
    %v672 = vld [vmem:[#allocation10 + $0x598] sm:$0xff]
    %v673 = vld [vmem:[#allocation10 + $0x5a0] sm:$0xff]
    %v674 = vld [vmem:[#allocation10 + $0x5a8] sm:$0xff]
    %v675 = vld [vmem:[#allocation10 + $0x5b0] sm:$0xff]
    %v676 = vld [vmem:[#allocation10 + $0x5b8] sm:$0xff]
    %v677 = vld [vmem:[#allocation10 + $0x5c0] sm:$0xff]
    %v678 = vld [vmem:[#allocation10 + $0x5c8] sm:$0xff]
    %v679 = vld [vmem:[#allocation10 + $0x5d0] sm:$0xff]
    %v680 = vld [vmem:[#allocation10 + $0x5d8] sm:$0xff]
    %v681 = vld [vmem:[#allocation10 + $0x5e0] sm:$0xff]
    %v682 = vld [vmem:[#allocation10 + $0x5e8] sm:$0xff]
    %v683 = vld [vmem:[#allocation10 + $0x5f0] sm:$0xff]
    %v684 = vld [vmem:[#allocation10 + $0x5f8] sm:$0xff]
    %v685 = vld [vmem:[#allocation10 + $0x600] sm:$0xff]
    %v686 = vld [vmem:[#allocation10 + $0x608] sm:$0xff]
    %v687 = vld [vmem:[#allocation10 + $0x610] sm:$0xff]
    %v688 = vld [vmem:[#allocation10 + $0x618] sm:$0xff]
    %v689 = vld [vmem:[#allocation10 + $0x620] sm:$0xff]
    %v690 = vld [vmem:[#allocation10 + $0x628] sm:$0xff]
    %v691 = vld [vmem:[#allocation10 + $0x630] sm:$0xff]
    %v692 = vld [vmem:[#allocation10 + $0x638] sm:$0xff]
    %v693 = vld [vmem:[#allocation10 + $0x640] sm:$0xff]
    %v694 = vld [vmem:[#allocation10 + $0x648] sm:$0xff]
    %v695 = vld [vmem:[#allocation10 + $0x650] sm:$0xff]
    %v696 = vld [vmem:[#allocation10 + $0x658] sm:$0xff]
    %v697 = vld [vmem:[#allocation10 + $0x660] sm:$0xff]
    %v698 = vld [vmem:[#allocation10 + $0x668] sm:$0xff]
    %v699 = vld [vmem:[#allocation10 + $0x670] sm:$0xff]
    %v700 = vld [vmem:[#allocation10 + $0x678] sm:$0xff]
    %v701 = vld [vmem:[#allocation10 + $0x680] sm:$0xff]
    %v702 = vld [vmem:[#allocation10 + $0x688] sm:$0xff]
    %v703 = vld [vmem:[#allocation10 + $0x690] sm:$0xff]
    %v704 = vld [vmem:[#allocation10 + $0x698] sm:$0xff]
    %v705 = vld [vmem:[#allocation10 + $0x6a0] sm:$0xff]
    %v706 = vld [vmem:[#allocation10 + $0x6a8] sm:$0xff]
    %v707 = vld [vmem:[#allocation10 + $0x6b0] sm:$0xff]
    %v708 = vld [vmem:[#allocation10 + $0x6b8] sm:$0xff]
    %v709 = vld [vmem:[#allocation10 + $0x6c0] sm:$0xff]
    %v710 = vld [vmem:[#allocation10 + $0x6c8] sm:$0xff]
    %v711 = vld [vmem:[#allocation10 + $0x6d0] sm:$0xff]
    %v712 = vld [vmem:[#allocation10 + $0x6d8] sm:$0xff]
    %v713 = vld [vmem:[#allocation10 + $0x6e0] sm:$0xff]
    %v714 = vld [vmem:[#allocation10 + $0x6e8] sm:$0xff]
    %v715 = vld [vmem:[#allocation10 + $0x6f0] sm:$0xff]
    %v716 = vld [vmem:[#allocation10 + $0x6f8] sm:$0xff]
    %v717 = vld [vmem:[#allocation10 + $0x700] sm:$0xff]
    %v718 = vld [vmem:[#allocation10 + $0x708] sm:$0xff]
    %v719 = vld [vmem:[#allocation10 + $0x710] sm:$0xff]
    %v720 = vld [vmem:[#allocation10 + $0x718] sm:$0xff]
    %v721 = vld [vmem:[#allocation10 + $0x720] sm:$0xff]
    %v722 = vld [vmem:[#allocation10 + $0x728] sm:$0xff]
    %v723 = vld [vmem:[#allocation10 + $0x730] sm:$0xff]
    %v724 = vld [vmem:[#allocation10 + $0x738] sm:$0xff]
    %v725 = vld [vmem:[#allocation10 + $0x740] sm:$0xff]
    %v726 = vld [vmem:[#allocation10 + $0x748] sm:$0xff]
    %v727 = vld [vmem:[#allocation10 + $0x750] sm:$0xff]
    %v728 = vld [vmem:[#allocation10 + $0x758] sm:$0xff]
    %v729 = vld [vmem:[#allocation10 + $0x760] sm:$0xff]
    %v730 = vld [vmem:[#allocation10 + $0x768] sm:$0xff]
    %v731 = vld [vmem:[#allocation10 + $0x770] sm:$0xff]
    %v732 = vld [vmem:[#allocation10 + $0x778] sm:$0xff]
    %v733 = vld [vmem:[#allocation10 + $0x780] sm:$0xff]
    %v734 = vld [vmem:[#allocation10 + $0x788] sm:$0xff]
    %v735 = vld [vmem:[#allocation10 + $0x790] sm:$0xff]
    %v736 = vld [vmem:[#allocation10 + $0x798] sm:$0xff]
    %v737 = vld [vmem:[#allocation10 + $0x7a0] sm:$0xff]
    %v738 = vld [vmem:[#allocation10 + $0x7a8] sm:$0xff]
    %v739 = vld [vmem:[#allocation10 + $0x7b0] sm:$0xff]
    %v740 = vld [vmem:[#allocation10 + $0x7b8] sm:$0xff]
    %v741 = vld [vmem:[#allocation10 + $0x7c0] sm:$0xff]
    %v742 = vld [vmem:[#allocation10 + $0x7c8] sm:$0xff]
    %v743 = vld [vmem:[#allocation10 + $0x7d0] sm:$0xff]
    %v744 = vld [vmem:[#allocation10 + $0x7d8] sm:$0xff]
    %v745 = vld [vmem:[#allocation10 + $0x7e0] sm:$0xff]
    %v746 = vld [vmem:[#allocation10 + $0x7e8] sm:$0xff]
    %v747 = vld [vmem:[#allocation10 + $0x7f0] sm:$0xff]
    %v748 = vld [vmem:[#allocation10 + $0x7f8] sm:$0xff]
    %v749 = vld [vmem:[#allocation11] sm:$0xff]
    %v751 = vlaneseq
    %v752 = vshrl.u32 %v751, 7
    %v753 = vsub.s32 0, %v752
    %v754 = vrot.slane %v749, %v753
    %v755 = vlaneseq
    %v756 = vshrl.u32 %v755, 7
    %v757 = vsub.s32 1, %v756
    %v758 = vrot.slane %v749, %v757
    %v759 = vlaneseq
    %v760 = vshrl.u32 %v759, 7
    %v761 = vsub.s32 2, %v760
    %v762 = vrot.slane %v749, %v761
    %v763 = vlaneseq
    %v764 = vshrl.u32 %v763, 7
    %v765 = vsub.s32 3, %v764
    %v766 = vrot.slane %v749, %v765
    %v767 = vlaneseq
    %v768 = vshrl.u32 %v767, 7
    %v769 = vsub.s32 4, %v768
    %v770 = vrot.slane %v749, %v769
    %v771 = vlaneseq
    %v772 = vshrl.u32 %v771, 7
    %v773 = vsub.s32 5, %v772
    %v774 = vrot.slane %v749, %v773
    %v775 = vlaneseq
    %v776 = vshrl.u32 %v775, 7
    %v777 = vsub.s32 6, %v776
    %v778 = vrot.slane %v749, %v777
    %v779 = vlaneseq
    %v780 = vshrl.u32 %v779, 7
    %v781 = vsub.s32 7, %v780
    %v782 = vrot.slane %v749, %v781
    %v1047 = vunpack.c.l.b16 %v493
    %v1048 = vunpack.c.h.b16 %v493
    %v1049 = vunpack.c.l.b16 %v494
    %v1050 = vunpack.c.h.b16 %v494
    %v1051 = vunpack.c.l.b16 %v495
    %v1052 = vunpack.c.h.b16 %v495
    %v1053 = vunpack.c.l.b16 %v496
    %v1054 = vunpack.c.h.b16 %v496
    %v1055 = vunpack.c.l.b16 %v497
    %v1056 = vunpack.c.h.b16 %v497
    %v1057 = vunpack.c.l.b16 %v498
    %v1058 = vunpack.c.h.b16 %v498
    %v1059 = vunpack.c.l.b16 %v499
    %v1060 = vunpack.c.h.b16 %v499
    %v1061 = vunpack.c.l.b16 %v500
    %v1062 = vunpack.c.h.b16 %v500
    %v1063 = vunpack.c.l.b16 %v501
    %v1064 = vunpack.c.h.b16 %v501
    %v1065 = vunpack.c.l.b16 %v502
    %v1066 = vunpack.c.h.b16 %v502
    %v1067 = vunpack.c.l.b16 %v503
    %v1068 = vunpack.c.h.b16 %v503
    %v1069 = vunpack.c.l.b16 %v504
    %v1070 = vunpack.c.h.b16 %v504
    %v1071 = vunpack.c.l.b16 %v505
    %v1072 = vunpack.c.h.b16 %v505
    %v1073 = vunpack.c.l.b16 %v506
    %v1074 = vunpack.c.h.b16 %v506
    %v1075 = vunpack.c.l.b16 %v507
    %v1076 = vunpack.c.h.b16 %v507
    %v1077 = vunpack.c.l.b16 %v508
    %v1078 = vunpack.c.h.b16 %v508
    %v1079 = vunpack.c.l.b16 %v509
    %v1080 = vunpack.c.h.b16 %v509
    %v1081 = vunpack.c.l.b16 %v510
    %v1082 = vunpack.c.h.b16 %v510
    %v1083 = vunpack.c.l.b16 %v511
    %v1084 = vunpack.c.h.b16 %v511
    %v1085 = vunpack.c.l.b16 %v512
    %v1086 = vunpack.c.h.b16 %v512
    %v1087 = vunpack.c.l.b16 %v513
    %v1088 = vunpack.c.h.b16 %v513
    %v1089 = vunpack.c.l.b16 %v514
    %v1090 = vunpack.c.h.b16 %v514
    %v1091 = vunpack.c.l.b16 %v515
    %v1092 = vunpack.c.h.b16 %v515
    %v1093 = vunpack.c.l.b16 %v516
    %v1094 = vunpack.c.h.b16 %v516
    %v1095 = vunpack.c.l.b16 %v517
    %v1096 = vunpack.c.h.b16 %v517
    %v1097 = vunpack.c.l.b16 %v518
    %v1098 = vunpack.c.h.b16 %v518
    %v1099 = vunpack.c.l.b16 %v519
    %v1100 = vunpack.c.h.b16 %v519
    %v1101 = vunpack.c.l.b16 %v520
    %v1102 = vunpack.c.h.b16 %v520
    %v1103 = vunpack.c.l.b16 %v521
    %v1104 = vunpack.c.h.b16 %v521
    %v1105 = vunpack.c.l.b16 %v522
    %v1106 = vunpack.c.h.b16 %v522
    %v1107 = vunpack.c.l.b16 %v523
    %v1108 = vunpack.c.h.b16 %v523
    %v1109 = vunpack.c.l.b16 %v524
    %v1110 = vunpack.c.h.b16 %v524
    %v1111 = vunpack.c.l.b16 %v525
    %v1112 = vunpack.c.h.b16 %v525
    %v1113 = vunpack.c.l.b16 %v526
    %v1114 = vunpack.c.h.b16 %v526
    %v1115 = vunpack.c.l.b16 %v527
    %v1116 = vunpack.c.h.b16 %v527
    %v1117 = vunpack.c.l.b16 %v528
    %v1118 = vunpack.c.h.b16 %v528
    %v1119 = vunpack.c.l.b16 %v529
    %v1120 = vunpack.c.h.b16 %v529
    %v1121 = vunpack.c.l.b16 %v530
    %v1122 = vunpack.c.h.b16 %v530
    %v1123 = vunpack.c.l.b16 %v531
    %v1124 = vunpack.c.h.b16 %v531
    %v1125 = vunpack.c.l.b16 %v532
    %v1126 = vunpack.c.h.b16 %v532
    %v1127 = vunpack.c.l.b16 %v533
    %v1128 = vunpack.c.h.b16 %v533
    %v1129 = vunpack.c.l.b16 %v534
    %v1130 = vunpack.c.h.b16 %v534
    %v1131 = vunpack.c.l.b16 %v535
    %v1132 = vunpack.c.h.b16 %v535
    %v1133 = vunpack.c.l.b16 %v536
    %v1134 = vunpack.c.h.b16 %v536
    %v1135 = vunpack.c.l.b16 %v537
    %v1136 = vunpack.c.h.b16 %v537
    %v1137 = vunpack.c.l.b16 %v538
    %v1138 = vunpack.c.h.b16 %v538
    %v1139 = vunpack.c.l.b16 %v539
    %v1140 = vunpack.c.h.b16 %v539
    %v1141 = vunpack.c.l.b16 %v540
    %v1142 = vunpack.c.h.b16 %v540
    %v1143 = vunpack.c.l.b16 %v541
    %v1144 = vunpack.c.h.b16 %v541
    %v1145 = vunpack.c.l.b16 %v542
    %v1146 = vunpack.c.h.b16 %v542
    %v1147 = vunpack.c.l.b16 %v543
    %v1148 = vunpack.c.h.b16 %v543
    %v1149 = vunpack.c.l.b16 %v544
    %v1150 = vunpack.c.h.b16 %v544
    %v1151 = vunpack.c.l.b16 %v545
    %v1152 = vunpack.c.h.b16 %v545
    %v1153 = vunpack.c.l.b16 %v546
    %v1154 = vunpack.c.h.b16 %v546
    %v1155 = vunpack.c.l.b16 %v547
    %v1156 = vunpack.c.h.b16 %v547
    %v1157 = vunpack.c.l.b16 %v548
    %v1158 = vunpack.c.h.b16 %v548
    %v1159 = vunpack.c.l.b16 %v549
    %v1160 = vunpack.c.h.b16 %v549
    %v1161 = vunpack.c.l.b16 %v550
    %v1162 = vunpack.c.h.b16 %v550
    %v1163 = vunpack.c.l.b16 %v551
    %v1164 = vunpack.c.h.b16 %v551
    %v1165 = vunpack.c.l.b16 %v552
    %v1166 = vunpack.c.h.b16 %v552
    %v1167 = vunpack.c.l.b16 %v553
    %v1168 = vunpack.c.h.b16 %v553
    %v1169 = vunpack.c.l.b16 %v554
    %v1170 = vunpack.c.h.b16 %v554
    %v1171 = vunpack.c.l.b16 %v555
    %v1172 = vunpack.c.h.b16 %v555
    %v1173 = vunpack.c.l.b16 %v556
    %v1174 = vunpack.c.h.b16 %v556
    %v1175 = vunpack.c.l.b16 %v557
    %v1176 = vunpack.c.h.b16 %v557
    %v1177 = vunpack.c.l.b16 %v558
    %v1178 = vunpack.c.h.b16 %v558
    %v1179 = vunpack.c.l.b16 %v559
    %v1180 = vunpack.c.h.b16 %v559
    %v1181 = vunpack.c.l.b16 %v560
    %v1182 = vunpack.c.h.b16 %v560
    %v1183 = vunpack.c.l.b16 %v561
    %v1184 = vunpack.c.h.b16 %v561
    %v1185 = vunpack.c.l.b16 %v562
    %v1186 = vunpack.c.h.b16 %v562
    %v1187 = vunpack.c.l.b16 %v563
    %v1188 = vunpack.c.h.b16 %v563
    %v1189 = vunpack.c.l.b16 %v564
    %v1190 = vunpack.c.h.b16 %v564
    %v1191 = vunpack.c.l.b16 %v565
    %v1192 = vunpack.c.h.b16 %v565
    %v1193 = vunpack.c.l.b16 %v566
    %v1194 = vunpack.c.h.b16 %v566
    %v1195 = vunpack.c.l.b16 %v567
    %v1196 = vunpack.c.h.b16 %v567
    %v1197 = vunpack.c.l.b16 %v568
    %v1198 = vunpack.c.h.b16 %v568
    %v1199 = vunpack.c.l.b16 %v569
    %v1200 = vunpack.c.h.b16 %v569
    %v1201 = vunpack.c.l.b16 %v570
    %v1202 = vunpack.c.h.b16 %v570
    %v1203 = vunpack.c.l.b16 %v571
    %v1204 = vunpack.c.h.b16 %v571
    %v1205 = vunpack.c.l.b16 %v572
    %v1206 = vunpack.c.h.b16 %v572
    %v1207 = vunpack.c.l.b16 %v573
    %v1208 = vunpack.c.h.b16 %v573
    %v1209 = vunpack.c.l.b16 %v574
    %v1210 = vunpack.c.h.b16 %v574
    %v1211 = vunpack.c.l.b16 %v575
    %v1212 = vunpack.c.h.b16 %v575
    %v1213 = vunpack.c.l.b16 %v576
    %v1214 = vunpack.c.h.b16 %v576
    %v1215 = vunpack.c.l.b16 %v577
    %v1216 = vunpack.c.h.b16 %v577
    %v1217 = vunpack.c.l.b16 %v578
    %v1218 = vunpack.c.h.b16 %v578
    %v1219 = vunpack.c.l.b16 %v579
    %v1220 = vunpack.c.h.b16 %v579
    %v1221 = vunpack.c.l.b16 %v580
    %v1222 = vunpack.c.h.b16 %v580
    %v1223 = vunpack.c.l.b16 %v581
    %v1224 = vunpack.c.h.b16 %v581
    %v1225 = vunpack.c.l.b16 %v582
    %v1226 = vunpack.c.h.b16 %v582
    %v1227 = vunpack.c.l.b16 %v583
    %v1228 = vunpack.c.h.b16 %v583
    %v1229 = vunpack.c.l.b16 %v584
    %v1230 = vunpack.c.h.b16 %v584
    %v1231 = vunpack.c.l.b16 %v585
    %v1232 = vunpack.c.h.b16 %v585
    %v1233 = vunpack.c.l.b16 %v586
    %v1234 = vunpack.c.h.b16 %v586
    %v1235 = vunpack.c.l.b16 %v587
    %v1236 = vunpack.c.h.b16 %v587
    %v1237 = vunpack.c.l.b16 %v588
    %v1238 = vunpack.c.h.b16 %v588
    %v1239 = vunpack.c.l.b16 %v589
    %v1240 = vunpack.c.h.b16 %v589
    %v1241 = vunpack.c.l.b16 %v590
    %v1242 = vunpack.c.h.b16 %v590
    %v1243 = vunpack.c.l.b16 %v591
    %v1244 = vunpack.c.h.b16 %v591
    %v1245 = vunpack.c.l.b16 %v592
    %v1246 = vunpack.c.h.b16 %v592
    %v1247 = vunpack.c.l.b16 %v593
    %v1248 = vunpack.c.h.b16 %v593
    %v1249 = vunpack.c.l.b16 %v594
    %v1250 = vunpack.c.h.b16 %v594
    %v1251 = vunpack.c.l.b16 %v595
    %v1252 = vunpack.c.h.b16 %v595
    %v1253 = vunpack.c.l.b16 %v596
    %v1254 = vunpack.c.h.b16 %v596
    %v1255 = vunpack.c.l.b16 %v597
    %v1256 = vunpack.c.h.b16 %v597
    %v1257 = vunpack.c.l.b16 %v598
    %v1258 = vunpack.c.h.b16 %v598
    %v1259 = vunpack.c.l.b16 %v599
    %v1260 = vunpack.c.h.b16 %v599
    %v1261 = vunpack.c.l.b16 %v600
    %v1262 = vunpack.c.h.b16 %v600
    %v1263 = vunpack.c.l.b16 %v601
    %v1264 = vunpack.c.h.b16 %v601
    %v1265 = vunpack.c.l.b16 %v602
    %v1266 = vunpack.c.h.b16 %v602
    %v1267 = vunpack.c.l.b16 %v603
    %v1268 = vunpack.c.h.b16 %v603
    %v1269 = vunpack.c.l.b16 %v604
    %v1270 = vunpack.c.h.b16 %v604
    %v1271 = vunpack.c.l.b16 %v605
    %v1272 = vunpack.c.h.b16 %v605
    %v1273 = vunpack.c.l.b16 %v606
    %v1274 = vunpack.c.h.b16 %v606
    %v1275 = vunpack.c.l.b16 %v607
    %v1276 = vunpack.c.h.b16 %v607
    %v1277 = vunpack.c.l.b16 %v608
    %v1278 = vunpack.c.h.b16 %v608
    %v1279 = vunpack.c.l.b16 %v609
    %v1280 = vunpack.c.h.b16 %v609
    %v1281 = vunpack.c.l.b16 %v610
    %v1282 = vunpack.c.h.b16 %v610
    %v1283 = vunpack.c.l.b16 %v611
    %v1284 = vunpack.c.h.b16 %v611
    %v1285 = vunpack.c.l.b16 %v612
    %v1286 = vunpack.c.h.b16 %v612
    %v1287 = vunpack.c.l.b16 %v613
    %v1288 = vunpack.c.h.b16 %v613
    %v1289 = vunpack.c.l.b16 %v614
    %v1290 = vunpack.c.h.b16 %v614
    %v1291 = vunpack.c.l.b16 %v615
    %v1292 = vunpack.c.h.b16 %v615
    %v1293 = vunpack.c.l.b16 %v616
    %v1294 = vunpack.c.h.b16 %v616
    %v1295 = vunpack.c.l.b16 %v617
    %v1296 = vunpack.c.h.b16 %v617
    %v1297 = vunpack.c.l.b16 %v618
    %v1298 = vunpack.c.h.b16 %v618
    %v1299 = vunpack.c.l.b16 %v619
    %v1300 = vunpack.c.h.b16 %v619
    %v1301 = vunpack.c.l.b16 %v620
    %v1302 = vunpack.c.h.b16 %v620
    %v1303 = vunpack.c.l.b16 %v621
    %v1304 = vunpack.c.h.b16 %v621
    %v1305 = vunpack.c.l.b16 %v622
    %v1306 = vunpack.c.h.b16 %v622
    %v1307 = vunpack.c.l.b16 %v623
    %v1308 = vunpack.c.h.b16 %v623
    %v1309 = vunpack.c.l.b16 %v624
    %v1310 = vunpack.c.h.b16 %v624
    %v1311 = vunpack.c.l.b16 %v625
    %v1312 = vunpack.c.h.b16 %v625
    %v1313 = vunpack.c.l.b16 %v626
    %v1314 = vunpack.c.h.b16 %v626
    %v1315 = vunpack.c.l.b16 %v627
    %v1316 = vunpack.c.h.b16 %v627
    %v1317 = vunpack.c.l.b16 %v628
    %v1318 = vunpack.c.h.b16 %v628
    %v1319 = vunpack.c.l.b16 %v629
    %v1320 = vunpack.c.h.b16 %v629
    %v1321 = vunpack.c.l.b16 %v630
    %v1322 = vunpack.c.h.b16 %v630
    %v1323 = vunpack.c.l.b16 %v631
    %v1324 = vunpack.c.h.b16 %v631
    %v1325 = vunpack.c.l.b16 %v632
    %v1326 = vunpack.c.h.b16 %v632
    %v1327 = vunpack.c.l.b16 %v633
    %v1328 = vunpack.c.h.b16 %v633
    %v1329 = vunpack.c.l.b16 %v634
    %v1330 = vunpack.c.h.b16 %v634
    %v1331 = vunpack.c.l.b16 %v635
    %v1332 = vunpack.c.h.b16 %v635
    %v1333 = vunpack.c.l.b16 %v636
    %v1334 = vunpack.c.h.b16 %v636
    %v1335 = vunpack.c.l.b16 %v637
    %v1336 = vunpack.c.h.b16 %v637
    %v1337 = vunpack.c.l.b16 %v638
    %v1338 = vunpack.c.h.b16 %v638
    %v1339 = vunpack.c.l.b16 %v639
    %v1340 = vunpack.c.h.b16 %v639
    %v1341 = vunpack.c.l.b16 %v640
    %v1342 = vunpack.c.h.b16 %v640
    %v1343 = vunpack.c.l.b16 %v641
    %v1344 = vunpack.c.h.b16 %v641
    %v1345 = vunpack.c.l.b16 %v642
    %v1346 = vunpack.c.h.b16 %v642
    %v1347 = vunpack.c.l.b16 %v643
    %v1348 = vunpack.c.h.b16 %v643
    %v1349 = vunpack.c.l.b16 %v644
    %v1350 = vunpack.c.h.b16 %v644
    %v1351 = vunpack.c.l.b16 %v645
    %v1352 = vunpack.c.h.b16 %v645
    %v1353 = vunpack.c.l.b16 %v646
    %v1354 = vunpack.c.h.b16 %v646
    %v1355 = vunpack.c.l.b16 %v647
    %v1356 = vunpack.c.h.b16 %v647
    %v1357 = vunpack.c.l.b16 %v648
    %v1358 = vunpack.c.h.b16 %v648
    %v1359 = vunpack.c.l.b16 %v649
    %v1360 = vunpack.c.h.b16 %v649
    %v1361 = vunpack.c.l.b16 %v650
    %v1362 = vunpack.c.h.b16 %v650
    %v1363 = vunpack.c.l.b16 %v651
    %v1364 = vunpack.c.h.b16 %v651
    %v1365 = vunpack.c.l.b16 %v652
    %v1366 = vunpack.c.h.b16 %v652
    %v1367 = vunpack.c.l.b16 %v653
    %v1368 = vunpack.c.h.b16 %v653
    %v1369 = vunpack.c.l.b16 %v654
    %v1370 = vunpack.c.h.b16 %v654
    %v1371 = vunpack.c.l.b16 %v655
    %v1372 = vunpack.c.h.b16 %v655
    %v1373 = vunpack.c.l.b16 %v656
    %v1374 = vunpack.c.h.b16 %v656
    %v1375 = vunpack.c.l.b16 %v657
    %v1376 = vunpack.c.h.b16 %v657
    %v1377 = vunpack.c.l.b16 %v658
    %v1378 = vunpack.c.h.b16 %v658
    %v1379 = vunpack.c.l.b16 %v659
    %v1380 = vunpack.c.h.b16 %v659
    %v1381 = vunpack.c.l.b16 %v660
    %v1382 = vunpack.c.h.b16 %v660
    %v1383 = vunpack.c.l.b16 %v661
    %v1384 = vunpack.c.h.b16 %v661
    %v1385 = vunpack.c.l.b16 %v662
    %v1386 = vunpack.c.h.b16 %v662
    %v1387 = vunpack.c.l.b16 %v663
    %v1388 = vunpack.c.h.b16 %v663
    %v1389 = vunpack.c.l.b16 %v664
    %v1390 = vunpack.c.h.b16 %v664
    %v1391 = vunpack.c.l.b16 %v665
    %v1392 = vunpack.c.h.b16 %v665
    %v1393 = vunpack.c.l.b16 %v666
    %v1394 = vunpack.c.h.b16 %v666
    %v1395 = vunpack.c.l.b16 %v667
    %v1396 = vunpack.c.h.b16 %v667
    %v1397 = vunpack.c.l.b16 %v668
    %v1398 = vunpack.c.h.b16 %v668
    %v1399 = vunpack.c.l.b16 %v669
    %v1400 = vunpack.c.h.b16 %v669
    %v1401 = vunpack.c.l.b16 %v670
    %v1402 = vunpack.c.h.b16 %v670
    %v1403 = vunpack.c.l.b16 %v671
    %v1404 = vunpack.c.h.b16 %v671
    %v1405 = vunpack.c.l.b16 %v672
    %v1406 = vunpack.c.h.b16 %v672
    %v1407 = vunpack.c.l.b16 %v673
    %v1408 = vunpack.c.h.b16 %v673
    %v1409 = vunpack.c.l.b16 %v674
    %v1410 = vunpack.c.h.b16 %v674
    %v1411 = vunpack.c.l.b16 %v675
    %v1412 = vunpack.c.h.b16 %v675
    %v1413 = vunpack.c.l.b16 %v676
    %v1414 = vunpack.c.h.b16 %v676
    %v1415 = vunpack.c.l.b16 %v677
    %v1416 = vunpack.c.h.b16 %v677
    %v1417 = vunpack.c.l.b16 %v678
    %v1418 = vunpack.c.h.b16 %v678
    %v1419 = vunpack.c.l.b16 %v679
    %v1420 = vunpack.c.h.b16 %v679
    %v1421 = vunpack.c.l.b16 %v680
    %v1422 = vunpack.c.h.b16 %v680
    %v1423 = vunpack.c.l.b16 %v681
    %v1424 = vunpack.c.h.b16 %v681
    %v1425 = vunpack.c.l.b16 %v682
    %v1426 = vunpack.c.h.b16 %v682
    %v1427 = vunpack.c.l.b16 %v683
    %v1428 = vunpack.c.h.b16 %v683
    %v1429 = vunpack.c.l.b16 %v684
    %v1430 = vunpack.c.h.b16 %v684
    %v1431 = vunpack.c.l.b16 %v685
    %v1432 = vunpack.c.h.b16 %v685
    %v1433 = vunpack.c.l.b16 %v686
    %v1434 = vunpack.c.h.b16 %v686
    %v1435 = vunpack.c.l.b16 %v687
    %v1436 = vunpack.c.h.b16 %v687
    %v1437 = vunpack.c.l.b16 %v688
    %v1438 = vunpack.c.h.b16 %v688
    %v1439 = vunpack.c.l.b16 %v689
    %v1440 = vunpack.c.h.b16 %v689
    %v1441 = vunpack.c.l.b16 %v690
    %v1442 = vunpack.c.h.b16 %v690
    %v1443 = vunpack.c.l.b16 %v691
    %v1444 = vunpack.c.h.b16 %v691
    %v1445 = vunpack.c.l.b16 %v692
    %v1446 = vunpack.c.h.b16 %v692
    %v1447 = vunpack.c.l.b16 %v693
    %v1448 = vunpack.c.h.b16 %v693
    %v1449 = vunpack.c.l.b16 %v694
    %v1450 = vunpack.c.h.b16 %v694
    %v1451 = vunpack.c.l.b16 %v695
    %v1452 = vunpack.c.h.b16 %v695
    %v1453 = vunpack.c.l.b16 %v696
    %v1454 = vunpack.c.h.b16 %v696
    %v1455 = vunpack.c.l.b16 %v697
    %v1456 = vunpack.c.h.b16 %v697
    %v1457 = vunpack.c.l.b16 %v698
    %v1458 = vunpack.c.h.b16 %v698
    %v1459 = vunpack.c.l.b16 %v699
    %v1460 = vunpack.c.h.b16 %v699
    %v1461 = vunpack.c.l.b16 %v700
    %v1462 = vunpack.c.h.b16 %v700
    %v1463 = vunpack.c.l.b16 %v701
    %v1464 = vunpack.c.h.b16 %v701
    %v1465 = vunpack.c.l.b16 %v702
    %v1466 = vunpack.c.h.b16 %v702
    %v1467 = vunpack.c.l.b16 %v703
    %v1468 = vunpack.c.h.b16 %v703
    %v1469 = vunpack.c.l.b16 %v704
    %v1470 = vunpack.c.h.b16 %v704
    %v1471 = vunpack.c.l.b16 %v705
    %v1472 = vunpack.c.h.b16 %v705
    %v1473 = vunpack.c.l.b16 %v706
    %v1474 = vunpack.c.h.b16 %v706
    %v1475 = vunpack.c.l.b16 %v707
    %v1476 = vunpack.c.h.b16 %v707
    %v1477 = vunpack.c.l.b16 %v708
    %v1478 = vunpack.c.h.b16 %v708
    %v1479 = vunpack.c.l.b16 %v709
    %v1480 = vunpack.c.h.b16 %v709
    %v1481 = vunpack.c.l.b16 %v710
    %v1482 = vunpack.c.h.b16 %v710
    %v1483 = vunpack.c.l.b16 %v711
    %v1484 = vunpack.c.h.b16 %v711
    %v1485 = vunpack.c.l.b16 %v712
    %v1486 = vunpack.c.h.b16 %v712
    %v1487 = vunpack.c.l.b16 %v713
    %v1488 = vunpack.c.h.b16 %v713
    %v1489 = vunpack.c.l.b16 %v714
    %v1490 = vunpack.c.h.b16 %v714
    %v1491 = vunpack.c.l.b16 %v715
    %v1492 = vunpack.c.h.b16 %v715
    %v1493 = vunpack.c.l.b16 %v716
    %v1494 = vunpack.c.h.b16 %v716
    %v1495 = vunpack.c.l.b16 %v717
    %v1496 = vunpack.c.h.b16 %v717
    %v1497 = vunpack.c.l.b16 %v718
    %v1498 = vunpack.c.h.b16 %v718
    %v1499 = vunpack.c.l.b16 %v719
    %v1500 = vunpack.c.h.b16 %v719
    %v1501 = vunpack.c.l.b16 %v720
    %v1502 = vunpack.c.h.b16 %v720
    %v1503 = vunpack.c.l.b16 %v721
    %v1504 = vunpack.c.h.b16 %v721
    %v1505 = vunpack.c.l.b16 %v722
    %v1506 = vunpack.c.h.b16 %v722
    %v1507 = vunpack.c.l.b16 %v723
    %v1508 = vunpack.c.h.b16 %v723
    %v1509 = vunpack.c.l.b16 %v724
    %v1510 = vunpack.c.h.b16 %v724
    %v1511 = vunpack.c.l.b16 %v725
    %v1512 = vunpack.c.h.b16 %v725
    %v1513 = vunpack.c.l.b16 %v726
    %v1514 = vunpack.c.h.b16 %v726
    %v1515 = vunpack.c.l.b16 %v727
    %v1516 = vunpack.c.h.b16 %v727
    %v1517 = vunpack.c.l.b16 %v728
    %v1518 = vunpack.c.h.b16 %v728
    %v1519 = vunpack.c.l.b16 %v729
    %v1520 = vunpack.c.h.b16 %v729
    %v1521 = vunpack.c.l.b16 %v730
    %v1522 = vunpack.c.h.b16 %v730
    %v1523 = vunpack.c.l.b16 %v731
    %v1524 = vunpack.c.h.b16 %v731
    %v1525 = vunpack.c.l.b16 %v732
    %v1526 = vunpack.c.h.b16 %v732
    %v1527 = vunpack.c.l.b16 %v733
    %v1528 = vunpack.c.h.b16 %v733
    %v1529 = vunpack.c.l.b16 %v734
    %v1530 = vunpack.c.h.b16 %v734
    %v1531 = vunpack.c.l.b16 %v735
    %v1532 = vunpack.c.h.b16 %v735
    %v1533 = vunpack.c.l.b16 %v736
    %v1534 = vunpack.c.h.b16 %v736
    %v1535 = vunpack.c.l.b16 %v737
    %v1536 = vunpack.c.h.b16 %v737
    %v1537 = vunpack.c.l.b16 %v738
    %v1538 = vunpack.c.h.b16 %v738
    %v1539 = vunpack.c.l.b16 %v739
    %v1540 = vunpack.c.h.b16 %v739
    %v1541 = vunpack.c.l.b16 %v740
    %v1542 = vunpack.c.h.b16 %v740
    %v1543 = vunpack.c.l.b16 %v741
    %v1544 = vunpack.c.h.b16 %v741
    %v1545 = vunpack.c.l.b16 %v742
    %v1546 = vunpack.c.h.b16 %v742
    %v1547 = vunpack.c.l.b16 %v743
    %v1548 = vunpack.c.h.b16 %v743
    %v1549 = vunpack.c.l.b16 %v744
    %v1550 = vunpack.c.h.b16 %v744
    %v1551 = vunpack.c.l.b16 %v745
    %v1552 = vunpack.c.h.b16 %v745
    %v1553 = vunpack.c.l.b16 %v746
    %v1554 = vunpack.c.h.b16 %v746
    %v1555 = vunpack.c.l.b16 %v747
    %v1556 = vunpack.c.h.b16 %v747
    %v1557 = vunpack.c.l.b16 %v748
    %v1558 = vunpack.c.h.b16 %v748
    %v1559 = vpack.c.b16 %v1055, %v1047
    %v1560 = vpack.c.b16 %v1056, %v1048
    %v1561 = vpack.c.b16 %v1057, %v1049
    %v1562 = vpack.c.b16 %v1058, %v1050
    %v1563 = vpack.c.b16 %v1059, %v1051
    %v1564 = vpack.c.b16 %v1060, %v1052
    %v1565 = vpack.c.b16 %v1061, %v1053
    %v1566 = vpack.c.b16 %v1062, %v1054
    %v1567 = vpack.c.b16 %v1071, %v1063
    %v1568 = vpack.c.b16 %v1072, %v1064
    %v1569 = vpack.c.b16 %v1073, %v1065
    %v1570 = vpack.c.b16 %v1074, %v1066
    %v1571 = vpack.c.b16 %v1075, %v1067
    %v1572 = vpack.c.b16 %v1076, %v1068
    %v1573 = vpack.c.b16 %v1077, %v1069
    %v1574 = vpack.c.b16 %v1078, %v1070
    %v1575 = vpack.c.b16 %v1087, %v1079
    %v1576 = vpack.c.b16 %v1088, %v1080
    %v1577 = vpack.c.b16 %v1089, %v1081
    %v1578 = vpack.c.b16 %v1090, %v1082
    %v1579 = vpack.c.b16 %v1091, %v1083
    %v1580 = vpack.c.b16 %v1092, %v1084
    %v1581 = vpack.c.b16 %v1093, %v1085
    %v1582 = vpack.c.b16 %v1094, %v1086
    %v1583 = vpack.c.b16 %v1103, %v1095
    %v1584 = vpack.c.b16 %v1104, %v1096
    %v1585 = vpack.c.b16 %v1105, %v1097
    %v1586 = vpack.c.b16 %v1106, %v1098
    %v1587 = vpack.c.b16 %v1107, %v1099
    %v1588 = vpack.c.b16 %v1108, %v1100
    %v1589 = vpack.c.b16 %v1109, %v1101
    %v1590 = vpack.c.b16 %v1110, %v1102
    %v1591 = vpack.c.b16 %v1119, %v1111
    %v1592 = vpack.c.b16 %v1120, %v1112
    %v1593 = vpack.c.b16 %v1121, %v1113
    %v1594 = vpack.c.b16 %v1122, %v1114
    %v1595 = vpack.c.b16 %v1123, %v1115
    %v1596 = vpack.c.b16 %v1124, %v1116
    %v1597 = vpack.c.b16 %v1125, %v1117
    %v1598 = vpack.c.b16 %v1126, %v1118
    %v1599 = vpack.c.b16 %v1135, %v1127
    %v1600 = vpack.c.b16 %v1136, %v1128
    %v1601 = vpack.c.b16 %v1137, %v1129
    %v1602 = vpack.c.b16 %v1138, %v1130
    %v1603 = vpack.c.b16 %v1139, %v1131
    %v1604 = vpack.c.b16 %v1140, %v1132
    %v1605 = vpack.c.b16 %v1141, %v1133
    %v1606 = vpack.c.b16 %v1142, %v1134
    %v1607 = vpack.c.b16 %v1151, %v1143
    %v1608 = vpack.c.b16 %v1152, %v1144
    %v1609 = vpack.c.b16 %v1153, %v1145
    %v1610 = vpack.c.b16 %v1154, %v1146
    %v1611 = vpack.c.b16 %v1155, %v1147
    %v1612 = vpack.c.b16 %v1156, %v1148
    %v1613 = vpack.c.b16 %v1157, %v1149
    %v1614 = vpack.c.b16 %v1158, %v1150
    %v1615 = vpack.c.b16 %v1167, %v1159
    %v1616 = vpack.c.b16 %v1168, %v1160
    %v1617 = vpack.c.b16 %v1169, %v1161
    %v1618 = vpack.c.b16 %v1170, %v1162
    %v1619 = vpack.c.b16 %v1171, %v1163
    %v1620 = vpack.c.b16 %v1172, %v1164
    %v1621 = vpack.c.b16 %v1173, %v1165
    %v1622 = vpack.c.b16 %v1174, %v1166
    %v1623 = vpack.c.b16 %v1183, %v1175
    %v1624 = vpack.c.b16 %v1184, %v1176
    %v1625 = vpack.c.b16 %v1185, %v1177
    %v1626 = vpack.c.b16 %v1186, %v1178
    %v1627 = vpack.c.b16 %v1187, %v1179
    %v1628 = vpack.c.b16 %v1188, %v1180
    %v1629 = vpack.c.b16 %v1189, %v1181
    %v1630 = vpack.c.b16 %v1190, %v1182
    %v1631 = vpack.c.b16 %v1199, %v1191
    %v1632 = vpack.c.b16 %v1200, %v1192
    %v1633 = vpack.c.b16 %v1201, %v1193
    %v1634 = vpack.c.b16 %v1202, %v1194
    %v1635 = vpack.c.b16 %v1203, %v1195
    %v1636 = vpack.c.b16 %v1204, %v1196
    %v1637 = vpack.c.b16 %v1205, %v1197
    %v1638 = vpack.c.b16 %v1206, %v1198
    %v1639 = vpack.c.b16 %v1215, %v1207
    %v1640 = vpack.c.b16 %v1216, %v1208
    %v1641 = vpack.c.b16 %v1217, %v1209
    %v1642 = vpack.c.b16 %v1218, %v1210
    %v1643 = vpack.c.b16 %v1219, %v1211
    %v1644 = vpack.c.b16 %v1220, %v1212
    %v1645 = vpack.c.b16 %v1221, %v1213
    %v1646 = vpack.c.b16 %v1222, %v1214
    %v1647 = vpack.c.b16 %v1231, %v1223
    %v1648 = vpack.c.b16 %v1232, %v1224
    %v1649 = vpack.c.b16 %v1233, %v1225
    %v1650 = vpack.c.b16 %v1234, %v1226
    %v1651 = vpack.c.b16 %v1235, %v1227
    %v1652 = vpack.c.b16 %v1236, %v1228
    %v1653 = vpack.c.b16 %v1237, %v1229
    %v1654 = vpack.c.b16 %v1238, %v1230
    %v1655 = vpack.c.b16 %v1247, %v1239
    %v1656 = vpack.c.b16 %v1248, %v1240
    %v1657 = vpack.c.b16 %v1249, %v1241
    %v1658 = vpack.c.b16 %v1250, %v1242
    %v1659 = vpack.c.b16 %v1251, %v1243
    %v1660 = vpack.c.b16 %v1252, %v1244
    %v1661 = vpack.c.b16 %v1253, %v1245
    %v1662 = vpack.c.b16 %v1254, %v1246
    %v1663 = vpack.c.b16 %v1263, %v1255
    %v1664 = vpack.c.b16 %v1264, %v1256
    %v1665 = vpack.c.b16 %v1265, %v1257
    %v1666 = vpack.c.b16 %v1266, %v1258
    %v1667 = vpack.c.b16 %v1267, %v1259
    %v1668 = vpack.c.b16 %v1268, %v1260
    %v1669 = vpack.c.b16 %v1269, %v1261
    %v1670 = vpack.c.b16 %v1270, %v1262
    %v1671 = vpack.c.b16 %v1279, %v1271
    %v1672 = vpack.c.b16 %v1280, %v1272
    %v1673 = vpack.c.b16 %v1281, %v1273
    %v1674 = vpack.c.b16 %v1282, %v1274
    %v1675 = vpack.c.b16 %v1283, %v1275
    %v1676 = vpack.c.b16 %v1284, %v1276
    %v1677 = vpack.c.b16 %v1285, %v1277
    %v1678 = vpack.c.b16 %v1286, %v1278
    %v1679 = vpack.c.b16 %v1295, %v1287
    %v1680 = vpack.c.b16 %v1296, %v1288
    %v1681 = vpack.c.b16 %v1297, %v1289
    %v1682 = vpack.c.b16 %v1298, %v1290
    %v1683 = vpack.c.b16 %v1299, %v1291
    %v1684 = vpack.c.b16 %v1300, %v1292
    %v1685 = vpack.c.b16 %v1301, %v1293
    %v1686 = vpack.c.b16 %v1302, %v1294
    %v1687 = vpack.c.b16 %v1311, %v1303
    %v1688 = vpack.c.b16 %v1312, %v1304
    %v1689 = vpack.c.b16 %v1313, %v1305
    %v1690 = vpack.c.b16 %v1314, %v1306
    %v1691 = vpack.c.b16 %v1315, %v1307
    %v1692 = vpack.c.b16 %v1316, %v1308
    %v1693 = vpack.c.b16 %v1317, %v1309
    %v1694 = vpack.c.b16 %v1318, %v1310
    %v1695 = vpack.c.b16 %v1327, %v1319
    %v1696 = vpack.c.b16 %v1328, %v1320
    %v1697 = vpack.c.b16 %v1329, %v1321
    %v1698 = vpack.c.b16 %v1330, %v1322
    %v1699 = vpack.c.b16 %v1331, %v1323
    %v1700 = vpack.c.b16 %v1332, %v1324
    %v1701 = vpack.c.b16 %v1333, %v1325
    %v1702 = vpack.c.b16 %v1334, %v1326
    %v1703 = vpack.c.b16 %v1343, %v1335
    %v1704 = vpack.c.b16 %v1344, %v1336
    %v1705 = vpack.c.b16 %v1345, %v1337
    %v1706 = vpack.c.b16 %v1346, %v1338
    %v1707 = vpack.c.b16 %v1347, %v1339
    %v1708 = vpack.c.b16 %v1348, %v1340
    %v1709 = vpack.c.b16 %v1349, %v1341
    %v1710 = vpack.c.b16 %v1350, %v1342
    %v1711 = vpack.c.b16 %v1359, %v1351
    %v1712 = vpack.c.b16 %v1360, %v1352
    %v1713 = vpack.c.b16 %v1361, %v1353
    %v1714 = vpack.c.b16 %v1362, %v1354
    %v1715 = vpack.c.b16 %v1363, %v1355
    %v1716 = vpack.c.b16 %v1364, %v1356
    %v1717 = vpack.c.b16 %v1365, %v1357
    %v1718 = vpack.c.b16 %v1366, %v1358
    %v1719 = vpack.c.b16 %v1375, %v1367
    %v1720 = vpack.c.b16 %v1376, %v1368
    %v1721 = vpack.c.b16 %v1377, %v1369
    %v1722 = vpack.c.b16 %v1378, %v1370
    %v1723 = vpack.c.b16 %v1379, %v1371
    %v1724 = vpack.c.b16 %v1380, %v1372
    %v1725 = vpack.c.b16 %v1381, %v1373
    %v1726 = vpack.c.b16 %v1382, %v1374
    %v1727 = vpack.c.b16 %v1391, %v1383
    %v1728 = vpack.c.b16 %v1392, %v1384
    %v1729 = vpack.c.b16 %v1393, %v1385
    %v1730 = vpack.c.b16 %v1394, %v1386
    %v1731 = vpack.c.b16 %v1395, %v1387
    %v1732 = vpack.c.b16 %v1396, %v1388
    %v1733 = vpack.c.b16 %v1397, %v1389
    %v1734 = vpack.c.b16 %v1398, %v1390
    %v1735 = vpack.c.b16 %v1407, %v1399
    %v1736 = vpack.c.b16 %v1408, %v1400
    %v1737 = vpack.c.b16 %v1409, %v1401
    %v1738 = vpack.c.b16 %v1410, %v1402
    %v1739 = vpack.c.b16 %v1411, %v1403
    %v1740 = vpack.c.b16 %v1412, %v1404
    %v1741 = vpack.c.b16 %v1413, %v1405
    %v1742 = vpack.c.b16 %v1414, %v1406
    %v1743 = vpack.c.b16 %v1423, %v1415
    %v1744 = vpack.c.b16 %v1424, %v1416
    %v1745 = vpack.c.b16 %v1425, %v1417
    %v1746 = vpack.c.b16 %v1426, %v1418
    %v1747 = vpack.c.b16 %v1427, %v1419
    %v1748 = vpack.c.b16 %v1428, %v1420
    %v1749 = vpack.c.b16 %v1429, %v1421
    %v1750 = vpack.c.b16 %v1430, %v1422
    %v1751 = vpack.c.b16 %v1439, %v1431
    %v1752 = vpack.c.b16 %v1440, %v1432
    %v1753 = vpack.c.b16 %v1441, %v1433
    %v1754 = vpack.c.b16 %v1442, %v1434
    %v1755 = vpack.c.b16 %v1443, %v1435
    %v1756 = vpack.c.b16 %v1444, %v1436
    %v1757 = vpack.c.b16 %v1445, %v1437
    %v1758 = vpack.c.b16 %v1446, %v1438
    %v1759 = vpack.c.b16 %v1455, %v1447
    %v1760 = vpack.c.b16 %v1456, %v1448
    %v1761 = vpack.c.b16 %v1457, %v1449
    %v1762 = vpack.c.b16 %v1458, %v1450
    %v1763 = vpack.c.b16 %v1459, %v1451
    %v1764 = vpack.c.b16 %v1460, %v1452
    %v1765 = vpack.c.b16 %v1461, %v1453
    %v1766 = vpack.c.b16 %v1462, %v1454
    %v1767 = vpack.c.b16 %v1471, %v1463
    %v1768 = vpack.c.b16 %v1472, %v1464
    %v1769 = vpack.c.b16 %v1473, %v1465
    %v1770 = vpack.c.b16 %v1474, %v1466
    %v1771 = vpack.c.b16 %v1475, %v1467
    %v1772 = vpack.c.b16 %v1476, %v1468
    %v1773 = vpack.c.b16 %v1477, %v1469
    %v1774 = vpack.c.b16 %v1478, %v1470
    %v1775 = vpack.c.b16 %v1487, %v1479
    %v1776 = vpack.c.b16 %v1488, %v1480
    %v1777 = vpack.c.b16 %v1489, %v1481
    %v1778 = vpack.c.b16 %v1490, %v1482
    %v1779 = vpack.c.b16 %v1491, %v1483
    %v1780 = vpack.c.b16 %v1492, %v1484
    %v1781 = vpack.c.b16 %v1493, %v1485
    %v1782 = vpack.c.b16 %v1494, %v1486
    %v1783 = vpack.c.b16 %v1503, %v1495
    %v1784 = vpack.c.b16 %v1504, %v1496
    %v1785 = vpack.c.b16 %v1505, %v1497
    %v1786 = vpack.c.b16 %v1506, %v1498
    %v1787 = vpack.c.b16 %v1507, %v1499
    %v1788 = vpack.c.b16 %v1508, %v1500
    %v1789 = vpack.c.b16 %v1509, %v1501
    %v1790 = vpack.c.b16 %v1510, %v1502
    %v1791 = vpack.c.b16 %v1519, %v1511
    %v1792 = vpack.c.b16 %v1520, %v1512
    %v1793 = vpack.c.b16 %v1521, %v1513
    %v1794 = vpack.c.b16 %v1522, %v1514
    %v1795 = vpack.c.b16 %v1523, %v1515
    %v1796 = vpack.c.b16 %v1524, %v1516
    %v1797 = vpack.c.b16 %v1525, %v1517
    %v1798 = vpack.c.b16 %v1526, %v1518
    %v1799 = vpack.c.b16 %v1535, %v1527
    %v1800 = vpack.c.b16 %v1536, %v1528
    %v1801 = vpack.c.b16 %v1537, %v1529
    %v1802 = vpack.c.b16 %v1538, %v1530
    %v1803 = vpack.c.b16 %v1539, %v1531
    %v1804 = vpack.c.b16 %v1540, %v1532
    %v1805 = vpack.c.b16 %v1541, %v1533
    %v1806 = vpack.c.b16 %v1542, %v1534
    %v1807 = vpack.c.b16 %v1551, %v1543
    %v1808 = vpack.c.b16 %v1552, %v1544
    %v1809 = vpack.c.b16 %v1553, %v1545
    %v1810 = vpack.c.b16 %v1554, %v1546
    %v1811 = vpack.c.b16 %v1555, %v1547
    %v1812 = vpack.c.b16 %v1556, %v1548
    %v1813 = vpack.c.b16 %v1557, %v1549
    %v1814 = vpack.c.b16 %v1558, %v1550
    %2071 = vmatprep.subr.bf16.mxu0 %v1616
    %2072 = vmatpush1.bf16.msra.mxu0 %v1615
    %2073 = vmatprep.subr.bf16.mxu0 %v1608
    %2074 = vmatpush1.bf16.msra.mxu0 %v1607
    %2075 = vmatprep.subr.bf16.mxu0 %v1600
    %2076 = vmatpush1.bf16.msra.mxu0 %v1599
    %2077 = vmatprep.subr.bf16.mxu0 %v1592
    %2078 = vmatpush1.bf16.msra.mxu0 %v1591
    %2079 = vmatprep.subr.bf16.mxu0 %v1584
    %2080 = vmatpush1.bf16.msra.mxu0 %v1583
    %2081 = vmatprep.subr.bf16.mxu0 %v1576
    %2082 = vmatpush1.bf16.msra.mxu0 %v1575
    %2083 = vmatprep.subr.bf16.mxu0 %v1568
    %2084 = vmatpush1.bf16.msra.mxu0 %v1567
    %2085 = vmatprep.subr.bf16.mxu0 %v1560
    %2086 = vmatpush1.bf16.msra.mxu0 %v1559
    %2087 = vmatprep.subr.bf16.mxu0 %v1680
    %2088 = vmatpush2.bf16.msra.mxu0 %v1679
    %2089 = vmatprep.subr.bf16.mxu0 %v1672
    %2090 = vmatpush2.bf16.msra.mxu0 %v1671
    %2091 = vmatprep.subr.bf16.mxu0 %v1664
    %2092 = vmatpush2.bf16.msra.mxu0 %v1663
    %2093 = vmatprep.subr.bf16.mxu0 %v1656
    %2094 = vmatpush2.bf16.msra.mxu0 %v1655
    %2095 = vmatprep.subr.bf16.mxu0 %v1648
    %2096 = vmatpush2.bf16.msra.mxu0 %v1647
    %2097 = vmatprep.subr.bf16.mxu0 %v1640
    %2098 = vmatpush2.bf16.msra.mxu0 %v1639
    %2099 = vmatprep.subr.bf16.mxu0 %v1632
    %2100 = vmatpush2.bf16.msra.mxu0 %v1631
    %2101 = vmatprep.subr.bf16.mxu0 %v1624
    %2102 = vmatpush2.bf16.msra.mxu0 %v1623
    %2103 = vmatprep.mubr.bf16.mxu0 %v490
    %2104 = vmatmul.mubr.bf16.gmra.mxu0 %v489
    %v2105 = vpop.f32.mrf.mxu0
    %v2106 = vadd.f32 %v754, %v2105
    %v2107 = vpop.f32.mrf.mxu0
    %v2108 = vadd.f32 %v758, %v2107
    %v2109 = vpop.f32.mrf.mxu0
    %v2110 = vadd.f32 %v754, %v2109
    %v2111 = vpop.f32.mrf.mxu0
    %v2112 = vadd.f32 %v758, %v2111
    %2113 = vdwg.mxu0
    %2114 = vmatprep.subr.bf16.mxu0 %v1744
    %2115 = vmatpush1.bf16.msra.mxu0 %v1743
    %2116 = vmatprep.subr.bf16.mxu0 %v1736
    %2117 = vmatpush1.bf16.msra.mxu0 %v1735
    %2118 = vmatprep.subr.bf16.mxu0 %v1728
    %2119 = vmatpush1.bf16.msra.mxu0 %v1727
    %2120 = vmatprep.subr.bf16.mxu0 %v1720
    %2121 = vmatpush1.bf16.msra.mxu0 %v1719
    %2122 = vmatprep.subr.bf16.mxu0 %v1712
    %2123 = vmatpush1.bf16.msra.mxu0 %v1711
    %2124 = vmatprep.subr.bf16.mxu0 %v1704
    %2125 = vmatpush1.bf16.msra.mxu0 %v1703
    %2126 = vmatprep.subr.bf16.mxu0 %v1696
    %2127 = vmatpush1.bf16.msra.mxu0 %v1695
    %2128 = vmatprep.subr.bf16.mxu0 %v1688
    %2129 = vmatpush1.bf16.msra.mxu0 %v1687
    %2130 = vmatprep.subr.bf16.mxu0 %v1808
    %2131 = vmatpush2.bf16.msra.mxu0 %v1807
    %2132 = vmatprep.subr.bf16.mxu0 %v1800
    %2133 = vmatpush2.bf16.msra.mxu0 %v1799
    %2134 = vmatprep.subr.bf16.mxu0 %v1792
    %2135 = vmatpush2.bf16.msra.mxu0 %v1791
    %2136 = vmatprep.subr.bf16.mxu0 %v1784
    %2137 = vmatpush2.bf16.msra.mxu0 %v1783
    %2138 = vmatprep.subr.bf16.mxu0 %v1776
    %2139 = vmatpush2.bf16.msra.mxu0 %v1775
    %2140 = vmatprep.subr.bf16.mxu0 %v1768
    %2141 = vmatpush2.bf16.msra.mxu0 %v1767
    %2142 = vmatprep.subr.bf16.mxu0 %v1760
    %2143 = vmatpush2.bf16.msra.mxu0 %v1759
    %2144 = vmatprep.subr.bf16.mxu0 %v1752
    %2145 = vmatpush2.bf16.msra.mxu0 %v1751
    %2146 = vmatprep.mubr.bf16.mxu0 %v492
    %2147 = vmatmul.mubr.bf16.gmra.mxu0 %v491
    %v2148 = vpop.f32.mrf.mxu0
    %v2149 = vadd.f32 %v2106, %v2148
    %v2150 = vpop.f32.mrf.mxu0
    %v2151 = vadd.f32 %v2108, %v2150
    %v2152 = vpop.f32.mrf.mxu0
    %v2153 = vadd.f32 %v2110, %v2152
    %v2154 = vpop.f32.mrf.mxu0
    %v2155 = vadd.f32 %v2112, %v2154
    %2156 = vdwg.mxu0
    %2157 = vmatprep.subr.bf16.mxu0 %v1618
    %2158 = vmatpush1.bf16.msra.mxu0 %v1617
    %2159 = vmatprep.subr.bf16.mxu0 %v1610
    %2160 = vmatpush1.bf16.msra.mxu0 %v1609
    %2161 = vmatprep.subr.bf16.mxu0 %v1602
    %2162 = vmatpush1.bf16.msra.mxu0 %v1601
    %2163 = vmatprep.subr.bf16.mxu0 %v1594
    %2164 = vmatpush1.bf16.msra.mxu0 %v1593
    %2165 = vmatprep.subr.bf16.mxu0 %v1586
    %2166 = vmatpush1.bf16.msra.mxu0 %v1585
    %2167 = vmatprep.subr.bf16.mxu0 %v1578
    %2168 = vmatpush1.bf16.msra.mxu0 %v1577
    %2169 = vmatprep.subr.bf16.mxu0 %v1570
    %2170 = vmatpush1.bf16.msra.mxu0 %v1569
    %2171 = vmatprep.subr.bf16.mxu0 %v1562
    %2172 = vmatpush1.bf16.msra.mxu0 %v1561
    %2173 = vmatprep.subr.bf16.mxu0 %v1682
    %2174 = vmatpush2.bf16.msra.mxu0 %v1681
    %2175 = vmatprep.subr.bf16.mxu0 %v1674
    %2176 = vmatpush2.bf16.msra.mxu0 %v1673
    %2177 = vmatprep.subr.bf16.mxu0 %v1666
    %2178 = vmatpush2.bf16.msra.mxu0 %v1665
    %2179 = vmatprep.subr.bf16.mxu0 %v1658
    %2180 = vmatpush2.bf16.msra.mxu0 %v1657
    %2181 = vmatprep.subr.bf16.mxu0 %v1650
    %2182 = vmatpush2.bf16.msra.mxu0 %v1649
    %2183 = vmatprep.subr.bf16.mxu0 %v1642
    %2184 = vmatpush2.bf16.msra.mxu0 %v1641
    %2185 = vmatprep.subr.bf16.mxu0 %v1634
    %2186 = vmatpush2.bf16.msra.mxu0 %v1633
    %2187 = vmatprep.subr.bf16.mxu0 %v1626
    %2188 = vmatpush2.bf16.msra.mxu0 %v1625
    %2189 = vmatprep.mubr.bf16.mxu0 %v490
    %2190 = vmatmul.mubr.bf16.gmra.mxu0 %v489
    %v2191 = vpop.f32.mrf.mxu0
    %v2192 = vadd.f32 %v762, %v2191
    %v2193 = vpop.f32.mrf.mxu0
    %v2194 = vadd.f32 %v766, %v2193
    %v2195 = vpop.f32.mrf.mxu0
    %v2196 = vadd.f32 %v762, %v2195
    %v2197 = vpop.f32.mrf.mxu0
    %v2198 = vadd.f32 %v766, %v2197
    %2199 = vdwg.mxu0
    %2200 = vmatprep.subr.bf16.mxu0 %v1746
    %2201 = vmatpush1.bf16.msra.mxu0 %v1745
    %2202 = vmatprep.subr.bf16.mxu0 %v1738
    %2203 = vmatpush1.bf16.msra.mxu0 %v1737
    %2204 = vmatprep.subr.bf16.mxu0 %v1730
    %2205 = vmatpush1.bf16.msra.mxu0 %v1729
    %2206 = vmatprep.subr.bf16.mxu0 %v1722
    %2207 = vmatpush1.bf16.msra.mxu0 %v1721
    %2208 = vmatprep.subr.bf16.mxu0 %v1714
    %2209 = vmatpush1.bf16.msra.mxu0 %v1713
    %2210 = vmatprep.subr.bf16.mxu0 %v1706
    %2211 = vmatpush1.bf16.msra.mxu0 %v1705
    %2212 = vmatprep.subr.bf16.mxu0 %v1698
    %2213 = vmatpush1.bf16.msra.mxu0 %v1697
    %2214 = vmatprep.subr.bf16.mxu0 %v1690
    %2215 = vmatpush1.bf16.msra.mxu0 %v1689
    %2216 = vmatprep.subr.bf16.mxu0 %v1810
    %2217 = vmatpush2.bf16.msra.mxu0 %v1809
    %2218 = vmatprep.subr.bf16.mxu0 %v1802
    %2219 = vmatpush2.bf16.msra.mxu0 %v1801
    %2220 = vmatprep.subr.bf16.mxu0 %v1794
    %2221 = vmatpush2.bf16.msra.mxu0 %v1793
    %2222 = vmatprep.subr.bf16.mxu0 %v1786
    %2223 = vmatpush2.bf16.msra.mxu0 %v1785
    %2224 = vmatprep.subr.bf16.mxu0 %v1778
    %2225 = vmatpush2.bf16.msra.mxu0 %v1777
    %2226 = vmatprep.subr.bf16.mxu0 %v1770
    %2227 = vmatpush2.bf16.msra.mxu0 %v1769
    %2228 = vmatprep.subr.bf16.mxu0 %v1762
    %2229 = vmatpush2.bf16.msra.mxu0 %v1761
    %2230 = vmatprep.subr.bf16.mxu0 %v1754
    %2231 = vmatpush2.bf16.msra.mxu0 %v1753
    %2232 = vmatprep.mubr.bf16.mxu0 %v492
    %2233 = vmatmul.mubr.bf16.gmra.mxu0 %v491
    %v2234 = vpop.f32.mrf.mxu0
    %v2235 = vadd.f32 %v2192, %v2234
    %v2236 = vpop.f32.mrf.mxu0
    %v2237 = vadd.f32 %v2194, %v2236
    %v2238 = vpop.f32.mrf.mxu0
    %v2239 = vadd.f32 %v2196, %v2238
    %v2240 = vpop.f32.mrf.mxu0
    %v2241 = vadd.f32 %v2198, %v2240
    %2242 = vdwg.mxu0
    %2243 = vmatprep.subr.bf16.mxu0 %v1620
    %2244 = vmatpush1.bf16.msra.mxu0 %v1619
    %2245 = vmatprep.subr.bf16.mxu0 %v1612
    %2246 = vmatpush1.bf16.msra.mxu0 %v1611
    %2247 = vmatprep.subr.bf16.mxu0 %v1604
    %2248 = vmatpush1.bf16.msra.mxu0 %v1603
    %2249 = vmatprep.subr.bf16.mxu0 %v1596
    %2250 = vmatpush1.bf16.msra.mxu0 %v1595
    %2251 = vmatprep.subr.bf16.mxu0 %v1588
    %2252 = vmatpush1.bf16.msra.mxu0 %v1587
    %2253 = vmatprep.subr.bf16.mxu0 %v1580
    %2254 = vmatpush1.bf16.msra.mxu0 %v1579
    %2255 = vmatprep.subr.bf16.mxu0 %v1572
    %2256 = vmatpush1.bf16.msra.mxu0 %v1571
    %2257 = vmatprep.subr.bf16.mxu0 %v1564
    %2258 = vmatpush1.bf16.msra.mxu0 %v1563
    %2259 = vmatprep.subr.bf16.mxu0 %v1684
    %2260 = vmatpush2.bf16.msra.mxu0 %v1683
    %2261 = vmatprep.subr.bf16.mxu0 %v1676
    %2262 = vmatpush2.bf16.msra.mxu0 %v1675
    %2263 = vmatprep.subr.bf16.mxu0 %v1668
    %2264 = vmatpush2.bf16.msra.mxu0 %v1667
    %2265 = vmatprep.subr.bf16.mxu0 %v1660
    %2266 = vmatpush2.bf16.msra.mxu0 %v1659
    %2267 = vmatprep.subr.bf16.mxu0 %v1652
    %2268 = vmatpush2.bf16.msra.mxu0 %v1651
    %2269 = vmatprep.subr.bf16.mxu0 %v1644
    %2270 = vmatpush2.bf16.msra.mxu0 %v1643
    %2271 = vmatprep.subr.bf16.mxu0 %v1636
    %2272 = vmatpush2.bf16.msra.mxu0 %v1635
    %2273 = vmatprep.subr.bf16.mxu0 %v1628
    %2274 = vmatpush2.bf16.msra.mxu0 %v1627
    %2275 = vmatprep.mubr.bf16.mxu0 %v490
    %2276 = vmatmul.mubr.bf16.gmra.mxu0 %v489
    %v2277 = vpop.f32.mrf.mxu0
    %v2278 = vadd.f32 %v770, %v2277
    %v2279 = vpop.f32.mrf.mxu0
    %v2280 = vadd.f32 %v774, %v2279
    %v2281 = vpop.f32.mrf.mxu0
    %v2282 = vadd.f32 %v770, %v2281
    %v2283 = vpop.f32.mrf.mxu0
    %v2284 = vadd.f32 %v774, %v2283
    %2285 = vdwg.mxu0
    %2286 = vmatprep.subr.bf16.mxu0 %v1748
    %2287 = vmatpush1.bf16.msra.mxu0 %v1747
    %2288 = vmatprep.subr.bf16.mxu0 %v1740
    %2289 = vmatpush1.bf16.msra.mxu0 %v1739
    %2290 = vmatprep.subr.bf16.mxu0 %v1732
    %2291 = vmatpush1.bf16.msra.mxu0 %v1731
    %2292 = vmatprep.subr.bf16.mxu0 %v1724
    %2293 = vmatpush1.bf16.msra.mxu0 %v1723
    %2294 = vmatprep.subr.bf16.mxu0 %v1716
    %2295 = vmatpush1.bf16.msra.mxu0 %v1715
    %2296 = vmatprep.subr.bf16.mxu0 %v1708
    %2297 = vmatpush1.bf16.msra.mxu0 %v1707
    %2298 = vmatprep.subr.bf16.mxu0 %v1700
    %2299 = vmatpush1.bf16.msra.mxu0 %v1699
    %2300 = vmatprep.subr.bf16.mxu0 %v1692
    %2301 = vmatpush1.bf16.msra.mxu0 %v1691
    %2302 = vmatprep.subr.bf16.mxu0 %v1812
    %2303 = vmatpush2.bf16.msra.mxu0 %v1811
    %2304 = vmatprep.subr.bf16.mxu0 %v1804
    %2305 = vmatpush2.bf16.msra.mxu0 %v1803
    %2306 = vmatprep.subr.bf16.mxu0 %v1796
    %2307 = vmatpush2.bf16.msra.mxu0 %v1795
    %2308 = vmatprep.subr.bf16.mxu0 %v1788
    %2309 = vmatpush2.bf16.msra.mxu0 %v1787
    %2310 = vmatprep.subr.bf16.mxu0 %v1780
    %2311 = vmatpush2.bf16.msra.mxu0 %v1779
    %2312 = vmatprep.subr.bf16.mxu0 %v1772
    %2313 = vmatpush2.bf16.msra.mxu0 %v1771
    %2314 = vmatprep.subr.bf16.mxu0 %v1764
    %2315 = vmatpush2.bf16.msra.mxu0 %v1763
    %2316 = vmatprep.subr.bf16.mxu0 %v1756
    %2317 = vmatpush2.bf16.msra.mxu0 %v1755
    %2318 = vmatprep.mubr.bf16.mxu0 %v492
    %2319 = vmatmul.mubr.bf16.gmra.mxu0 %v491
    %v2320 = vpop.f32.mrf.mxu0
    %v2321 = vadd.f32 %v2278, %v2320
    %v2322 = vpop.f32.mrf.mxu0
    %v2323 = vadd.f32 %v2280, %v2322
    %v2324 = vpop.f32.mrf.mxu0
    %v2325 = vadd.f32 %v2282, %v2324
    %v2326 = vpop.f32.mrf.mxu0
    %v2327 = vadd.f32 %v2284, %v2326
    %2328 = vdwg.mxu0
    %2329 = vmatprep.subr.bf16.mxu0 %v1622
    %2330 = vmatpush1.bf16.msra.mxu0 %v1621
    %2331 = vmatprep.subr.bf16.mxu0 %v1614
    %2332 = vmatpush1.bf16.msra.mxu0 %v1613
    %2333 = vmatprep.subr.bf16.mxu0 %v1606
    %2334 = vmatpush1.bf16.msra.mxu0 %v1605
    %2335 = vmatprep.subr.bf16.mxu0 %v1598
    %2336 = vmatpush1.bf16.msra.mxu0 %v1597
    %2337 = vmatprep.subr.bf16.mxu0 %v1590
    %2338 = vmatpush1.bf16.msra.mxu0 %v1589
    %2339 = vmatprep.subr.bf16.mxu0 %v1582
    %2340 = vmatpush1.bf16.msra.mxu0 %v1581
    %2341 = vmatprep.subr.bf16.mxu0 %v1574
    %2342 = vmatpush1.bf16.msra.mxu0 %v1573
    %2343 = vmatprep.subr.bf16.mxu0 %v1566
    %2344 = vmatpush1.bf16.msra.mxu0 %v1565
    %2345 = vmatprep.subr.bf16.mxu0 %v1686
    %2346 = vmatpush2.bf16.msra.mxu0 %v1685
    %2347 = vmatprep.subr.bf16.mxu0 %v1678
    %2348 = vmatpush2.bf16.msra.mxu0 %v1677
    %2349 = vmatprep.subr.bf16.mxu0 %v1670
    %2350 = vmatpush2.bf16.msra.mxu0 %v1669
    %2351 = vmatprep.subr.bf16.mxu0 %v1662
    %2352 = vmatpush2.bf16.msra.mxu0 %v1661
    %2353 = vmatprep.subr.bf16.mxu0 %v1654
    %2354 = vmatpush2.bf16.msra.mxu0 %v1653
    %2355 = vmatprep.subr.bf16.mxu0 %v1646
    %2356 = vmatpush2.bf16.msra.mxu0 %v1645
    %2357 = vmatprep.subr.bf16.mxu0 %v1638
    %2358 = vmatpush2.bf16.msra.mxu0 %v1637
    %2359 = vmatprep.subr.bf16.mxu0 %v1630
    %2360 = vmatpush2.bf16.msra.mxu0 %v1629
    %2361 = vmatprep.mubr.bf16.mxu0 %v490
    %2362 = vmatmul.mubr.bf16.gmra.mxu0 %v489
    %v2363 = vpop.f32.mrf.mxu0
    %v2364 = vadd.f32 %v778, %v2363
    %v2365 = vpop.f32.mrf.mxu0
    %v2366 = vadd.f32 %v782, %v2365
    %v2367 = vpop.f32.mrf.mxu0
    %v2368 = vadd.f32 %v778, %v2367
    %v2369 = vpop.f32.mrf.mxu0
    %v2370 = vadd.f32 %v782, %v2369
    %2371 = vdwg.mxu0
    %2372 = vmatprep.subr.bf16.mxu0 %v1750
    %2373 = vmatpush1.bf16.msra.mxu0 %v1749
    %2374 = vmatprep.subr.bf16.mxu0 %v1742
    %2375 = vmatpush1.bf16.msra.mxu0 %v1741
    %2376 = vmatprep.subr.bf16.mxu0 %v1734
    %2377 = vmatpush1.bf16.msra.mxu0 %v1733
    %2378 = vmatprep.subr.bf16.mxu0 %v1726
    %2379 = vmatpush1.bf16.msra.mxu0 %v1725
    %2380 = vmatprep.subr.bf16.mxu0 %v1718
    %2381 = vmatpush1.bf16.msra.mxu0 %v1717
    %2382 = vmatprep.subr.bf16.mxu0 %v1710
    %2383 = vmatpush1.bf16.msra.mxu0 %v1709
    %2384 = vmatprep.subr.bf16.mxu0 %v1702
    %2385 = vmatpush1.bf16.msra.mxu0 %v1701
    %2386 = vmatprep.subr.bf16.mxu0 %v1694
    %2387 = vmatpush1.bf16.msra.mxu0 %v1693
    %2388 = vmatprep.subr.bf16.mxu0 %v1814
    %2389 = vmatpush2.bf16.msra.mxu0 %v1813
    %2390 = vmatprep.subr.bf16.mxu0 %v1806
    %2391 = vmatpush2.bf16.msra.mxu0 %v1805
    %2392 = vmatprep.subr.bf16.mxu0 %v1798
    %2393 = vmatpush2.bf16.msra.mxu0 %v1797
    %2394 = vmatprep.subr.bf16.mxu0 %v1790
    %2395 = vmatpush2.bf16.msra.mxu0 %v1789
    %2396 = vmatprep.subr.bf16.mxu0 %v1782
    %2397 = vmatpush2.bf16.msra.mxu0 %v1781
    %2398 = vmatprep.subr.bf16.mxu0 %v1774
    %2399 = vmatpush2.bf16.msra.mxu0 %v1773
    %2400 = vmatprep.subr.bf16.mxu0 %v1766
    %2401 = vmatpush2.bf16.msra.mxu0 %v1765
    %2402 = vmatprep.subr.bf16.mxu0 %v1758
    %2403 = vmatpush2.bf16.msra.mxu0 %v1757
    %2404 = vmatprep.mubr.bf16.mxu0 %v492
    %2405 = vmatmul.mubr.bf16.gmra.mxu0 %v491
    %v2406 = vpop.f32.mrf.mxu0
    %v2407 = vadd.f32 %v2364, %v2406
    %v2408 = vpop.f32.mrf.mxu0
    %v2409 = vadd.f32 %v2366, %v2408
    %v2410 = vpop.f32.mrf.mxu0
    %v2411 = vadd.f32 %v2368, %v2410
    %v2412 = vpop.f32.mrf.mxu0
    %v2413 = vadd.f32 %v2370, %v2412
    %2414 = vdwg.mxu0
    %v2415 = vmax.f32 %v2149, 0.0
    %v2416 = vmax.f32 %v2151, 0.0
    %v2417 = vmax.f32 %v2235, 0.0
    %v2418 = vmax.f32 %v2237, 0.0
    %v2419 = vmax.f32 %v2321, 0.0
    %v2420 = vmax.f32 %v2323, 0.0
    %v2421 = vmax.f32 %v2407, 0.0
    %v2422 = vmax.f32 %v2409, 0.0
    %v2423 = vmax.f32 %v2153, 0.0
    %v2424 = vmax.f32 %v2155, 0.0
    %v2425 = vmax.f32 %v2239, 0.0
    %v2426 = vmax.f32 %v2241, 0.0
    %v2427 = vmax.f32 %v2325, 0.0
    %v2428 = vmax.f32 %v2327, 0.0
    %v2429 = vmax.f32 %v2411, 0.0
    %v2430 = vmax.f32 %v2413, 0.0
    %v2431 = vpack.c.bf16 %v2423, %v2415
    %v2432 = vpack.c.bf16 %v2424, %v2416
    %v2433 = vpack.c.bf16 %v2425, %v2417
    %v2434 = vpack.c.bf16 %v2426, %v2418
    %v2435 = vpack.c.bf16 %v2427, %v2419
    %v2436 = vpack.c.bf16 %v2428, %v2420
    %v2437 = vpack.c.bf16 %v2429, %v2421
    %v2438 = vpack.c.bf16 %v2430, %v2422
    %v2439 = vld [vmem:[#allocation13] sm:$0xff]
    %v2440 = vld [vmem:[#allocation13 + $0x8] sm:$0xff]
    %v2441 = vld [vmem:[#allocation13 + $0x10] sm:$0xff]
    %v2442 = vld [vmem:[#allocation13 + $0x18] sm:$0xff]
    %v2443 = vld [vmem:[#allocation13 + $0x20] sm:$0xff]
    %v2444 = vld [vmem:[#allocation13 + $0x28] sm:$0xff]
    %v2445 = vld [vmem:[#allocation13 + $0x30] sm:$0xff]
    %v2446 = vld [vmem:[#allocation13 + $0x38] sm:$0xff]
    %v2447 = vld [vmem:[#allocation13 + $0x40] sm:$0xff]
    %v2448 = vld [vmem:[#allocation13 + $0x48] sm:$0xff]
    %v2449 = vld [vmem:[#allocation13 + $0x50] sm:$0xff]
    %v2450 = vld [vmem:[#allocation13 + $0x58] sm:$0xff]
    %v2451 = vld [vmem:[#allocation13 + $0x60] sm:$0xff]
    %v2452 = vld [vmem:[#allocation13 + $0x68] sm:$0xff]
    %v2453 = vld [vmem:[#allocation13 + $0x70] sm:$0xff]
    %v2454 = vld [vmem:[#allocation13 + $0x78] sm:$0xff]
    %v2455 = vld [vmem:[#allocation13 + $0x80] sm:$0xff]
    %v2456 = vld [vmem:[#allocation13 + $0x88] sm:$0xff]
    %v2457 = vld [vmem:[#allocation13 + $0x90] sm:$0xff]
    %v2458 = vld [vmem:[#allocation13 + $0x98] sm:$0xff]
    %v2459 = vld [vmem:[#allocation13 + $0xa0] sm:$0xff]
    %v2460 = vld [vmem:[#allocation13 + $0xa8] sm:$0xff]
    %v2461 = vld [vmem:[#allocation13 + $0xb0] sm:$0xff]
    %v2462 = vld [vmem:[#allocation13 + $0xb8] sm:$0xff]
    %v2463 = vld [vmem:[#allocation13 + $0xc0] sm:$0xff]
    %v2464 = vld [vmem:[#allocation13 + $0xc8] sm:$0xff]
    %v2465 = vld [vmem:[#allocation13 + $0xd0] sm:$0xff]
    %v2466 = vld [vmem:[#allocation13 + $0xd8] sm:$0xff]
    %v2467 = vld [vmem:[#allocation13 + $0xe0] sm:$0xff]
    %v2468 = vld [vmem:[#allocation13 + $0xe8] sm:$0xff]
    %v2469 = vld [vmem:[#allocation13 + $0xf0] sm:$0xff]
    %v2470 = vld [vmem:[#allocation13 + $0xf8] sm:$0xff]
    %v2471 = vld [vmem:[#allocation13 + $0x100] sm:$0xff]
    %v2472 = vld [vmem:[#allocation13 + $0x108] sm:$0xff]
    %v2473 = vld [vmem:[#allocation13 + $0x110] sm:$0xff]
    %v2474 = vld [vmem:[#allocation13 + $0x118] sm:$0xff]
    %v2475 = vld [vmem:[#allocation13 + $0x120] sm:$0xff]
    %v2476 = vld [vmem:[#allocation13 + $0x128] sm:$0xff]
    %v2477 = vld [vmem:[#allocation13 + $0x130] sm:$0xff]
    %v2478 = vld [vmem:[#allocation13 + $0x138] sm:$0xff]
    %v2479 = vld [vmem:[#allocation13 + $0x140] sm:$0xff]
    %v2480 = vld [vmem:[#allocation13 + $0x148] sm:$0xff]
    %v2481 = vld [vmem:[#allocation13 + $0x150] sm:$0xff]
    %v2482 = vld [vmem:[#allocation13 + $0x158] sm:$0xff]
    %v2483 = vld [vmem:[#allocation13 + $0x160] sm:$0xff]
    %v2484 = vld [vmem:[#allocation13 + $0x168] sm:$0xff]
    %v2485 = vld [vmem:[#allocation13 + $0x170] sm:$0xff]
    %v2486 = vld [vmem:[#allocation13 + $0x178] sm:$0xff]
    %v2487 = vld [vmem:[#allocation13 + $0x180] sm:$0xff]
    %v2488 = vld [vmem:[#allocation13 + $0x188] sm:$0xff]
    %v2489 = vld [vmem:[#allocation13 + $0x190] sm:$0xff]
    %v2490 = vld [vmem:[#allocation13 + $0x198] sm:$0xff]
    %v2491 = vld [vmem:[#allocation13 + $0x1a0] sm:$0xff]
    %v2492 = vld [vmem:[#allocation13 + $0x1a8] sm:$0xff]
    %v2493 = vld [vmem:[#allocation13 + $0x1b0] sm:$0xff]
    %v2494 = vld [vmem:[#allocation13 + $0x1b8] sm:$0xff]
    %v2495 = vld [vmem:[#allocation13 + $0x1c0] sm:$0xff]
    %v2496 = vld [vmem:[#allocation13 + $0x1c8] sm:$0xff]
    %v2497 = vld [vmem:[#allocation13 + $0x1d0] sm:$0xff]
    %v2498 = vld [vmem:[#allocation13 + $0x1d8] sm:$0xff]
    %v2499 = vld [vmem:[#allocation13 + $0x1e0] sm:$0xff]
    %v2500 = vld [vmem:[#allocation13 + $0x1e8] sm:$0xff]
    %v2501 = vld [vmem:[#allocation13 + $0x1f0] sm:$0xff]
    %v2502 = vld [vmem:[#allocation13 + $0x1f8] sm:$0xff]
    %v2503 = vld [vmem:[#allocation13 + $0x200] sm:$0xff]
    %v2504 = vld [vmem:[#allocation13 + $0x208] sm:$0xff]
    %v2505 = vld [vmem:[#allocation13 + $0x210] sm:$0xff]
    %v2506 = vld [vmem:[#allocation13 + $0x218] sm:$0xff]
    %v2507 = vld [vmem:[#allocation13 + $0x220] sm:$0xff]
    %v2508 = vld [vmem:[#allocation13 + $0x228] sm:$0xff]
    %v2509 = vld [vmem:[#allocation13 + $0x230] sm:$0xff]
    %v2510 = vld [vmem:[#allocation13 + $0x238] sm:$0xff]
    %v2511 = vld [vmem:[#allocation13 + $0x240] sm:$0xff]
    %v2512 = vld [vmem:[#allocation13 + $0x248] sm:$0xff]
    %v2513 = vld [vmem:[#allocation13 + $0x250] sm:$0xff]
    %v2514 = vld [vmem:[#allocation13 + $0x258] sm:$0xff]
    %v2515 = vld [vmem:[#allocation13 + $0x260] sm:$0xff]
    %v2516 = vld [vmem:[#allocation13 + $0x268] sm:$0xff]
    %v2517 = vld [vmem:[#allocation13 + $0x270] sm:$0xff]
    %v2518 = vld [vmem:[#allocation13 + $0x278] sm:$0xff]
    %v2519 = vld [vmem:[#allocation13 + $0x280] sm:$0xff]
    %v2520 = vld [vmem:[#allocation13 + $0x288] sm:$0xff]
    %v2521 = vld [vmem:[#allocation13 + $0x290] sm:$0xff]
    %v2522 = vld [vmem:[#allocation13 + $0x298] sm:$0xff]
    %v2523 = vld [vmem:[#allocation13 + $0x2a0] sm:$0xff]
    %v2524 = vld [vmem:[#allocation13 + $0x2a8] sm:$0xff]
    %v2525 = vld [vmem:[#allocation13 + $0x2b0] sm:$0xff]
    %v2526 = vld [vmem:[#allocation13 + $0x2b8] sm:$0xff]
    %v2527 = vld [vmem:[#allocation13 + $0x2c0] sm:$0xff]
    %v2528 = vld [vmem:[#allocation13 + $0x2c8] sm:$0xff]
    %v2529 = vld [vmem:[#allocation13 + $0x2d0] sm:$0xff]
    %v2530 = vld [vmem:[#allocation13 + $0x2d8] sm:$0xff]
    %v2531 = vld [vmem:[#allocation13 + $0x2e0] sm:$0xff]
    %v2532 = vld [vmem:[#allocation13 + $0x2e8] sm:$0xff]
    %v2533 = vld [vmem:[#allocation13 + $0x2f0] sm:$0xff]
    %v2534 = vld [vmem:[#allocation13 + $0x2f8] sm:$0xff]
    %v2535 = vld [vmem:[#allocation13 + $0x300] sm:$0xff]
    %v2536 = vld [vmem:[#allocation13 + $0x308] sm:$0xff]
    %v2537 = vld [vmem:[#allocation13 + $0x310] sm:$0xff]
    %v2538 = vld [vmem:[#allocation13 + $0x318] sm:$0xff]
    %v2539 = vld [vmem:[#allocation13 + $0x320] sm:$0xff]
    %v2540 = vld [vmem:[#allocation13 + $0x328] sm:$0xff]
    %v2541 = vld [vmem:[#allocation13 + $0x330] sm:$0xff]
    %v2542 = vld [vmem:[#allocation13 + $0x338] sm:$0xff]
    %v2543 = vld [vmem:[#allocation13 + $0x340] sm:$0xff]
    %v2544 = vld [vmem:[#allocation13 + $0x348] sm:$0xff]
    %v2545 = vld [vmem:[#allocation13 + $0x350] sm:$0xff]
    %v2546 = vld [vmem:[#allocation13 + $0x358] sm:$0xff]
    %v2547 = vld [vmem:[#allocation13 + $0x360] sm:$0xff]
    %v2548 = vld [vmem:[#allocation13 + $0x368] sm:$0xff]
    %v2549 = vld [vmem:[#allocation13 + $0x370] sm:$0xff]
    %v2550 = vld [vmem:[#allocation13 + $0x378] sm:$0xff]
    %v2551 = vld [vmem:[#allocation13 + $0x380] sm:$0xff]
    %v2552 = vld [vmem:[#allocation13 + $0x388] sm:$0xff]
    %v2553 = vld [vmem:[#allocation13 + $0x390] sm:$0xff]
    %v2554 = vld [vmem:[#allocation13 + $0x398] sm:$0xff]
    %v2555 = vld [vmem:[#allocation13 + $0x3a0] sm:$0xff]
    %v2556 = vld [vmem:[#allocation13 + $0x3a8] sm:$0xff]
    %v2557 = vld [vmem:[#allocation13 + $0x3b0] sm:$0xff]
    %v2558 = vld [vmem:[#allocation13 + $0x3b8] sm:$0xff]
    %v2559 = vld [vmem:[#allocation13 + $0x3c0] sm:$0xff]
    %v2560 = vld [vmem:[#allocation13 + $0x3c8] sm:$0xff]
    %v2561 = vld [vmem:[#allocation13 + $0x3d0] sm:$0xff]
    %v2562 = vld [vmem:[#allocation13 + $0x3d8] sm:$0xff]
    %v2563 = vld [vmem:[#allocation13 + $0x3e0] sm:$0xff]
    %v2564 = vld [vmem:[#allocation13 + $0x3e8] sm:$0xff]
    %v2565 = vld [vmem:[#allocation13 + $0x3f0] sm:$0xff]
    %v2566 = vld [vmem:[#allocation13 + $0x3f8] sm:$0xff]
    %v2567 = vld [vmem:[#allocation13 + $0x400] sm:$0xff]
    %v2568 = vld [vmem:[#allocation13 + $0x408] sm:$0xff]
    %v2569 = vld [vmem:[#allocation13 + $0x410] sm:$0xff]
    %v2570 = vld [vmem:[#allocation13 + $0x418] sm:$0xff]
    %v2571 = vld [vmem:[#allocation13 + $0x420] sm:$0xff]
    %v2572 = vld [vmem:[#allocation13 + $0x428] sm:$0xff]
    %v2573 = vld [vmem:[#allocation13 + $0x430] sm:$0xff]
    %v2574 = vld [vmem:[#allocation13 + $0x438] sm:$0xff]
    %v2575 = vld [vmem:[#allocation13 + $0x440] sm:$0xff]
    %v2576 = vld [vmem:[#allocation13 + $0x448] sm:$0xff]
    %v2577 = vld [vmem:[#allocation13 + $0x450] sm:$0xff]
    %v2578 = vld [vmem:[#allocation13 + $0x458] sm:$0xff]
    %v2579 = vld [vmem:[#allocation13 + $0x460] sm:$0xff]
    %v2580 = vld [vmem:[#allocation13 + $0x468] sm:$0xff]
    %v2581 = vld [vmem:[#allocation13 + $0x470] sm:$0xff]
    %v2582 = vld [vmem:[#allocation13 + $0x478] sm:$0xff]
    %v2583 = vld [vmem:[#allocation13 + $0x480] sm:$0xff]
    %v2584 = vld [vmem:[#allocation13 + $0x488] sm:$0xff]
    %v2585 = vld [vmem:[#allocation13 + $0x490] sm:$0xff]
    %v2586 = vld [vmem:[#allocation13 + $0x498] sm:$0xff]
    %v2587 = vld [vmem:[#allocation13 + $0x4a0] sm:$0xff]
    %v2588 = vld [vmem:[#allocation13 + $0x4a8] sm:$0xff]
    %v2589 = vld [vmem:[#allocation13 + $0x4b0] sm:$0xff]
    %v2590 = vld [vmem:[#allocation13 + $0x4b8] sm:$0xff]
    %v2591 = vld [vmem:[#allocation13 + $0x4c0] sm:$0xff]
    %v2592 = vld [vmem:[#allocation13 + $0x4c8] sm:$0xff]
    %v2593 = vld [vmem:[#allocation13 + $0x4d0] sm:$0xff]
    %v2594 = vld [vmem:[#allocation13 + $0x4d8] sm:$0xff]
    %v2595 = vld [vmem:[#allocation13 + $0x4e0] sm:$0xff]
    %v2596 = vld [vmem:[#allocation13 + $0x4e8] sm:$0xff]
    %v2597 = vld [vmem:[#allocation13 + $0x4f0] sm:$0xff]
    %v2598 = vld [vmem:[#allocation13 + $0x4f8] sm:$0xff]
    %v2599 = vld [vmem:[#allocation13 + $0x500] sm:$0xff]
    %v2600 = vld [vmem:[#allocation13 + $0x508] sm:$0xff]
    %v2601 = vld [vmem:[#allocation13 + $0x510] sm:$0xff]
    %v2602 = vld [vmem:[#allocation13 + $0x518] sm:$0xff]
    %v2603 = vld [vmem:[#allocation13 + $0x520] sm:$0xff]
    %v2604 = vld [vmem:[#allocation13 + $0x528] sm:$0xff]
    %v2605 = vld [vmem:[#allocation13 + $0x530] sm:$0xff]
    %v2606 = vld [vmem:[#allocation13 + $0x538] sm:$0xff]
    %v2607 = vld [vmem:[#allocation13 + $0x540] sm:$0xff]
    %v2608 = vld [vmem:[#allocation13 + $0x548] sm:$0xff]
    %v2609 = vld [vmem:[#allocation13 + $0x550] sm:$0xff]
    %v2610 = vld [vmem:[#allocation13 + $0x558] sm:$0xff]
    %v2611 = vld [vmem:[#allocation13 + $0x560] sm:$0xff]
    %v2612 = vld [vmem:[#allocation13 + $0x568] sm:$0xff]
    %v2613 = vld [vmem:[#allocation13 + $0x570] sm:$0xff]
    %v2614 = vld [vmem:[#allocation13 + $0x578] sm:$0xff]
    %v2615 = vld [vmem:[#allocation13 + $0x580] sm:$0xff]
    %v2616 = vld [vmem:[#allocation13 + $0x588] sm:$0xff]
    %v2617 = vld [vmem:[#allocation13 + $0x590] sm:$0xff]
    %v2618 = vld [vmem:[#allocation13 + $0x598] sm:$0xff]
    %v2619 = vld [vmem:[#allocation13 + $0x5a0] sm:$0xff]
    %v2620 = vld [vmem:[#allocation13 + $0x5a8] sm:$0xff]
    %v2621 = vld [vmem:[#allocation13 + $0x5b0] sm:$0xff]
    %v2622 = vld [vmem:[#allocation13 + $0x5b8] sm:$0xff]
    %v2623 = vld [vmem:[#allocation13 + $0x5c0] sm:$0xff]
    %v2624 = vld [vmem:[#allocation13 + $0x5c8] sm:$0xff]
    %v2625 = vld [vmem:[#allocation13 + $0x5d0] sm:$0xff]
    %v2626 = vld [vmem:[#allocation13 + $0x5d8] sm:$0xff]
    %v2627 = vld [vmem:[#allocation13 + $0x5e0] sm:$0xff]
    %v2628 = vld [vmem:[#allocation13 + $0x5e8] sm:$0xff]
    %v2629 = vld [vmem:[#allocation13 + $0x5f0] sm:$0xff]
    %v2630 = vld [vmem:[#allocation13 + $0x5f8] sm:$0xff]
    %v2631 = vld [vmem:[#allocation13 + $0x600] sm:$0xff]
    %v2632 = vld [vmem:[#allocation13 + $0x608] sm:$0xff]
    %v2633 = vld [vmem:[#allocation13 + $0x610] sm:$0xff]
    %v2634 = vld [vmem:[#allocation13 + $0x618] sm:$0xff]
    %v2635 = vld [vmem:[#allocation13 + $0x620] sm:$0xff]
    %v2636 = vld [vmem:[#allocation13 + $0x628] sm:$0xff]
    %v2637 = vld [vmem:[#allocation13 + $0x630] sm:$0xff]
    %v2638 = vld [vmem:[#allocation13 + $0x638] sm:$0xff]
    %v2639 = vld [vmem:[#allocation13 + $0x640] sm:$0xff]
    %v2640 = vld [vmem:[#allocation13 + $0x648] sm:$0xff]
    %v2641 = vld [vmem:[#allocation13 + $0x650] sm:$0xff]
    %v2642 = vld [vmem:[#allocation13 + $0x658] sm:$0xff]
    %v2643 = vld [vmem:[#allocation13 + $0x660] sm:$0xff]
    %v2644 = vld [vmem:[#allocation13 + $0x668] sm:$0xff]
    %v2645 = vld [vmem:[#allocation13 + $0x670] sm:$0xff]
    %v2646 = vld [vmem:[#allocation13 + $0x678] sm:$0xff]
    %v2647 = vld [vmem:[#allocation13 + $0x680] sm:$0xff]
    %v2648 = vld [vmem:[#allocation13 + $0x688] sm:$0xff]
    %v2649 = vld [vmem:[#allocation13 + $0x690] sm:$0xff]
    %v2650 = vld [vmem:[#allocation13 + $0x698] sm:$0xff]
    %v2651 = vld [vmem:[#allocation13 + $0x6a0] sm:$0xff]
    %v2652 = vld [vmem:[#allocation13 + $0x6a8] sm:$0xff]
    %v2653 = vld [vmem:[#allocation13 + $0x6b0] sm:$0xff]
    %v2654 = vld [vmem:[#allocation13 + $0x6b8] sm:$0xff]
    %v2655 = vld [vmem:[#allocation13 + $0x6c0] sm:$0xff]
    %v2656 = vld [vmem:[#allocation13 + $0x6c8] sm:$0xff]
    %v2657 = vld [vmem:[#allocation13 + $0x6d0] sm:$0xff]
    %v2658 = vld [vmem:[#allocation13 + $0x6d8] sm:$0xff]
    %v2659 = vld [vmem:[#allocation13 + $0x6e0] sm:$0xff]
    %v2660 = vld [vmem:[#allocation13 + $0x6e8] sm:$0xff]
    %v2661 = vld [vmem:[#allocation13 + $0x6f0] sm:$0xff]
    %v2662 = vld [vmem:[#allocation13 + $0x6f8] sm:$0xff]
    %v2663 = vld [vmem:[#allocation13 + $0x700] sm:$0xff]
    %v2664 = vld [vmem:[#allocation13 + $0x708] sm:$0xff]
    %v2665 = vld [vmem:[#allocation13 + $0x710] sm:$0xff]
    %v2666 = vld [vmem:[#allocation13 + $0x718] sm:$0xff]
    %v2667 = vld [vmem:[#allocation13 + $0x720] sm:$0xff]
    %v2668 = vld [vmem:[#allocation13 + $0x728] sm:$0xff]
    %v2669 = vld [vmem:[#allocation13 + $0x730] sm:$0xff]
    %v2670 = vld [vmem:[#allocation13 + $0x738] sm:$0xff]
    %v2671 = vld [vmem:[#allocation13 + $0x740] sm:$0xff]
    %v2672 = vld [vmem:[#allocation13 + $0x748] sm:$0xff]
    %v2673 = vld [vmem:[#allocation13 + $0x750] sm:$0xff]
    %v2674 = vld [vmem:[#allocation13 + $0x758] sm:$0xff]
    %v2675 = vld [vmem:[#allocation13 + $0x760] sm:$0xff]
    %v2676 = vld [vmem:[#allocation13 + $0x768] sm:$0xff]
    %v2677 = vld [vmem:[#allocation13 + $0x770] sm:$0xff]
    %v2678 = vld [vmem:[#allocation13 + $0x778] sm:$0xff]
    %v2679 = vld [vmem:[#allocation13 + $0x780] sm:$0xff]
    %v2680 = vld [vmem:[#allocation13 + $0x788] sm:$0xff]
    %v2681 = vld [vmem:[#allocation13 + $0x790] sm:$0xff]
    %v2682 = vld [vmem:[#allocation13 + $0x798] sm:$0xff]
    %v2683 = vld [vmem:[#allocation13 + $0x7a0] sm:$0xff]
    %v2684 = vld [vmem:[#allocation13 + $0x7a8] sm:$0xff]
    %v2685 = vld [vmem:[#allocation13 + $0x7b0] sm:$0xff]
    %v2686 = vld [vmem:[#allocation13 + $0x7b8] sm:$0xff]
    %v2687 = vld [vmem:[#allocation13 + $0x7c0] sm:$0xff]
    %v2688 = vld [vmem:[#allocation13 + $0x7c8] sm:$0xff]
    %v2689 = vld [vmem:[#allocation13 + $0x7d0] sm:$0xff]
    %v2690 = vld [vmem:[#allocation13 + $0x7d8] sm:$0xff]
    %v2691 = vld [vmem:[#allocation13 + $0x7e0] sm:$0xff]
    %v2692 = vld [vmem:[#allocation13 + $0x7e8] sm:$0xff]
    %v2693 = vld [vmem:[#allocation13 + $0x7f0] sm:$0xff]
    %v2694 = vld [vmem:[#allocation13 + $0x7f8] sm:$0xff]
    %v2695 = vld [vmem:[#allocation13 + $0x800] sm:$0xff]
    %v2696 = vld [vmem:[#allocation13 + $0x808] sm:$0xff]
    %v2697 = vld [vmem:[#allocation13 + $0x810] sm:$0xff]
    %v2698 = vld [vmem:[#allocation13 + $0x818] sm:$0xff]
    %v2699 = vld [vmem:[#allocation13 + $0x820] sm:$0xff]
    %v2700 = vld [vmem:[#allocation13 + $0x828] sm:$0xff]
    %v2701 = vld [vmem:[#allocation13 + $0x830] sm:$0xff]
    %v2702 = vld [vmem:[#allocation13 + $0x838] sm:$0xff]
    %v2703 = vld [vmem:[#allocation13 + $0x840] sm:$0xff]
    %v2704 = vld [vmem:[#allocation13 + $0x848] sm:$0xff]
    %v2705 = vld [vmem:[#allocation13 + $0x850] sm:$0xff]
    %v2706 = vld [vmem:[#allocation13 + $0x858] sm:$0xff]
    %v2707 = vld [vmem:[#allocation13 + $0x860] sm:$0xff]
    %v2708 = vld [vmem:[#allocation13 + $0x868] sm:$0xff]
    %v2709 = vld [vmem:[#allocation13 + $0x870] sm:$0xff]
    %v2710 = vld [vmem:[#allocation13 + $0x878] sm:$0xff]
    %v2711 = vld [vmem:[#allocation13 + $0x880] sm:$0xff]
    %v2712 = vld [vmem:[#allocation13 + $0x888] sm:$0xff]
    %v2713 = vld [vmem:[#allocation13 + $0x890] sm:$0xff]
    %v2714 = vld [vmem:[#allocation13 + $0x898] sm:$0xff]
    %v2715 = vld [vmem:[#allocation13 + $0x8a0] sm:$0xff]
    %v2716 = vld [vmem:[#allocation13 + $0x8a8] sm:$0xff]
    %v2717 = vld [vmem:[#allocation13 + $0x8b0] sm:$0xff]
    %v2718 = vld [vmem:[#allocation13 + $0x8b8] sm:$0xff]
    %v2719 = vld [vmem:[#allocation13 + $0x8c0] sm:$0xff]
    %v2720 = vld [vmem:[#allocation13 + $0x8c8] sm:$0xff]
    %v2721 = vld [vmem:[#allocation13 + $0x8d0] sm:$0xff]
    %v2722 = vld [vmem:[#allocation13 + $0x8d8] sm:$0xff]
    %v2723 = vld [vmem:[#allocation13 + $0x8e0] sm:$0xff]
    %v2724 = vld [vmem:[#allocation13 + $0x8e8] sm:$0xff]
    %v2725 = vld [vmem:[#allocation13 + $0x8f0] sm:$0xff]
    %v2726 = vld [vmem:[#allocation13 + $0x8f8] sm:$0xff]
    %v2727 = vld [vmem:[#allocation13 + $0x900] sm:$0xff]
    %v2728 = vld [vmem:[#allocation13 + $0x908] sm:$0xff]
    %v2729 = vld [vmem:[#allocation13 + $0x910] sm:$0xff]
    %v2730 = vld [vmem:[#allocation13 + $0x918] sm:$0xff]
    %v2731 = vld [vmem:[#allocation13 + $0x920] sm:$0xff]
    %v2732 = vld [vmem:[#allocation13 + $0x928] sm:$0xff]
    %v2733 = vld [vmem:[#allocation13 + $0x930] sm:$0xff]
    %v2734 = vld [vmem:[#allocation13 + $0x938] sm:$0xff]
    %v2735 = vld [vmem:[#allocation13 + $0x940] sm:$0xff]
    %v2736 = vld [vmem:[#allocation13 + $0x948] sm:$0xff]
    %v2737 = vld [vmem:[#allocation13 + $0x950] sm:$0xff]
    %v2738 = vld [vmem:[#allocation13 + $0x958] sm:$0xff]
    %v2739 = vld [vmem:[#allocation13 + $0x960] sm:$0xff]
    %v2740 = vld [vmem:[#allocation13 + $0x968] sm:$0xff]
    %v2741 = vld [vmem:[#allocation13 + $0x970] sm:$0xff]
    %v2742 = vld [vmem:[#allocation13 + $0x978] sm:$0xff]
    %v2743 = vld [vmem:[#allocation13 + $0x980] sm:$0xff]
    %v2744 = vld [vmem:[#allocation13 + $0x988] sm:$0xff]
    %v2745 = vld [vmem:[#allocation13 + $0x990] sm:$0xff]
    %v2746 = vld [vmem:[#allocation13 + $0x998] sm:$0xff]
    %v2747 = vld [vmem:[#allocation13 + $0x9a0] sm:$0xff]
    %v2748 = vld [vmem:[#allocation13 + $0x9a8] sm:$0xff]
    %v2749 = vld [vmem:[#allocation13 + $0x9b0] sm:$0xff]
    %v2750 = vld [vmem:[#allocation13 + $0x9b8] sm:$0xff]
    %v2751 = vld [vmem:[#allocation13 + $0x9c0] sm:$0xff]
    %v2752 = vld [vmem:[#allocation13 + $0x9c8] sm:$0xff]
    %v2753 = vld [vmem:[#allocation13 + $0x9d0] sm:$0xff]
    %v2754 = vld [vmem:[#allocation13 + $0x9d8] sm:$0xff]
    %v2755 = vld [vmem:[#allocation13 + $0x9e0] sm:$0xff]
    %v2756 = vld [vmem:[#allocation13 + $0x9e8] sm:$0xff]
    %v2757 = vld [vmem:[#allocation13 + $0x9f0] sm:$0xff]
    %v2758 = vld [vmem:[#allocation13 + $0x9f8] sm:$0xff]
    %v2759 = vld [vmem:[#allocation13 + $0xa00] sm:$0xff]
    %v2760 = vld [vmem:[#allocation13 + $0xa08] sm:$0xff]
    %v2761 = vld [vmem:[#allocation13 + $0xa10] sm:$0xff]
    %v2762 = vld [vmem:[#allocation13 + $0xa18] sm:$0xff]
    %v2763 = vld [vmem:[#allocation13 + $0xa20] sm:$0xff]
    %v2764 = vld [vmem:[#allocation13 + $0xa28] sm:$0xff]
    %v2765 = vld [vmem:[#allocation13 + $0xa30] sm:$0xff]
    %v2766 = vld [vmem:[#allocation13 + $0xa38] sm:$0xff]
    %v2767 = vld [vmem:[#allocation13 + $0xa40] sm:$0xff]
    %v2768 = vld [vmem:[#allocation13 + $0xa48] sm:$0xff]
    %v2769 = vld [vmem:[#allocation13 + $0xa50] sm:$0xff]
    %v2770 = vld [vmem:[#allocation13 + $0xa58] sm:$0xff]
    %v2771 = vld [vmem:[#allocation13 + $0xa60] sm:$0xff]
    %v2772 = vld [vmem:[#allocation13 + $0xa68] sm:$0xff]
    %v2773 = vld [vmem:[#allocation13 + $0xa70] sm:$0xff]
    %v2774 = vld [vmem:[#allocation13 + $0xa78] sm:$0xff]
    %v2775 = vld [vmem:[#allocation13 + $0xa80] sm:$0xff]
    %v2776 = vld [vmem:[#allocation13 + $0xa88] sm:$0xff]
    %v2777 = vld [vmem:[#allocation13 + $0xa90] sm:$0xff]
    %v2778 = vld [vmem:[#allocation13 + $0xa98] sm:$0xff]
    %v2779 = vld [vmem:[#allocation13 + $0xaa0] sm:$0xff]
    %v2780 = vld [vmem:[#allocation13 + $0xaa8] sm:$0xff]
    %v2781 = vld [vmem:[#allocation13 + $0xab0] sm:$0xff]
    %v2782 = vld [vmem:[#allocation13 + $0xab8] sm:$0xff]
    %v2783 = vld [vmem:[#allocation13 + $0xac0] sm:$0xff]
    %v2784 = vld [vmem:[#allocation13 + $0xac8] sm:$0xff]
    %v2785 = vld [vmem:[#allocation13 + $0xad0] sm:$0xff]
    %v2786 = vld [vmem:[#allocation13 + $0xad8] sm:$0xff]
    %v2787 = vld [vmem:[#allocation13 + $0xae0] sm:$0xff]
    %v2788 = vld [vmem:[#allocation13 + $0xae8] sm:$0xff]
    %v2789 = vld [vmem:[#allocation13 + $0xaf0] sm:$0xff]
    %v2790 = vld [vmem:[#allocation13 + $0xaf8] sm:$0xff]
    %v2791 = vld [vmem:[#allocation13 + $0xb00] sm:$0xff]
    %v2792 = vld [vmem:[#allocation13 + $0xb08] sm:$0xff]
    %v2793 = vld [vmem:[#allocation13 + $0xb10] sm:$0xff]
    %v2794 = vld [vmem:[#allocation13 + $0xb18] sm:$0xff]
    %v2795 = vld [vmem:[#allocation13 + $0xb20] sm:$0xff]
    %v2796 = vld [vmem:[#allocation13 + $0xb28] sm:$0xff]
    %v2797 = vld [vmem:[#allocation13 + $0xb30] sm:$0xff]
    %v2798 = vld [vmem:[#allocation13 + $0xb38] sm:$0xff]
    %v2799 = vld [vmem:[#allocation13 + $0xb40] sm:$0xff]
    %v2800 = vld [vmem:[#allocation13 + $0xb48] sm:$0xff]
    %v2801 = vld [vmem:[#allocation13 + $0xb50] sm:$0xff]
    %v2802 = vld [vmem:[#allocation13 + $0xb58] sm:$0xff]
    %v2803 = vld [vmem:[#allocation13 + $0xb60] sm:$0xff]
    %v2804 = vld [vmem:[#allocation13 + $0xb68] sm:$0xff]
    %v2805 = vld [vmem:[#allocation13 + $0xb70] sm:$0xff]
    %v2806 = vld [vmem:[#allocation13 + $0xb78] sm:$0xff]
    %v2807 = vld [vmem:[#allocation13 + $0xb80] sm:$0xff]
    %v2808 = vld [vmem:[#allocation13 + $0xb88] sm:$0xff]
    %v2809 = vld [vmem:[#allocation13 + $0xb90] sm:$0xff]
    %v2810 = vld [vmem:[#allocation13 + $0xb98] sm:$0xff]
    %v2811 = vld [vmem:[#allocation13 + $0xba0] sm:$0xff]
    %v2812 = vld [vmem:[#allocation13 + $0xba8] sm:$0xff]
    %v2813 = vld [vmem:[#allocation13 + $0xbb0] sm:$0xff]
    %v2814 = vld [vmem:[#allocation13 + $0xbb8] sm:$0xff]
    %v2815 = vld [vmem:[#allocation13 + $0xbc0] sm:$0xff]
    %v2816 = vld [vmem:[#allocation13 + $0xbc8] sm:$0xff]
    %v2817 = vld [vmem:[#allocation13 + $0xbd0] sm:$0xff]
    %v2818 = vld [vmem:[#allocation13 + $0xbd8] sm:$0xff]
    %v2819 = vld [vmem:[#allocation13 + $0xbe0] sm:$0xff]
    %v2820 = vld [vmem:[#allocation13 + $0xbe8] sm:$0xff]
    %v2821 = vld [vmem:[#allocation13 + $0xbf0] sm:$0xff]
    %v2822 = vld [vmem:[#allocation13 + $0xbf8] sm:$0xff]
    %v2823 = vld [vmem:[#allocation13 + $0xc00] sm:$0xff]
    %v2824 = vld [vmem:[#allocation13 + $0xc08] sm:$0xff]
    %v2825 = vld [vmem:[#allocation13 + $0xc10] sm:$0xff]
    %v2826 = vld [vmem:[#allocation13 + $0xc18] sm:$0xff]
    %v2827 = vld [vmem:[#allocation13 + $0xc20] sm:$0xff]
    %v2828 = vld [vmem:[#allocation13 + $0xc28] sm:$0xff]
    %v2829 = vld [vmem:[#allocation13 + $0xc30] sm:$0xff]
    %v2830 = vld [vmem:[#allocation13 + $0xc38] sm:$0xff]
    %v2831 = vld [vmem:[#allocation13 + $0xc40] sm:$0xff]
    %v2832 = vld [vmem:[#allocation13 + $0xc48] sm:$0xff]
    %v2833 = vld [vmem:[#allocation13 + $0xc50] sm:$0xff]
    %v2834 = vld [vmem:[#allocation13 + $0xc58] sm:$0xff]
    %v2835 = vld [vmem:[#allocation13 + $0xc60] sm:$0xff]
    %v2836 = vld [vmem:[#allocation13 + $0xc68] sm:$0xff]
    %v2837 = vld [vmem:[#allocation13 + $0xc70] sm:$0xff]
    %v2838 = vld [vmem:[#allocation13 + $0xc78] sm:$0xff]
    %v2839 = vld [vmem:[#allocation13 + $0xc80] sm:$0xff]
    %v2840 = vld [vmem:[#allocation13 + $0xc88] sm:$0xff]
    %v2841 = vld [vmem:[#allocation13 + $0xc90] sm:$0xff]
    %v2842 = vld [vmem:[#allocation13 + $0xc98] sm:$0xff]
    %v2843 = vld [vmem:[#allocation13 + $0xca0] sm:$0xff]
    %v2844 = vld [vmem:[#allocation13 + $0xca8] sm:$0xff]
    %v2845 = vld [vmem:[#allocation13 + $0xcb0] sm:$0xff]
    %v2846 = vld [vmem:[#allocation13 + $0xcb8] sm:$0xff]
    %v2847 = vld [vmem:[#allocation13 + $0xcc0] sm:$0xff]
    %v2848 = vld [vmem:[#allocation13 + $0xcc8] sm:$0xff]
    %v2849 = vld [vmem:[#allocation13 + $0xcd0] sm:$0xff]
    %v2850 = vld [vmem:[#allocation13 + $0xcd8] sm:$0xff]
    %v2851 = vld [vmem:[#allocation13 + $0xce0] sm:$0xff]
    %v2852 = vld [vmem:[#allocation13 + $0xce8] sm:$0xff]
    %v2853 = vld [vmem:[#allocation13 + $0xcf0] sm:$0xff]
    %v2854 = vld [vmem:[#allocation13 + $0xcf8] sm:$0xff]
    %v2855 = vld [vmem:[#allocation13 + $0xd00] sm:$0xff]
    %v2856 = vld [vmem:[#allocation13 + $0xd08] sm:$0xff]
    %v2857 = vld [vmem:[#allocation13 + $0xd10] sm:$0xff]
    %v2858 = vld [vmem:[#allocation13 + $0xd18] sm:$0xff]
    %v2859 = vld [vmem:[#allocation13 + $0xd20] sm:$0xff]
    %v2860 = vld [vmem:[#allocation13 + $0xd28] sm:$0xff]
    %v2861 = vld [vmem:[#allocation13 + $0xd30] sm:$0xff]
    %v2862 = vld [vmem:[#allocation13 + $0xd38] sm:$0xff]
    %v2863 = vld [vmem:[#allocation13 + $0xd40] sm:$0xff]
    %v2864 = vld [vmem:[#allocation13 + $0xd48] sm:$0xff]
    %v2865 = vld [vmem:[#allocation13 + $0xd50] sm:$0xff]
    %v2866 = vld [vmem:[#allocation13 + $0xd58] sm:$0xff]
    %v2867 = vld [vmem:[#allocation13 + $0xd60] sm:$0xff]
    %v2868 = vld [vmem:[#allocation13 + $0xd68] sm:$0xff]
    %v2869 = vld [vmem:[#allocation13 + $0xd70] sm:$0xff]
    %v2870 = vld [vmem:[#allocation13 + $0xd78] sm:$0xff]
    %v2871 = vld [vmem:[#allocation13 + $0xd80] sm:$0xff]
    %v2872 = vld [vmem:[#allocation13 + $0xd88] sm:$0xff]
    %v2873 = vld [vmem:[#allocation13 + $0xd90] sm:$0xff]
    %v2874 = vld [vmem:[#allocation13 + $0xd98] sm:$0xff]
    %v2875 = vld [vmem:[#allocation13 + $0xda0] sm:$0xff]
    %v2876 = vld [vmem:[#allocation13 + $0xda8] sm:$0xff]
    %v2877 = vld [vmem:[#allocation13 + $0xdb0] sm:$0xff]
    %v2878 = vld [vmem:[#allocation13 + $0xdb8] sm:$0xff]
    %v2879 = vld [vmem:[#allocation13 + $0xdc0] sm:$0xff]
    %v2880 = vld [vmem:[#allocation13 + $0xdc8] sm:$0xff]
    %v2881 = vld [vmem:[#allocation13 + $0xdd0] sm:$0xff]
    %v2882 = vld [vmem:[#allocation13 + $0xdd8] sm:$0xff]
    %v2883 = vld [vmem:[#allocation13 + $0xde0] sm:$0xff]
    %v2884 = vld [vmem:[#allocation13 + $0xde8] sm:$0xff]
    %v2885 = vld [vmem:[#allocation13 + $0xdf0] sm:$0xff]
    %v2886 = vld [vmem:[#allocation13 + $0xdf8] sm:$0xff]
    %v2887 = vld [vmem:[#allocation13 + $0xe00] sm:$0xff]
    %v2888 = vld [vmem:[#allocation13 + $0xe08] sm:$0xff]
    %v2889 = vld [vmem:[#allocation13 + $0xe10] sm:$0xff]
    %v2890 = vld [vmem:[#allocation13 + $0xe18] sm:$0xff]
    %v2891 = vld [vmem:[#allocation13 + $0xe20] sm:$0xff]
    %v2892 = vld [vmem:[#allocation13 + $0xe28] sm:$0xff]
    %v2893 = vld [vmem:[#allocation13 + $0xe30] sm:$0xff]
    %v2894 = vld [vmem:[#allocation13 + $0xe38] sm:$0xff]
    %v2895 = vld [vmem:[#allocation13 + $0xe40] sm:$0xff]
    %v2896 = vld [vmem:[#allocation13 + $0xe48] sm:$0xff]
    %v2897 = vld [vmem:[#allocation13 + $0xe50] sm:$0xff]
    %v2898 = vld [vmem:[#allocation13 + $0xe58] sm:$0xff]
    %v2899 = vld [vmem:[#allocation13 + $0xe60] sm:$0xff]
    %v2900 = vld [vmem:[#allocation13 + $0xe68] sm:$0xff]
    %v2901 = vld [vmem:[#allocation13 + $0xe70] sm:$0xff]
    %v2902 = vld [vmem:[#allocation13 + $0xe78] sm:$0xff]
    %v2903 = vld [vmem:[#allocation13 + $0xe80] sm:$0xff]
    %v2904 = vld [vmem:[#allocation13 + $0xe88] sm:$0xff]
    %v2905 = vld [vmem:[#allocation13 + $0xe90] sm:$0xff]
    %v2906 = vld [vmem:[#allocation13 + $0xe98] sm:$0xff]
    %v2907 = vld [vmem:[#allocation13 + $0xea0] sm:$0xff]
    %v2908 = vld [vmem:[#allocation13 + $0xea8] sm:$0xff]
    %v2909 = vld [vmem:[#allocation13 + $0xeb0] sm:$0xff]
    %v2910 = vld [vmem:[#allocation13 + $0xeb8] sm:$0xff]
    %v2911 = vld [vmem:[#allocation13 + $0xec0] sm:$0xff]
    %v2912 = vld [vmem:[#allocation13 + $0xec8] sm:$0xff]
    %v2913 = vld [vmem:[#allocation13 + $0xed0] sm:$0xff]
    %v2914 = vld [vmem:[#allocation13 + $0xed8] sm:$0xff]
    %v2915 = vld [vmem:[#allocation13 + $0xee0] sm:$0xff]
    %v2916 = vld [vmem:[#allocation13 + $0xee8] sm:$0xff]
    %v2917 = vld [vmem:[#allocation13 + $0xef0] sm:$0xff]
    %v2918 = vld [vmem:[#allocation13 + $0xef8] sm:$0xff]
    %v2919 = vld [vmem:[#allocation13 + $0xf00] sm:$0xff]
    %v2920 = vld [vmem:[#allocation13 + $0xf08] sm:$0xff]
    %v2921 = vld [vmem:[#allocation13 + $0xf10] sm:$0xff]
    %v2922 = vld [vmem:[#allocation13 + $0xf18] sm:$0xff]
    %v2923 = vld [vmem:[#allocation13 + $0xf20] sm:$0xff]
    %v2924 = vld [vmem:[#allocation13 + $0xf28] sm:$0xff]
    %v2925 = vld [vmem:[#allocation13 + $0xf30] sm:$0xff]
    %v2926 = vld [vmem:[#allocation13 + $0xf38] sm:$0xff]
    %v2927 = vld [vmem:[#allocation13 + $0xf40] sm:$0xff]
    %v2928 = vld [vmem:[#allocation13 + $0xf48] sm:$0xff]
    %v2929 = vld [vmem:[#allocation13 + $0xf50] sm:$0xff]
    %v2930 = vld [vmem:[#allocation13 + $0xf58] sm:$0xff]
    %v2931 = vld [vmem:[#allocation13 + $0xf60] sm:$0xff]
    %v2932 = vld [vmem:[#allocation13 + $0xf68] sm:$0xff]
    %v2933 = vld [vmem:[#allocation13 + $0xf70] sm:$0xff]
    %v2934 = vld [vmem:[#allocation13 + $0xf78] sm:$0xff]
    %v2935 = vld [vmem:[#allocation13 + $0xf80] sm:$0xff]
    %v2936 = vld [vmem:[#allocation13 + $0xf88] sm:$0xff]
    %v2937 = vld [vmem:[#allocation13 + $0xf90] sm:$0xff]
    %v2938 = vld [vmem:[#allocation13 + $0xf98] sm:$0xff]
    %v2939 = vld [vmem:[#allocation13 + $0xfa0] sm:$0xff]
    %v2940 = vld [vmem:[#allocation13 + $0xfa8] sm:$0xff]
    %v2941 = vld [vmem:[#allocation13 + $0xfb0] sm:$0xff]
    %v2942 = vld [vmem:[#allocation13 + $0xfb8] sm:$0xff]
    %v2943 = vld [vmem:[#allocation13 + $0xfc0] sm:$0xff]
    %v2944 = vld [vmem:[#allocation13 + $0xfc8] sm:$0xff]
    %v2945 = vld [vmem:[#allocation13 + $0xfd0] sm:$0xff]
    %v2946 = vld [vmem:[#allocation13 + $0xfd8] sm:$0xff]
    %v2947 = vld [vmem:[#allocation13 + $0xfe0] sm:$0xff]
    %v2948 = vld [vmem:[#allocation13 + $0xfe8] sm:$0xff]
    %v2949 = vld [vmem:[#allocation13 + $0xff0] sm:$0xff]
    %v2950 = vld [vmem:[#allocation13 + $0xff8] sm:$0xff]
    %v2951 = vld [vmem:[#allocation14] sm:$0xff]
    %v2953 = vlaneseq
    %v2954 = vshrl.u32 %v2953, 7
    %v2955 = vsub.s32 0, %v2954
    %v2956 = vrot.slane %v2951, %v2955
    %v2957 = vlaneseq
    %v2958 = vshrl.u32 %v2957, 7
    %v2959 = vsub.s32 1, %v2958
    %v2960 = vrot.slane %v2951, %v2959
    %v2961 = vlaneseq
    %v2962 = vshrl.u32 %v2961, 7
    %v2963 = vsub.s32 2, %v2962
    %v2964 = vrot.slane %v2951, %v2963
    %v2965 = vlaneseq
    %v2966 = vshrl.u32 %v2965, 7
    %v2967 = vsub.s32 3, %v2966
    %v2968 = vrot.slane %v2951, %v2967
    %v2969 = vlaneseq
    %v2970 = vshrl.u32 %v2969, 7
    %v2971 = vsub.s32 4, %v2970
    %v2972 = vrot.slane %v2951, %v2971
    %v2973 = vlaneseq
    %v2974 = vshrl.u32 %v2973, 7
    %v2975 = vsub.s32 5, %v2974
    %v2976 = vrot.slane %v2951, %v2975
    %v2977 = vlaneseq
    %v2978 = vshrl.u32 %v2977, 7
    %v2979 = vsub.s32 6, %v2978
    %v2980 = vrot.slane %v2951, %v2979
    %v2981 = vlaneseq
    %v2982 = vshrl.u32 %v2981, 7
    %v2983 = vsub.s32 7, %v2982
    %v2984 = vrot.slane %v2951, %v2983
    %v3505 = vunpack.c.l.b16 %v2439
    %v3506 = vunpack.c.h.b16 %v2439
    %v3507 = vunpack.c.l.b16 %v2440
    %v3508 = vunpack.c.h.b16 %v2440
    %v3509 = vunpack.c.l.b16 %v2441
    %v3510 = vunpack.c.h.b16 %v2441
    %v3511 = vunpack.c.l.b16 %v2442
    %v3512 = vunpack.c.h.b16 %v2442
    %v3513 = vunpack.c.l.b16 %v2443
    %v3514 = vunpack.c.h.b16 %v2443
    %v3515 = vunpack.c.l.b16 %v2444
    %v3516 = vunpack.c.h.b16 %v2444
    %v3517 = vunpack.c.l.b16 %v2445
    %v3518 = vunpack.c.h.b16 %v2445
    %v3519 = vunpack.c.l.b16 %v2446
    %v3520 = vunpack.c.h.b16 %v2446
    %v3521 = vunpack.c.l.b16 %v2447
    %v3522 = vunpack.c.h.b16 %v2447
    %v3523 = vunpack.c.l.b16 %v2448
    %v3524 = vunpack.c.h.b16 %v2448
    %v3525 = vunpack.c.l.b16 %v2449
    %v3526 = vunpack.c.h.b16 %v2449
    %v3527 = vunpack.c.l.b16 %v2450
    %v3528 = vunpack.c.h.b16 %v2450
    %v3529 = vunpack.c.l.b16 %v2451
    %v3530 = vunpack.c.h.b16 %v2451
    %v3531 = vunpack.c.l.b16 %v2452
    %v3532 = vunpack.c.h.b16 %v2452
    %v3533 = vunpack.c.l.b16 %v2453
    %v3534 = vunpack.c.h.b16 %v2453
    %v3535 = vunpack.c.l.b16 %v2454
    %v3536 = vunpack.c.h.b16 %v2454
    %v3537 = vunpack.c.l.b16 %v2455
    %v3538 = vunpack.c.h.b16 %v2455
    %v3539 = vunpack.c.l.b16 %v2456
    %v3540 = vunpack.c.h.b16 %v2456
    %v3541 = vunpack.c.l.b16 %v2457
    %v3542 = vunpack.c.h.b16 %v2457
    %v3543 = vunpack.c.l.b16 %v2458
    %v3544 = vunpack.c.h.b16 %v2458
    %v3545 = vunpack.c.l.b16 %v2459
    %v3546 = vunpack.c.h.b16 %v2459
    %v3547 = vunpack.c.l.b16 %v2460
    %v3548 = vunpack.c.h.b16 %v2460
    %v3549 = vunpack.c.l.b16 %v2461
    %v3550 = vunpack.c.h.b16 %v2461
    %v3551 = vunpack.c.l.b16 %v2462
    %v3552 = vunpack.c.h.b16 %v2462
    %v3553 = vunpack.c.l.b16 %v2463
    %v3554 = vunpack.c.h.b16 %v2463
    %v3555 = vunpack.c.l.b16 %v2464
    %v3556 = vunpack.c.h.b16 %v2464
    %v3557 = vunpack.c.l.b16 %v2465
    %v3558 = vunpack.c.h.b16 %v2465
    %v3559 = vunpack.c.l.b16 %v2466
    %v3560 = vunpack.c.h.b16 %v2466
    %v3561 = vunpack.c.l.b16 %v2467
    %v3562 = vunpack.c.h.b16 %v2467
    %v3563 = vunpack.c.l.b16 %v2468
    %v3564 = vunpack.c.h.b16 %v2468
    %v3565 = vunpack.c.l.b16 %v2469
    %v3566 = vunpack.c.h.b16 %v2469
    %v3567 = vunpack.c.l.b16 %v2470
    %v3568 = vunpack.c.h.b16 %v2470
    %v3569 = vunpack.c.l.b16 %v2471
    %v3570 = vunpack.c.h.b16 %v2471
    %v3571 = vunpack.c.l.b16 %v2472
    %v3572 = vunpack.c.h.b16 %v2472
    %v3573 = vunpack.c.l.b16 %v2473
    %v3574 = vunpack.c.h.b16 %v2473
    %v3575 = vunpack.c.l.b16 %v2474
    %v3576 = vunpack.c.h.b16 %v2474
    %v3577 = vunpack.c.l.b16 %v2475
    %v3578 = vunpack.c.h.b16 %v2475
    %v3579 = vunpack.c.l.b16 %v2476
    %v3580 = vunpack.c.h.b16 %v2476
    %v3581 = vunpack.c.l.b16 %v2477
    %v3582 = vunpack.c.h.b16 %v2477
    %v3583 = vunpack.c.l.b16 %v2478
    %v3584 = vunpack.c.h.b16 %v2478
    %v3585 = vunpack.c.l.b16 %v2479
    %v3586 = vunpack.c.h.b16 %v2479
    %v3587 = vunpack.c.l.b16 %v2480
    %v3588 = vunpack.c.h.b16 %v2480
    %v3589 = vunpack.c.l.b16 %v2481
    %v3590 = vunpack.c.h.b16 %v2481
    %v3591 = vunpack.c.l.b16 %v2482
    %v3592 = vunpack.c.h.b16 %v2482
    %v3593 = vunpack.c.l.b16 %v2483
    %v3594 = vunpack.c.h.b16 %v2483
    %v3595 = vunpack.c.l.b16 %v2484
    %v3596 = vunpack.c.h.b16 %v2484
    %v3597 = vunpack.c.l.b16 %v2485
    %v3598 = vunpack.c.h.b16 %v2485
    %v3599 = vunpack.c.l.b16 %v2486
    %v3600 = vunpack.c.h.b16 %v2486
    %v3601 = vunpack.c.l.b16 %v2487
    %v3602 = vunpack.c.h.b16 %v2487
    %v3603 = vunpack.c.l.b16 %v2488
    %v3604 = vunpack.c.h.b16 %v2488
    %v3605 = vunpack.c.l.b16 %v2489
    %v3606 = vunpack.c.h.b16 %v2489
    %v3607 = vunpack.c.l.b16 %v2490
    %v3608 = vunpack.c.h.b16 %v2490
    %v3609 = vunpack.c.l.b16 %v2491
    %v3610 = vunpack.c.h.b16 %v2491
    %v3611 = vunpack.c.l.b16 %v2492
    %v3612 = vunpack.c.h.b16 %v2492
    %v3613 = vunpack.c.l.b16 %v2493
    %v3614 = vunpack.c.h.b16 %v2493
    %v3615 = vunpack.c.l.b16 %v2494
    %v3616 = vunpack.c.h.b16 %v2494
    %v3617 = vunpack.c.l.b16 %v2495
    %v3618 = vunpack.c.h.b16 %v2495
    %v3619 = vunpack.c.l.b16 %v2496
    %v3620 = vunpack.c.h.b16 %v2496
    %v3621 = vunpack.c.l.b16 %v2497
    %v3622 = vunpack.c.h.b16 %v2497
    %v3623 = vunpack.c.l.b16 %v2498
    %v3624 = vunpack.c.h.b16 %v2498
    %v3625 = vunpack.c.l.b16 %v2499
    %v3626 = vunpack.c.h.b16 %v2499
    %v3627 = vunpack.c.l.b16 %v2500
    %v3628 = vunpack.c.h.b16 %v2500
    %v3629 = vunpack.c.l.b16 %v2501
    %v3630 = vunpack.c.h.b16 %v2501
    %v3631 = vunpack.c.l.b16 %v2502
    %v3632 = vunpack.c.h.b16 %v2502
    %v3633 = vunpack.c.l.b16 %v2503
    %v3634 = vunpack.c.h.b16 %v2503
    %v3635 = vunpack.c.l.b16 %v2504
    %v3636 = vunpack.c.h.b16 %v2504
    %v3637 = vunpack.c.l.b16 %v2505
    %v3638 = vunpack.c.h.b16 %v2505
    %v3639 = vunpack.c.l.b16 %v2506
    %v3640 = vunpack.c.h.b16 %v2506
    %v3641 = vunpack.c.l.b16 %v2507
    %v3642 = vunpack.c.h.b16 %v2507
    %v3643 = vunpack.c.l.b16 %v2508
    %v3644 = vunpack.c.h.b16 %v2508
    %v3645 = vunpack.c.l.b16 %v2509
    %v3646 = vunpack.c.h.b16 %v2509
    %v3647 = vunpack.c.l.b16 %v2510
    %v3648 = vunpack.c.h.b16 %v2510
    %v3649 = vunpack.c.l.b16 %v2511
    %v3650 = vunpack.c.h.b16 %v2511
    %v3651 = vunpack.c.l.b16 %v2512
    %v3652 = vunpack.c.h.b16 %v2512
    %v3653 = vunpack.c.l.b16 %v2513
    %v3654 = vunpack.c.h.b16 %v2513
    %v3655 = vunpack.c.l.b16 %v2514
    %v3656 = vunpack.c.h.b16 %v2514
    %v3657 = vunpack.c.l.b16 %v2515
    %v3658 = vunpack.c.h.b16 %v2515
    %v3659 = vunpack.c.l.b16 %v2516
    %v3660 = vunpack.c.h.b16 %v2516
    %v3661 = vunpack.c.l.b16 %v2517
    %v3662 = vunpack.c.h.b16 %v2517
    %v3663 = vunpack.c.l.b16 %v2518
    %v3664 = vunpack.c.h.b16 %v2518
    %v3665 = vunpack.c.l.b16 %v2519
    %v3666 = vunpack.c.h.b16 %v2519
    %v3667 = vunpack.c.l.b16 %v2520
    %v3668 = vunpack.c.h.b16 %v2520
    %v3669 = vunpack.c.l.b16 %v2521
    %v3670 = vunpack.c.h.b16 %v2521
    %v3671 = vunpack.c.l.b16 %v2522
    %v3672 = vunpack.c.h.b16 %v2522
    %v3673 = vunpack.c.l.b16 %v2523
    %v3674 = vunpack.c.h.b16 %v2523
    %v3675 = vunpack.c.l.b16 %v2524
    %v3676 = vunpack.c.h.b16 %v2524
    %v3677 = vunpack.c.l.b16 %v2525
    %v3678 = vunpack.c.h.b16 %v2525
    %v3679 = vunpack.c.l.b16 %v2526
    %v3680 = vunpack.c.h.b16 %v2526
    %v3681 = vunpack.c.l.b16 %v2527
    %v3682 = vunpack.c.h.b16 %v2527
    %v3683 = vunpack.c.l.b16 %v2528
    %v3684 = vunpack.c.h.b16 %v2528
    %v3685 = vunpack.c.l.b16 %v2529
    %v3686 = vunpack.c.h.b16 %v2529
    %v3687 = vunpack.c.l.b16 %v2530
    %v3688 = vunpack.c.h.b16 %v2530
    %v3689 = vunpack.c.l.b16 %v2531
    %v3690 = vunpack.c.h.b16 %v2531
    %v3691 = vunpack.c.l.b16 %v2532
    %v3692 = vunpack.c.h.b16 %v2532
    %v3693 = vunpack.c.l.b16 %v2533
    %v3694 = vunpack.c.h.b16 %v2533
    %v3695 = vunpack.c.l.b16 %v2534
    %v3696 = vunpack.c.h.b16 %v2534
    %v3697 = vunpack.c.l.b16 %v2535
    %v3698 = vunpack.c.h.b16 %v2535
    %v3699 = vunpack.c.l.b16 %v2536
    %v3700 = vunpack.c.h.b16 %v2536
    %v3701 = vunpack.c.l.b16 %v2537
    %v3702 = vunpack.c.h.b16 %v2537
    %v3703 = vunpack.c.l.b16 %v2538
    %v3704 = vunpack.c.h.b16 %v2538
    %v3705 = vunpack.c.l.b16 %v2539
    %v3706 = vunpack.c.h.b16 %v2539
    %v3707 = vunpack.c.l.b16 %v2540
    %v3708 = vunpack.c.h.b16 %v2540
    %v3709 = vunpack.c.l.b16 %v2541
    %v3710 = vunpack.c.h.b16 %v2541
    %v3711 = vunpack.c.l.b16 %v2542
    %v3712 = vunpack.c.h.b16 %v2542
    %v3713 = vunpack.c.l.b16 %v2543
    %v3714 = vunpack.c.h.b16 %v2543
    %v3715 = vunpack.c.l.b16 %v2544
    %v3716 = vunpack.c.h.b16 %v2544
    %v3717 = vunpack.c.l.b16 %v2545
    %v3718 = vunpack.c.h.b16 %v2545
    %v3719 = vunpack.c.l.b16 %v2546
    %v3720 = vunpack.c.h.b16 %v2546
    %v3721 = vunpack.c.l.b16 %v2547
    %v3722 = vunpack.c.h.b16 %v2547
    %v3723 = vunpack.c.l.b16 %v2548
    %v3724 = vunpack.c.h.b16 %v2548
    %v3725 = vunpack.c.l.b16 %v2549
    %v3726 = vunpack.c.h.b16 %v2549
    %v3727 = vunpack.c.l.b16 %v2550
    %v3728 = vunpack.c.h.b16 %v2550
    %v3729 = vunpack.c.l.b16 %v2551
    %v3730 = vunpack.c.h.b16 %v2551
    %v3731 = vunpack.c.l.b16 %v2552
    %v3732 = vunpack.c.h.b16 %v2552
    %v3733 = vunpack.c.l.b16 %v2553
    %v3734 = vunpack.c.h.b16 %v2553
    %v3735 = vunpack.c.l.b16 %v2554
    %v3736 = vunpack.c.h.b16 %v2554
    %v3737 = vunpack.c.l.b16 %v2555
    %v3738 = vunpack.c.h.b16 %v2555
    %v3739 = vunpack.c.l.b16 %v2556
    %v3740 = vunpack.c.h.b16 %v2556
    %v3741 = vunpack.c.l.b16 %v2557
    %v3742 = vunpack.c.h.b16 %v2557
    %v3743 = vunpack.c.l.b16 %v2558
    %v3744 = vunpack.c.h.b16 %v2558
    %v3745 = vunpack.c.l.b16 %v2559
    %v3746 = vunpack.c.h.b16 %v2559
    %v3747 = vunpack.c.l.b16 %v2560
    %v3748 = vunpack.c.h.b16 %v2560
    %v3749 = vunpack.c.l.b16 %v2561
    %v3750 = vunpack.c.h.b16 %v2561
    %v3751 = vunpack.c.l.b16 %v2562
    %v3752 = vunpack.c.h.b16 %v2562
    %v3753 = vunpack.c.l.b16 %v2563
    %v3754 = vunpack.c.h.b16 %v2563
    %v3755 = vunpack.c.l.b16 %v2564
    %v3756 = vunpack.c.h.b16 %v2564
    %v3757 = vunpack.c.l.b16 %v2565
    %v3758 = vunpack.c.h.b16 %v2565
    %v3759 = vunpack.c.l.b16 %v2566
    %v3760 = vunpack.c.h.b16 %v2566
    %v3761 = vunpack.c.l.b16 %v2567
    %v3762 = vunpack.c.h.b16 %v2567
    %v3763 = vunpack.c.l.b16 %v2568
    %v3764 = vunpack.c.h.b16 %v2568
    %v3765 = vunpack.c.l.b16 %v2569
    %v3766 = vunpack.c.h.b16 %v2569
    %v3767 = vunpack.c.l.b16 %v2570
    %v3768 = vunpack.c.h.b16 %v2570
    %v3769 = vunpack.c.l.b16 %v2571
    %v3770 = vunpack.c.h.b16 %v2571
    %v3771 = vunpack.c.l.b16 %v2572
    %v3772 = vunpack.c.h.b16 %v2572
    %v3773 = vunpack.c.l.b16 %v2573
    %v3774 = vunpack.c.h.b16 %v2573
    %v3775 = vunpack.c.l.b16 %v2574
    %v3776 = vunpack.c.h.b16 %v2574
    %v3777 = vunpack.c.l.b16 %v2575
    %v3778 = vunpack.c.h.b16 %v2575
    %v3779 = vunpack.c.l.b16 %v2576
    %v3780 = vunpack.c.h.b16 %v2576
    %v3781 = vunpack.c.l.b16 %v2577
    %v3782 = vunpack.c.h.b16 %v2577
    %v3783 = vunpack.c.l.b16 %v2578
    %v3784 = vunpack.c.h.b16 %v2578
    %v3785 = vunpack.c.l.b16 %v2579
    %v3786 = vunpack.c.h.b16 %v2579
    %v3787 = vunpack.c.l.b16 %v2580
    %v3788 = vunpack.c.h.b16 %v2580
    %v3789 = vunpack.c.l.b16 %v2581
    %v3790 = vunpack.c.h.b16 %v2581
    %v3791 = vunpack.c.l.b16 %v2582
    %v3792 = vunpack.c.h.b16 %v2582
    %v3793 = vunpack.c.l.b16 %v2583
    %v3794 = vunpack.c.h.b16 %v2583
    %v3795 = vunpack.c.l.b16 %v2584
    %v3796 = vunpack.c.h.b16 %v2584
    %v3797 = vunpack.c.l.b16 %v2585
    %v3798 = vunpack.c.h.b16 %v2585
    %v3799 = vunpack.c.l.b16 %v2586
    %v3800 = vunpack.c.h.b16 %v2586
    %v3801 = vunpack.c.l.b16 %v2587
    %v3802 = vunpack.c.h.b16 %v2587
    %v3803 = vunpack.c.l.b16 %v2588
    %v3804 = vunpack.c.h.b16 %v2588
    %v3805 = vunpack.c.l.b16 %v2589
    %v3806 = vunpack.c.h.b16 %v2589
    %v3807 = vunpack.c.l.b16 %v2590
    %v3808 = vunpack.c.h.b16 %v2590
    %v3809 = vunpack.c.l.b16 %v2591
    %v3810 = vunpack.c.h.b16 %v2591
    %v3811 = vunpack.c.l.b16 %v2592
    %v3812 = vunpack.c.h.b16 %v2592
    %v3813 = vunpack.c.l.b16 %v2593
    %v3814 = vunpack.c.h.b16 %v2593
    %v3815 = vunpack.c.l.b16 %v2594
    %v3816 = vunpack.c.h.b16 %v2594
    %v3817 = vunpack.c.l.b16 %v2595
    %v3818 = vunpack.c.h.b16 %v2595
    %v3819 = vunpack.c.l.b16 %v2596
    %v3820 = vunpack.c.h.b16 %v2596
    %v3821 = vunpack.c.l.b16 %v2597
    %v3822 = vunpack.c.h.b16 %v2597
    %v3823 = vunpack.c.l.b16 %v2598
    %v3824 = vunpack.c.h.b16 %v2598
    %v3825 = vunpack.c.l.b16 %v2599
    %v3826 = vunpack.c.h.b16 %v2599
    %v3827 = vunpack.c.l.b16 %v2600
    %v3828 = vunpack.c.h.b16 %v2600
    %v3829 = vunpack.c.l.b16 %v2601
    %v3830 = vunpack.c.h.b16 %v2601
    %v3831 = vunpack.c.l.b16 %v2602
    %v3832 = vunpack.c.h.b16 %v2602
    %v3833 = vunpack.c.l.b16 %v2603
    %v3834 = vunpack.c.h.b16 %v2603
    %v3835 = vunpack.c.l.b16 %v2604
    %v3836 = vunpack.c.h.b16 %v2604
    %v3837 = vunpack.c.l.b16 %v2605
    %v3838 = vunpack.c.h.b16 %v2605
    %v3839 = vunpack.c.l.b16 %v2606
    %v3840 = vunpack.c.h.b16 %v2606
    %v3841 = vunpack.c.l.b16 %v2607
    %v3842 = vunpack.c.h.b16 %v2607
    %v3843 = vunpack.c.l.b16 %v2608
    %v3844 = vunpack.c.h.b16 %v2608
    %v3845 = vunpack.c.l.b16 %v2609
    %v3846 = vunpack.c.h.b16 %v2609
    %v3847 = vunpack.c.l.b16 %v2610
    %v3848 = vunpack.c.h.b16 %v2610
    %v3849 = vunpack.c.l.b16 %v2611
    %v3850 = vunpack.c.h.b16 %v2611
    %v3851 = vunpack.c.l.b16 %v2612
    %v3852 = vunpack.c.h.b16 %v2612
    %v3853 = vunpack.c.l.b16 %v2613
    %v3854 = vunpack.c.h.b16 %v2613
    %v3855 = vunpack.c.l.b16 %v2614
    %v3856 = vunpack.c.h.b16 %v2614
    %v3857 = vunpack.c.l.b16 %v2615
    %v3858 = vunpack.c.h.b16 %v2615
    %v3859 = vunpack.c.l.b16 %v2616
    %v3860 = vunpack.c.h.b16 %v2616
    %v3861 = vunpack.c.l.b16 %v2617
    %v3862 = vunpack.c.h.b16 %v2617
    %v3863 = vunpack.c.l.b16 %v2618
    %v3864 = vunpack.c.h.b16 %v2618
    %v3865 = vunpack.c.l.b16 %v2619
    %v3866 = vunpack.c.h.b16 %v2619
    %v3867 = vunpack.c.l.b16 %v2620
    %v3868 = vunpack.c.h.b16 %v2620
    %v3869 = vunpack.c.l.b16 %v2621
    %v3870 = vunpack.c.h.b16 %v2621
    %v3871 = vunpack.c.l.b16 %v2622
    %v3872 = vunpack.c.h.b16 %v2622
    %v3873 = vunpack.c.l.b16 %v2623
    %v3874 = vunpack.c.h.b16 %v2623
    %v3875 = vunpack.c.l.b16 %v2624
    %v3876 = vunpack.c.h.b16 %v2624
    %v3877 = vunpack.c.l.b16 %v2625
    %v3878 = vunpack.c.h.b16 %v2625
    %v3879 = vunpack.c.l.b16 %v2626
    %v3880 = vunpack.c.h.b16 %v2626
    %v3881 = vunpack.c.l.b16 %v2627
    %v3882 = vunpack.c.h.b16 %v2627
    %v3883 = vunpack.c.l.b16 %v2628
    %v3884 = vunpack.c.h.b16 %v2628
    %v3885 = vunpack.c.l.b16 %v2629
    %v3886 = vunpack.c.h.b16 %v2629
    %v3887 = vunpack.c.l.b16 %v2630
    %v3888 = vunpack.c.h.b16 %v2630
    %v3889 = vunpack.c.l.b16 %v2631
    %v3890 = vunpack.c.h.b16 %v2631
    %v3891 = vunpack.c.l.b16 %v2632
    %v3892 = vunpack.c.h.b16 %v2632
    %v3893 = vunpack.c.l.b16 %v2633
    %v3894 = vunpack.c.h.b16 %v2633
    %v3895 = vunpack.c.l.b16 %v2634
    %v3896 = vunpack.c.h.b16 %v2634
    %v3897 = vunpack.c.l.b16 %v2635
    %v3898 = vunpack.c.h.b16 %v2635
    %v3899 = vunpack.c.l.b16 %v2636
    %v3900 = vunpack.c.h.b16 %v2636
    %v3901 = vunpack.c.l.b16 %v2637
    %v3902 = vunpack.c.h.b16 %v2637
    %v3903 = vunpack.c.l.b16 %v2638
    %v3904 = vunpack.c.h.b16 %v2638
    %v3905 = vunpack.c.l.b16 %v2639
    %v3906 = vunpack.c.h.b16 %v2639
    %v3907 = vunpack.c.l.b16 %v2640
    %v3908 = vunpack.c.h.b16 %v2640
    %v3909 = vunpack.c.l.b16 %v2641
    %v3910 = vunpack.c.h.b16 %v2641
    %v3911 = vunpack.c.l.b16 %v2642
    %v3912 = vunpack.c.h.b16 %v2642
    %v3913 = vunpack.c.l.b16 %v2643
    %v3914 = vunpack.c.h.b16 %v2643
    %v3915 = vunpack.c.l.b16 %v2644
    %v3916 = vunpack.c.h.b16 %v2644
    %v3917 = vunpack.c.l.b16 %v2645
    %v3918 = vunpack.c.h.b16 %v2645
    %v3919 = vunpack.c.l.b16 %v2646
    %v3920 = vunpack.c.h.b16 %v2646
    %v3921 = vunpack.c.l.b16 %v2647
    %v3922 = vunpack.c.h.b16 %v2647
    %v3923 = vunpack.c.l.b16 %v2648
    %v3924 = vunpack.c.h.b16 %v2648
    %v3925 = vunpack.c.l.b16 %v2649
    %v3926 = vunpack.c.h.b16 %v2649
    %v3927 = vunpack.c.l.b16 %v2650
    %v3928 = vunpack.c.h.b16 %v2650
    %v3929 = vunpack.c.l.b16 %v2651
    %v3930 = vunpack.c.h.b16 %v2651
    %v3931 = vunpack.c.l.b16 %v2652
    %v3932 = vunpack.c.h.b16 %v2652
    %v3933 = vunpack.c.l.b16 %v2653
    %v3934 = vunpack.c.h.b16 %v2653
    %v3935 = vunpack.c.l.b16 %v2654
    %v3936 = vunpack.c.h.b16 %v2654
    %v3937 = vunpack.c.l.b16 %v2655
    %v3938 = vunpack.c.h.b16 %v2655
    %v3939 = vunpack.c.l.b16 %v2656
    %v3940 = vunpack.c.h.b16 %v2656
    %v3941 = vunpack.c.l.b16 %v2657
    %v3942 = vunpack.c.h.b16 %v2657
    %v3943 = vunpack.c.l.b16 %v2658
    %v3944 = vunpack.c.h.b16 %v2658
    %v3945 = vunpack.c.l.b16 %v2659
    %v3946 = vunpack.c.h.b16 %v2659
    %v3947 = vunpack.c.l.b16 %v2660
    %v3948 = vunpack.c.h.b16 %v2660
    %v3949 = vunpack.c.l.b16 %v2661
    %v3950 = vunpack.c.h.b16 %v2661
    %v3951 = vunpack.c.l.b16 %v2662
    %v3952 = vunpack.c.h.b16 %v2662
    %v3953 = vunpack.c.l.b16 %v2663
    %v3954 = vunpack.c.h.b16 %v2663
    %v3955 = vunpack.c.l.b16 %v2664
    %v3956 = vunpack.c.h.b16 %v2664
    %v3957 = vunpack.c.l.b16 %v2665
    %v3958 = vunpack.c.h.b16 %v2665
    %v3959 = vunpack.c.l.b16 %v2666
    %v3960 = vunpack.c.h.b16 %v2666
    %v3961 = vunpack.c.l.b16 %v2667
    %v3962 = vunpack.c.h.b16 %v2667
    %v3963 = vunpack.c.l.b16 %v2668
    %v3964 = vunpack.c.h.b16 %v2668
    %v3965 = vunpack.c.l.b16 %v2669
    %v3966 = vunpack.c.h.b16 %v2669
    %v3967 = vunpack.c.l.b16 %v2670
    %v3968 = vunpack.c.h.b16 %v2670
    %v3969 = vunpack.c.l.b16 %v2671
    %v3970 = vunpack.c.h.b16 %v2671
    %v3971 = vunpack.c.l.b16 %v2672
    %v3972 = vunpack.c.h.b16 %v2672
    %v3973 = vunpack.c.l.b16 %v2673
    %v3974 = vunpack.c.h.b16 %v2673
    %v3975 = vunpack.c.l.b16 %v2674
    %v3976 = vunpack.c.h.b16 %v2674
    %v3977 = vunpack.c.l.b16 %v2675
    %v3978 = vunpack.c.h.b16 %v2675
    %v3979 = vunpack.c.l.b16 %v2676
    %v3980 = vunpack.c.h.b16 %v2676
    %v3981 = vunpack.c.l.b16 %v2677
    %v3982 = vunpack.c.h.b16 %v2677
    %v3983 = vunpack.c.l.b16 %v2678
    %v3984 = vunpack.c.h.b16 %v2678
    %v3985 = vunpack.c.l.b16 %v2679
    %v3986 = vunpack.c.h.b16 %v2679
    %v3987 = vunpack.c.l.b16 %v2680
    %v3988 = vunpack.c.h.b16 %v2680
    %v3989 = vunpack.c.l.b16 %v2681
    %v3990 = vunpack.c.h.b16 %v2681
    %v3991 = vunpack.c.l.b16 %v2682
    %v3992 = vunpack.c.h.b16 %v2682
    %v3993 = vunpack.c.l.b16 %v2683
    %v3994 = vunpack.c.h.b16 %v2683
    %v3995 = vunpack.c.l.b16 %v2684
    %v3996 = vunpack.c.h.b16 %v2684
    %v3997 = vunpack.c.l.b16 %v2685
    %v3998 = vunpack.c.h.b16 %v2685
    %v3999 = vunpack.c.l.b16 %v2686
    %v4000 = vunpack.c.h.b16 %v2686
    %v4001 = vunpack.c.l.b16 %v2687
    %v4002 = vunpack.c.h.b16 %v2687
    %v4003 = vunpack.c.l.b16 %v2688
    %v4004 = vunpack.c.h.b16 %v2688
    %v4005 = vunpack.c.l.b16 %v2689
    %v4006 = vunpack.c.h.b16 %v2689
    %v4007 = vunpack.c.l.b16 %v2690
    %v4008 = vunpack.c.h.b16 %v2690
    %v4009 = vunpack.c.l.b16 %v2691
    %v4010 = vunpack.c.h.b16 %v2691
    %v4011 = vunpack.c.l.b16 %v2692
    %v4012 = vunpack.c.h.b16 %v2692
    %v4013 = vunpack.c.l.b16 %v2693
    %v4014 = vunpack.c.h.b16 %v2693
    %v4015 = vunpack.c.l.b16 %v2694
    %v4016 = vunpack.c.h.b16 %v2694
    %v4017 = vunpack.c.l.b16 %v2695
    %v4018 = vunpack.c.h.b16 %v2695
    %v4019 = vunpack.c.l.b16 %v2696
    %v4020 = vunpack.c.h.b16 %v2696
    %v4021 = vunpack.c.l.b16 %v2697
    %v4022 = vunpack.c.h.b16 %v2697
    %v4023 = vunpack.c.l.b16 %v2698
    %v4024 = vunpack.c.h.b16 %v2698
    %v4025 = vunpack.c.l.b16 %v2699
    %v4026 = vunpack.c.h.b16 %v2699
    %v4027 = vunpack.c.l.b16 %v2700
    %v4028 = vunpack.c.h.b16 %v2700
    %v4029 = vunpack.c.l.b16 %v2701
    %v4030 = vunpack.c.h.b16 %v2701
    %v4031 = vunpack.c.l.b16 %v2702
    %v4032 = vunpack.c.h.b16 %v2702
    %v4033 = vunpack.c.l.b16 %v2703
    %v4034 = vunpack.c.h.b16 %v2703
    %v4035 = vunpack.c.l.b16 %v2704
    %v4036 = vunpack.c.h.b16 %v2704
    %v4037 = vunpack.c.l.b16 %v2705
    %v4038 = vunpack.c.h.b16 %v2705
    %v4039 = vunpack.c.l.b16 %v2706
    %v4040 = vunpack.c.h.b16 %v2706
    %v4041 = vunpack.c.l.b16 %v2707
    %v4042 = vunpack.c.h.b16 %v2707
    %v4043 = vunpack.c.l.b16 %v2708
    %v4044 = vunpack.c.h.b16 %v2708
    %v4045 = vunpack.c.l.b16 %v2709
    %v4046 = vunpack.c.h.b16 %v2709
    %v4047 = vunpack.c.l.b16 %v2710
    %v4048 = vunpack.c.h.b16 %v2710
    %v4049 = vunpack.c.l.b16 %v2711
    %v4050 = vunpack.c.h.b16 %v2711
    %v4051 = vunpack.c.l.b16 %v2712
    %v4052 = vunpack.c.h.b16 %v2712
    %v4053 = vunpack.c.l.b16 %v2713
    %v4054 = vunpack.c.h.b16 %v2713
    %v4055 = vunpack.c.l.b16 %v2714
    %v4056 = vunpack.c.h.b16 %v2714
    %v4057 = vunpack.c.l.b16 %v2715
    %v4058 = vunpack.c.h.b16 %v2715
    %v4059 = vunpack.c.l.b16 %v2716
    %v4060 = vunpack.c.h.b16 %v2716
    %v4061 = vunpack.c.l.b16 %v2717
    %v4062 = vunpack.c.h.b16 %v2717
    %v4063 = vunpack.c.l.b16 %v2718
    %v4064 = vunpack.c.h.b16 %v2718
    %v4065 = vunpack.c.l.b16 %v2719
    %v4066 = vunpack.c.h.b16 %v2719
    %v4067 = vunpack.c.l.b16 %v2720
    %v4068 = vunpack.c.h.b16 %v2720
    %v4069 = vunpack.c.l.b16 %v2721
    %v4070 = vunpack.c.h.b16 %v2721
    %v4071 = vunpack.c.l.b16 %v2722
    %v4072 = vunpack.c.h.b16 %v2722
    %v4073 = vunpack.c.l.b16 %v2723
    %v4074 = vunpack.c.h.b16 %v2723
    %v4075 = vunpack.c.l.b16 %v2724
    %v4076 = vunpack.c.h.b16 %v2724
    %v4077 = vunpack.c.l.b16 %v2725
    %v4078 = vunpack.c.h.b16 %v2725
    %v4079 = vunpack.c.l.b16 %v2726
    %v4080 = vunpack.c.h.b16 %v2726
    %v4081 = vunpack.c.l.b16 %v2727
    %v4082 = vunpack.c.h.b16 %v2727
    %v4083 = vunpack.c.l.b16 %v2728
    %v4084 = vunpack.c.h.b16 %v2728
    %v4085 = vunpack.c.l.b16 %v2729
    %v4086 = vunpack.c.h.b16 %v2729
    %v4087 = vunpack.c.l.b16 %v2730
    %v4088 = vunpack.c.h.b16 %v2730
    %v4089 = vunpack.c.l.b16 %v2731
    %v4090 = vunpack.c.h.b16 %v2731
    %v4091 = vunpack.c.l.b16 %v2732
    %v4092 = vunpack.c.h.b16 %v2732
    %v4093 = vunpack.c.l.b16 %v2733
    %v4094 = vunpack.c.h.b16 %v2733
    %v4095 = vunpack.c.l.b16 %v2734
    %v4096 = vunpack.c.h.b16 %v2734
    %v4097 = vunpack.c.l.b16 %v2735
    %v4098 = vunpack.c.h.b16 %v2735
    %v4099 = vunpack.c.l.b16 %v2736
    %v4100 = vunpack.c.h.b16 %v2736
    %v4101 = vunpack.c.l.b16 %v2737
    %v4102 = vunpack.c.h.b16 %v2737
    %v4103 = vunpack.c.l.b16 %v2738
    %v4104 = vunpack.c.h.b16 %v2738
    %v4105 = vunpack.c.l.b16 %v2739
    %v4106 = vunpack.c.h.b16 %v2739
    %v4107 = vunpack.c.l.b16 %v2740
    %v4108 = vunpack.c.h.b16 %v2740
    %v4109 = vunpack.c.l.b16 %v2741
    %v4110 = vunpack.c.h.b16 %v2741
    %v4111 = vunpack.c.l.b16 %v2742
    %v4112 = vunpack.c.h.b16 %v2742
    %v4113 = vunpack.c.l.b16 %v2743
    %v4114 = vunpack.c.h.b16 %v2743
    %v4115 = vunpack.c.l.b16 %v2744
    %v4116 = vunpack.c.h.b16 %v2744
    %v4117 = vunpack.c.l.b16 %v2745
    %v4118 = vunpack.c.h.b16 %v2745
    %v4119 = vunpack.c.l.b16 %v2746
    %v4120 = vunpack.c.h.b16 %v2746
    %v4121 = vunpack.c.l.b16 %v2747
    %v4122 = vunpack.c.h.b16 %v2747
    %v4123 = vunpack.c.l.b16 %v2748
    %v4124 = vunpack.c.h.b16 %v2748
    %v4125 = vunpack.c.l.b16 %v2749
    %v4126 = vunpack.c.h.b16 %v2749
    %v4127 = vunpack.c.l.b16 %v2750
    %v4128 = vunpack.c.h.b16 %v2750
    %v4129 = vunpack.c.l.b16 %v2751
    %v4130 = vunpack.c.h.b16 %v2751
    %v4131 = vunpack.c.l.b16 %v2752
    %v4132 = vunpack.c.h.b16 %v2752
    %v4133 = vunpack.c.l.b16 %v2753
    %v4134 = vunpack.c.h.b16 %v2753
    %v4135 = vunpack.c.l.b16 %v2754
    %v4136 = vunpack.c.h.b16 %v2754
    %v4137 = vunpack.c.l.b16 %v2755
    %v4138 = vunpack.c.h.b16 %v2755
    %v4139 = vunpack.c.l.b16 %v2756
    %v4140 = vunpack.c.h.b16 %v2756
    %v4141 = vunpack.c.l.b16 %v2757
    %v4142 = vunpack.c.h.b16 %v2757
    %v4143 = vunpack.c.l.b16 %v2758
    %v4144 = vunpack.c.h.b16 %v2758
    %v4145 = vunpack.c.l.b16 %v2759
    %v4146 = vunpack.c.h.b16 %v2759
    %v4147 = vunpack.c.l.b16 %v2760
    %v4148 = vunpack.c.h.b16 %v2760
    %v4149 = vunpack.c.l.b16 %v2761
    %v4150 = vunpack.c.h.b16 %v2761
    %v4151 = vunpack.c.l.b16 %v2762
    %v4152 = vunpack.c.h.b16 %v2762
    %v4153 = vunpack.c.l.b16 %v2763
    %v4154 = vunpack.c.h.b16 %v2763
    %v4155 = vunpack.c.l.b16 %v2764
    %v4156 = vunpack.c.h.b16 %v2764
    %v4157 = vunpack.c.l.b16 %v2765
    %v4158 = vunpack.c.h.b16 %v2765
    %v4159 = vunpack.c.l.b16 %v2766
    %v4160 = vunpack.c.h.b16 %v2766
    %v4161 = vunpack.c.l.b16 %v2767
    %v4162 = vunpack.c.h.b16 %v2767
    %v4163 = vunpack.c.l.b16 %v2768
    %v4164 = vunpack.c.h.b16 %v2768
    %v4165 = vunpack.c.l.b16 %v2769
    %v4166 = vunpack.c.h.b16 %v2769
    %v4167 = vunpack.c.l.b16 %v2770
    %v4168 = vunpack.c.h.b16 %v2770
    %v4169 = vunpack.c.l.b16 %v2771
    %v4170 = vunpack.c.h.b16 %v2771
    %v4171 = vunpack.c.l.b16 %v2772
    %v4172 = vunpack.c.h.b16 %v2772
    %v4173 = vunpack.c.l.b16 %v2773
    %v4174 = vunpack.c.h.b16 %v2773
    %v4175 = vunpack.c.l.b16 %v2774
    %v4176 = vunpack.c.h.b16 %v2774
    %v4177 = vunpack.c.l.b16 %v2775
    %v4178 = vunpack.c.h.b16 %v2775
    %v4179 = vunpack.c.l.b16 %v2776
    %v4180 = vunpack.c.h.b16 %v2776
    %v4181 = vunpack.c.l.b16 %v2777
    %v4182 = vunpack.c.h.b16 %v2777
    %v4183 = vunpack.c.l.b16 %v2778
    %v4184 = vunpack.c.h.b16 %v2778
    %v4185 = vunpack.c.l.b16 %v2779
    %v4186 = vunpack.c.h.b16 %v2779
    %v4187 = vunpack.c.l.b16 %v2780
    %v4188 = vunpack.c.h.b16 %v2780
    %v4189 = vunpack.c.l.b16 %v2781
    %v4190 = vunpack.c.h.b16 %v2781
    %v4191 = vunpack.c.l.b16 %v2782
    %v4192 = vunpack.c.h.b16 %v2782
    %v4193 = vunpack.c.l.b16 %v2783
    %v4194 = vunpack.c.h.b16 %v2783
    %v4195 = vunpack.c.l.b16 %v2784
    %v4196 = vunpack.c.h.b16 %v2784
    %v4197 = vunpack.c.l.b16 %v2785
    %v4198 = vunpack.c.h.b16 %v2785
    %v4199 = vunpack.c.l.b16 %v2786
    %v4200 = vunpack.c.h.b16 %v2786
    %v4201 = vunpack.c.l.b16 %v2787
    %v4202 = vunpack.c.h.b16 %v2787
    %v4203 = vunpack.c.l.b16 %v2788
    %v4204 = vunpack.c.h.b16 %v2788
    %v4205 = vunpack.c.l.b16 %v2789
    %v4206 = vunpack.c.h.b16 %v2789
    %v4207 = vunpack.c.l.b16 %v2790
    %v4208 = vunpack.c.h.b16 %v2790
    %v4209 = vunpack.c.l.b16 %v2791
    %v4210 = vunpack.c.h.b16 %v2791
    %v4211 = vunpack.c.l.b16 %v2792
    %v4212 = vunpack.c.h.b16 %v2792
    %v4213 = vunpack.c.l.b16 %v2793
    %v4214 = vunpack.c.h.b16 %v2793
    %v4215 = vunpack.c.l.b16 %v2794
    %v4216 = vunpack.c.h.b16 %v2794
    %v4217 = vunpack.c.l.b16 %v2795
    %v4218 = vunpack.c.h.b16 %v2795
    %v4219 = vunpack.c.l.b16 %v2796
    %v4220 = vunpack.c.h.b16 %v2796
    %v4221 = vunpack.c.l.b16 %v2797
    %v4222 = vunpack.c.h.b16 %v2797
    %v4223 = vunpack.c.l.b16 %v2798
    %v4224 = vunpack.c.h.b16 %v2798
    %v4225 = vunpack.c.l.b16 %v2799
    %v4226 = vunpack.c.h.b16 %v2799
    %v4227 = vunpack.c.l.b16 %v2800
    %v4228 = vunpack.c.h.b16 %v2800
    %v4229 = vunpack.c.l.b16 %v2801
    %v4230 = vunpack.c.h.b16 %v2801
    %v4231 = vunpack.c.l.b16 %v2802
    %v4232 = vunpack.c.h.b16 %v2802
    %v4233 = vunpack.c.l.b16 %v2803
    %v4234 = vunpack.c.h.b16 %v2803
    %v4235 = vunpack.c.l.b16 %v2804
    %v4236 = vunpack.c.h.b16 %v2804
    %v4237 = vunpack.c.l.b16 %v2805
    %v4238 = vunpack.c.h.b16 %v2805
    %v4239 = vunpack.c.l.b16 %v2806
    %v4240 = vunpack.c.h.b16 %v2806
    %v4241 = vunpack.c.l.b16 %v2807
    %v4242 = vunpack.c.h.b16 %v2807
    %v4243 = vunpack.c.l.b16 %v2808
    %v4244 = vunpack.c.h.b16 %v2808
    %v4245 = vunpack.c.l.b16 %v2809
    %v4246 = vunpack.c.h.b16 %v2809
    %v4247 = vunpack.c.l.b16 %v2810
    %v4248 = vunpack.c.h.b16 %v2810
    %v4249 = vunpack.c.l.b16 %v2811
    %v4250 = vunpack.c.h.b16 %v2811
    %v4251 = vunpack.c.l.b16 %v2812
    %v4252 = vunpack.c.h.b16 %v2812
    %v4253 = vunpack.c.l.b16 %v2813
    %v4254 = vunpack.c.h.b16 %v2813
    %v4255 = vunpack.c.l.b16 %v2814
    %v4256 = vunpack.c.h.b16 %v2814
    %v4257 = vunpack.c.l.b16 %v2815
    %v4258 = vunpack.c.h.b16 %v2815
    %v4259 = vunpack.c.l.b16 %v2816
    %v4260 = vunpack.c.h.b16 %v2816
    %v4261 = vunpack.c.l.b16 %v2817
    %v4262 = vunpack.c.h.b16 %v2817
    %v4263 = vunpack.c.l.b16 %v2818
    %v4264 = vunpack.c.h.b16 %v2818
    %v4265 = vunpack.c.l.b16 %v2819
    %v4266 = vunpack.c.h.b16 %v2819
    %v4267 = vunpack.c.l.b16 %v2820
    %v4268 = vunpack.c.h.b16 %v2820
    %v4269 = vunpack.c.l.b16 %v2821
    %v4270 = vunpack.c.h.b16 %v2821
    %v4271 = vunpack.c.l.b16 %v2822
    %v4272 = vunpack.c.h.b16 %v2822
    %v4273 = vunpack.c.l.b16 %v2823
    %v4274 = vunpack.c.h.b16 %v2823
    %v4275 = vunpack.c.l.b16 %v2824
    %v4276 = vunpack.c.h.b16 %v2824
    %v4277 = vunpack.c.l.b16 %v2825
    %v4278 = vunpack.c.h.b16 %v2825
    %v4279 = vunpack.c.l.b16 %v2826
    %v4280 = vunpack.c.h.b16 %v2826
    %v4281 = vunpack.c.l.b16 %v2827
    %v4282 = vunpack.c.h.b16 %v2827
    %v4283 = vunpack.c.l.b16 %v2828
    %v4284 = vunpack.c.h.b16 %v2828
    %v4285 = vunpack.c.l.b16 %v2829
    %v4286 = vunpack.c.h.b16 %v2829
    %v4287 = vunpack.c.l.b16 %v2830
    %v4288 = vunpack.c.h.b16 %v2830
    %v4289 = vunpack.c.l.b16 %v2831
    %v4290 = vunpack.c.h.b16 %v2831
    %v4291 = vunpack.c.l.b16 %v2832
    %v4292 = vunpack.c.h.b16 %v2832
    %v4293 = vunpack.c.l.b16 %v2833
    %v4294 = vunpack.c.h.b16 %v2833
    %v4295 = vunpack.c.l.b16 %v2834
    %v4296 = vunpack.c.h.b16 %v2834
    %v4297 = vunpack.c.l.b16 %v2835
    %v4298 = vunpack.c.h.b16 %v2835
    %v4299 = vunpack.c.l.b16 %v2836
    %v4300 = vunpack.c.h.b16 %v2836
    %v4301 = vunpack.c.l.b16 %v2837
    %v4302 = vunpack.c.h.b16 %v2837
    %v4303 = vunpack.c.l.b16 %v2838
    %v4304 = vunpack.c.h.b16 %v2838
    %v4305 = vunpack.c.l.b16 %v2839
    %v4306 = vunpack.c.h.b16 %v2839
    %v4307 = vunpack.c.l.b16 %v2840
    %v4308 = vunpack.c.h.b16 %v2840
    %v4309 = vunpack.c.l.b16 %v2841
    %v4310 = vunpack.c.h.b16 %v2841
    %v4311 = vunpack.c.l.b16 %v2842
    %v4312 = vunpack.c.h.b16 %v2842
    %v4313 = vunpack.c.l.b16 %v2843
    %v4314 = vunpack.c.h.b16 %v2843
    %v4315 = vunpack.c.l.b16 %v2844
    %v4316 = vunpack.c.h.b16 %v2844
    %v4317 = vunpack.c.l.b16 %v2845
    %v4318 = vunpack.c.h.b16 %v2845
    %v4319 = vunpack.c.l.b16 %v2846
    %v4320 = vunpack.c.h.b16 %v2846
    %v4321 = vunpack.c.l.b16 %v2847
    %v4322 = vunpack.c.h.b16 %v2847
    %v4323 = vunpack.c.l.b16 %v2848
    %v4324 = vunpack.c.h.b16 %v2848
    %v4325 = vunpack.c.l.b16 %v2849
    %v4326 = vunpack.c.h.b16 %v2849
    %v4327 = vunpack.c.l.b16 %v2850
    %v4328 = vunpack.c.h.b16 %v2850
    %v4329 = vunpack.c.l.b16 %v2851
    %v4330 = vunpack.c.h.b16 %v2851
    %v4331 = vunpack.c.l.b16 %v2852
    %v4332 = vunpack.c.h.b16 %v2852
    %v4333 = vunpack.c.l.b16 %v2853
    %v4334 = vunpack.c.h.b16 %v2853
    %v4335 = vunpack.c.l.b16 %v2854
    %v4336 = vunpack.c.h.b16 %v2854
    %v4337 = vunpack.c.l.b16 %v2855
    %v4338 = vunpack.c.h.b16 %v2855
    %v4339 = vunpack.c.l.b16 %v2856
    %v4340 = vunpack.c.h.b16 %v2856
    %v4341 = vunpack.c.l.b16 %v2857
    %v4342 = vunpack.c.h.b16 %v2857
    %v4343 = vunpack.c.l.b16 %v2858
    %v4344 = vunpack.c.h.b16 %v2858
    %v4345 = vunpack.c.l.b16 %v2859
    %v4346 = vunpack.c.h.b16 %v2859
    %v4347 = vunpack.c.l.b16 %v2860
    %v4348 = vunpack.c.h.b16 %v2860
    %v4349 = vunpack.c.l.b16 %v2861
    %v4350 = vunpack.c.h.b16 %v2861
    %v4351 = vunpack.c.l.b16 %v2862
    %v4352 = vunpack.c.h.b16 %v2862
    %v4353 = vunpack.c.l.b16 %v2863
    %v4354 = vunpack.c.h.b16 %v2863
    %v4355 = vunpack.c.l.b16 %v2864
    %v4356 = vunpack.c.h.b16 %v2864
    %v4357 = vunpack.c.l.b16 %v2865
    %v4358 = vunpack.c.h.b16 %v2865
    %v4359 = vunpack.c.l.b16 %v2866
    %v4360 = vunpack.c.h.b16 %v2866
    %v4361 = vunpack.c.l.b16 %v2867
    %v4362 = vunpack.c.h.b16 %v2867
    %v4363 = vunpack.c.l.b16 %v2868
    %v4364 = vunpack.c.h.b16 %v2868
    %v4365 = vunpack.c.l.b16 %v2869
    %v4366 = vunpack.c.h.b16 %v2869
    %v4367 = vunpack.c.l.b16 %v2870
    %v4368 = vunpack.c.h.b16 %v2870
    %v4369 = vunpack.c.l.b16 %v2871
    %v4370 = vunpack.c.h.b16 %v2871
    %v4371 = vunpack.c.l.b16 %v2872
    %v4372 = vunpack.c.h.b16 %v2872
    %v4373 = vunpack.c.l.b16 %v2873
    %v4374 = vunpack.c.h.b16 %v2873
    %v4375 = vunpack.c.l.b16 %v2874
    %v4376 = vunpack.c.h.b16 %v2874
    %v4377 = vunpack.c.l.b16 %v2875
    %v4378 = vunpack.c.h.b16 %v2875
    %v4379 = vunpack.c.l.b16 %v2876
    %v4380 = vunpack.c.h.b16 %v2876
    %v4381 = vunpack.c.l.b16 %v2877
    %v4382 = vunpack.c.h.b16 %v2877
    %v4383 = vunpack.c.l.b16 %v2878
    %v4384 = vunpack.c.h.b16 %v2878
    %v4385 = vunpack.c.l.b16 %v2879
    %v4386 = vunpack.c.h.b16 %v2879
    %v4387 = vunpack.c.l.b16 %v2880
    %v4388 = vunpack.c.h.b16 %v2880
    %v4389 = vunpack.c.l.b16 %v2881
    %v4390 = vunpack.c.h.b16 %v2881
    %v4391 = vunpack.c.l.b16 %v2882
    %v4392 = vunpack.c.h.b16 %v2882
    %v4393 = vunpack.c.l.b16 %v2883
    %v4394 = vunpack.c.h.b16 %v2883
    %v4395 = vunpack.c.l.b16 %v2884
    %v4396 = vunpack.c.h.b16 %v2884
    %v4397 = vunpack.c.l.b16 %v2885
    %v4398 = vunpack.c.h.b16 %v2885
    %v4399 = vunpack.c.l.b16 %v2886
    %v4400 = vunpack.c.h.b16 %v2886
    %v4401 = vunpack.c.l.b16 %v2887
    %v4402 = vunpack.c.h.b16 %v2887
    %v4403 = vunpack.c.l.b16 %v2888
    %v4404 = vunpack.c.h.b16 %v2888
    %v4405 = vunpack.c.l.b16 %v2889
    %v4406 = vunpack.c.h.b16 %v2889
    %v4407 = vunpack.c.l.b16 %v2890
    %v4408 = vunpack.c.h.b16 %v2890
    %v4409 = vunpack.c.l.b16 %v2891
    %v4410 = vunpack.c.h.b16 %v2891
    %v4411 = vunpack.c.l.b16 %v2892
    %v4412 = vunpack.c.h.b16 %v2892
    %v4413 = vunpack.c.l.b16 %v2893
    %v4414 = vunpack.c.h.b16 %v2893
    %v4415 = vunpack.c.l.b16 %v2894
    %v4416 = vunpack.c.h.b16 %v2894
    %v4417 = vunpack.c.l.b16 %v2895
    %v4418 = vunpack.c.h.b16 %v2895
    %v4419 = vunpack.c.l.b16 %v2896
    %v4420 = vunpack.c.h.b16 %v2896
    %v4421 = vunpack.c.l.b16 %v2897
    %v4422 = vunpack.c.h.b16 %v2897
    %v4423 = vunpack.c.l.b16 %v2898
    %v4424 = vunpack.c.h.b16 %v2898
    %v4425 = vunpack.c.l.b16 %v2899
    %v4426 = vunpack.c.h.b16 %v2899
    %v4427 = vunpack.c.l.b16 %v2900
    %v4428 = vunpack.c.h.b16 %v2900
    %v4429 = vunpack.c.l.b16 %v2901
    %v4430 = vunpack.c.h.b16 %v2901
    %v4431 = vunpack.c.l.b16 %v2902
    %v4432 = vunpack.c.h.b16 %v2902
    %v4433 = vunpack.c.l.b16 %v2903
    %v4434 = vunpack.c.h.b16 %v2903
    %v4435 = vunpack.c.l.b16 %v2904
    %v4436 = vunpack.c.h.b16 %v2904
    %v4437 = vunpack.c.l.b16 %v2905
    %v4438 = vunpack.c.h.b16 %v2905
    %v4439 = vunpack.c.l.b16 %v2906
    %v4440 = vunpack.c.h.b16 %v2906
    %v4441 = vunpack.c.l.b16 %v2907
    %v4442 = vunpack.c.h.b16 %v2907
    %v4443 = vunpack.c.l.b16 %v2908
    %v4444 = vunpack.c.h.b16 %v2908
    %v4445 = vunpack.c.l.b16 %v2909
    %v4446 = vunpack.c.h.b16 %v2909
    %v4447 = vunpack.c.l.b16 %v2910
    %v4448 = vunpack.c.h.b16 %v2910
    %v4449 = vunpack.c.l.b16 %v2911
    %v4450 = vunpack.c.h.b16 %v2911
    %v4451 = vunpack.c.l.b16 %v2912
    %v4452 = vunpack.c.h.b16 %v2912
    %v4453 = vunpack.c.l.b16 %v2913
    %v4454 = vunpack.c.h.b16 %v2913
    %v4455 = vunpack.c.l.b16 %v2914
    %v4456 = vunpack.c.h.b16 %v2914
    %v4457 = vunpack.c.l.b16 %v2915
    %v4458 = vunpack.c.h.b16 %v2915
    %v4459 = vunpack.c.l.b16 %v2916
    %v4460 = vunpack.c.h.b16 %v2916
    %v4461 = vunpack.c.l.b16 %v2917
    %v4462 = vunpack.c.h.b16 %v2917
    %v4463 = vunpack.c.l.b16 %v2918
    %v4464 = vunpack.c.h.b16 %v2918
    %v4465 = vunpack.c.l.b16 %v2919
    %v4466 = vunpack.c.h.b16 %v2919
    %v4467 = vunpack.c.l.b16 %v2920
    %v4468 = vunpack.c.h.b16 %v2920
    %v4469 = vunpack.c.l.b16 %v2921
    %v4470 = vunpack.c.h.b16 %v2921
    %v4471 = vunpack.c.l.b16 %v2922
    %v4472 = vunpack.c.h.b16 %v2922
    %v4473 = vunpack.c.l.b16 %v2923
    %v4474 = vunpack.c.h.b16 %v2923
    %v4475 = vunpack.c.l.b16 %v2924
    %v4476 = vunpack.c.h.b16 %v2924
    %v4477 = vunpack.c.l.b16 %v2925
    %v4478 = vunpack.c.h.b16 %v2925
    %v4479 = vunpack.c.l.b16 %v2926
    %v4480 = vunpack.c.h.b16 %v2926
    %v4481 = vunpack.c.l.b16 %v2927
    %v4482 = vunpack.c.h.b16 %v2927
    %v4483 = vunpack.c.l.b16 %v2928
    %v4484 = vunpack.c.h.b16 %v2928
    %v4485 = vunpack.c.l.b16 %v2929
    %v4486 = vunpack.c.h.b16 %v2929
    %v4487 = vunpack.c.l.b16 %v2930
    %v4488 = vunpack.c.h.b16 %v2930
    %v4489 = vunpack.c.l.b16 %v2931
    %v4490 = vunpack.c.h.b16 %v2931
    %v4491 = vunpack.c.l.b16 %v2932
    %v4492 = vunpack.c.h.b16 %v2932
    %v4493 = vunpack.c.l.b16 %v2933
    %v4494 = vunpack.c.h.b16 %v2933
    %v4495 = vunpack.c.l.b16 %v2934
    %v4496 = vunpack.c.h.b16 %v2934
    %v4497 = vunpack.c.l.b16 %v2935
    %v4498 = vunpack.c.h.b16 %v2935
    %v4499 = vunpack.c.l.b16 %v2936
    %v4500 = vunpack.c.h.b16 %v2936
    %v4501 = vunpack.c.l.b16 %v2937
    %v4502 = vunpack.c.h.b16 %v2937
    %v4503 = vunpack.c.l.b16 %v2938
    %v4504 = vunpack.c.h.b16 %v2938
    %v4505 = vunpack.c.l.b16 %v2939
    %v4506 = vunpack.c.h.b16 %v2939
    %v4507 = vunpack.c.l.b16 %v2940
    %v4508 = vunpack.c.h.b16 %v2940
    %v4509 = vunpack.c.l.b16 %v2941
    %v4510 = vunpack.c.h.b16 %v2941
    %v4511 = vunpack.c.l.b16 %v2942
    %v4512 = vunpack.c.h.b16 %v2942
    %v4513 = vunpack.c.l.b16 %v2943
    %v4514 = vunpack.c.h.b16 %v2943
    %v4515 = vunpack.c.l.b16 %v2944
    %v4516 = vunpack.c.h.b16 %v2944
    %v4517 = vunpack.c.l.b16 %v2945
    %v4518 = vunpack.c.h.b16 %v2945
    %v4519 = vunpack.c.l.b16 %v2946
    %v4520 = vunpack.c.h.b16 %v2946
    %v4521 = vunpack.c.l.b16 %v2947
    %v4522 = vunpack.c.h.b16 %v2947
    %v4523 = vunpack.c.l.b16 %v2948
    %v4524 = vunpack.c.h.b16 %v2948
    %v4525 = vunpack.c.l.b16 %v2949
    %v4526 = vunpack.c.h.b16 %v2949
    %v4527 = vunpack.c.l.b16 %v2950
    %v4528 = vunpack.c.h.b16 %v2950
    %v4529 = vpack.c.b16 %v3513, %v3505
    %v4530 = vpack.c.b16 %v3514, %v3506
    %v4531 = vpack.c.b16 %v3515, %v3507
    %v4532 = vpack.c.b16 %v3516, %v3508
    %v4533 = vpack.c.b16 %v3517, %v3509
    %v4534 = vpack.c.b16 %v3518, %v3510
    %v4535 = vpack.c.b16 %v3519, %v3511
    %v4536 = vpack.c.b16 %v3520, %v3512
    %v4537 = vpack.c.b16 %v3529, %v3521
    %v4538 = vpack.c.b16 %v3530, %v3522
    %v4539 = vpack.c.b16 %v3531, %v3523
    %v4540 = vpack.c.b16 %v3532, %v3524
    %v4541 = vpack.c.b16 %v3533, %v3525
    %v4542 = vpack.c.b16 %v3534, %v3526
    %v4543 = vpack.c.b16 %v3535, %v3527
    %v4544 = vpack.c.b16 %v3536, %v3528
    %v4545 = vpack.c.b16 %v3545, %v3537
    %v4546 = vpack.c.b16 %v3546, %v3538
    %v4547 = vpack.c.b16 %v3547, %v3539
    %v4548 = vpack.c.b16 %v3548, %v3540
    %v4549 = vpack.c.b16 %v3549, %v3541
    %v4550 = vpack.c.b16 %v3550, %v3542
    %v4551 = vpack.c.b16 %v3551, %v3543
    %v4552 = vpack.c.b16 %v3552, %v3544
    %v4553 = vpack.c.b16 %v3561, %v3553
    %v4554 = vpack.c.b16 %v3562, %v3554
    %v4555 = vpack.c.b16 %v3563, %v3555
    %v4556 = vpack.c.b16 %v3564, %v3556
    %v4557 = vpack.c.b16 %v3565, %v3557
    %v4558 = vpack.c.b16 %v3566, %v3558
    %v4559 = vpack.c.b16 %v3567, %v3559
    %v4560 = vpack.c.b16 %v3568, %v3560
    %v4561 = vpack.c.b16 %v3577, %v3569
    %v4562 = vpack.c.b16 %v3578, %v3570
    %v4563 = vpack.c.b16 %v3579, %v3571
    %v4564 = vpack.c.b16 %v3580, %v3572
    %v4565 = vpack.c.b16 %v3581, %v3573
    %v4566 = vpack.c.b16 %v3582, %v3574
    %v4567 = vpack.c.b16 %v3583, %v3575
    %v4568 = vpack.c.b16 %v3584, %v3576
    %v4569 = vpack.c.b16 %v3593, %v3585
    %v4570 = vpack.c.b16 %v3594, %v3586
    %v4571 = vpack.c.b16 %v3595, %v3587
    %v4572 = vpack.c.b16 %v3596, %v3588
    %v4573 = vpack.c.b16 %v3597, %v3589
    %v4574 = vpack.c.b16 %v3598, %v3590
    %v4575 = vpack.c.b16 %v3599, %v3591
    %v4576 = vpack.c.b16 %v3600, %v3592
    %v4577 = vpack.c.b16 %v3609, %v3601
    %v4578 = vpack.c.b16 %v3610, %v3602
    %v4579 = vpack.c.b16 %v3611, %v3603
    %v4580 = vpack.c.b16 %v3612, %v3604
    %v4581 = vpack.c.b16 %v3613, %v3605
    %v4582 = vpack.c.b16 %v3614, %v3606
    %v4583 = vpack.c.b16 %v3615, %v3607
    %v4584 = vpack.c.b16 %v3616, %v3608
    %v4585 = vpack.c.b16 %v3625, %v3617
    %v4586 = vpack.c.b16 %v3626, %v3618
    %v4587 = vpack.c.b16 %v3627, %v3619
    %v4588 = vpack.c.b16 %v3628, %v3620
    %v4589 = vpack.c.b16 %v3629, %v3621
    %v4590 = vpack.c.b16 %v3630, %v3622
    %v4591 = vpack.c.b16 %v3631, %v3623
    %v4592 = vpack.c.b16 %v3632, %v3624
    %v4593 = vpack.c.b16 %v3641, %v3633
    %v4594 = vpack.c.b16 %v3642, %v3634
    %v4595 = vpack.c.b16 %v3643, %v3635
    %v4596 = vpack.c.b16 %v3644, %v3636
    %v4597 = vpack.c.b16 %v3645, %v3637
    %v4598 = vpack.c.b16 %v3646, %v3638
    %v4599 = vpack.c.b16 %v3647, %v3639
    %v4600 = vpack.c.b16 %v3648, %v3640
    %v4601 = vpack.c.b16 %v3657, %v3649
    %v4602 = vpack.c.b16 %v3658, %v3650
    %v4603 = vpack.c.b16 %v3659, %v3651
    %v4604 = vpack.c.b16 %v3660, %v3652
    %v4605 = vpack.c.b16 %v3661, %v3653
    %v4606 = vpack.c.b16 %v3662, %v3654
    %v4607 = vpack.c.b16 %v3663, %v3655
    %v4608 = vpack.c.b16 %v3664, %v3656
    %v4609 = vpack.c.b16 %v3673, %v3665
    %v4610 = vpack.c.b16 %v3674, %v3666
    %v4611 = vpack.c.b16 %v3675, %v3667
    %v4612 = vpack.c.b16 %v3676, %v3668
    %v4613 = vpack.c.b16 %v3677, %v3669
    %v4614 = vpack.c.b16 %v3678, %v3670
    %v4615 = vpack.c.b16 %v3679, %v3671
    %v4616 = vpack.c.b16 %v3680, %v3672
    %v4617 = vpack.c.b16 %v3689, %v3681
    %v4618 = vpack.c.b16 %v3690, %v3682
    %v4619 = vpack.c.b16 %v3691, %v3683
    %v4620 = vpack.c.b16 %v3692, %v3684
    %v4621 = vpack.c.b16 %v3693, %v3685
    %v4622 = vpack.c.b16 %v3694, %v3686
    %v4623 = vpack.c.b16 %v3695, %v3687
    %v4624 = vpack.c.b16 %v3696, %v3688
    %v4625 = vpack.c.b16 %v3705, %v3697
    %v4626 = vpack.c.b16 %v3706, %v3698
    %v4627 = vpack.c.b16 %v3707, %v3699
    %v4628 = vpack.c.b16 %v3708, %v3700
    %v4629 = vpack.c.b16 %v3709, %v3701
    %v4630 = vpack.c.b16 %v3710, %v3702
    %v4631 = vpack.c.b16 %v3711, %v3703
    %v4632 = vpack.c.b16 %v3712, %v3704
    %v4633 = vpack.c.b16 %v3721, %v3713
    %v4634 = vpack.c.b16 %v3722, %v3714
    %v4635 = vpack.c.b16 %v3723, %v3715
    %v4636 = vpack.c.b16 %v3724, %v3716
    %v4637 = vpack.c.b16 %v3725, %v3717
    %v4638 = vpack.c.b16 %v3726, %v3718
    %v4639 = vpack.c.b16 %v3727, %v3719
    %v4640 = vpack.c.b16 %v3728, %v3720
    %v4641 = vpack.c.b16 %v3737, %v3729
    %v4642 = vpack.c.b16 %v3738, %v3730
    %v4643 = vpack.c.b16 %v3739, %v3731
    %v4644 = vpack.c.b16 %v3740, %v3732
    %v4645 = vpack.c.b16 %v3741, %v3733
    %v4646 = vpack.c.b16 %v3742, %v3734
    %v4647 = vpack.c.b16 %v3743, %v3735
    %v4648 = vpack.c.b16 %v3744, %v3736
    %v4649 = vpack.c.b16 %v3753, %v3745
    %v4650 = vpack.c.b16 %v3754, %v3746
    %v4651 = vpack.c.b16 %v3755, %v3747
    %v4652 = vpack.c.b16 %v3756, %v3748
    %v4653 = vpack.c.b16 %v3757, %v3749
    %v4654 = vpack.c.b16 %v3758, %v3750
    %v4655 = vpack.c.b16 %v3759, %v3751
    %v4656 = vpack.c.b16 %v3760, %v3752
    %v4657 = vpack.c.b16 %v3769, %v3761
    %v4658 = vpack.c.b16 %v3770, %v3762
    %v4659 = vpack.c.b16 %v3771, %v3763
    %v4660 = vpack.c.b16 %v3772, %v3764
    %v4661 = vpack.c.b16 %v3773, %v3765
    %v4662 = vpack.c.b16 %v3774, %v3766
    %v4663 = vpack.c.b16 %v3775, %v3767
    %v4664 = vpack.c.b16 %v3776, %v3768
    %v4665 = vpack.c.b16 %v3785, %v3777
    %v4666 = vpack.c.b16 %v3786, %v3778
    %v4667 = vpack.c.b16 %v3787, %v3779
    %v4668 = vpack.c.b16 %v3788, %v3780
    %v4669 = vpack.c.b16 %v3789, %v3781
    %v4670 = vpack.c.b16 %v3790, %v3782
    %v4671 = vpack.c.b16 %v3791, %v3783
    %v4672 = vpack.c.b16 %v3792, %v3784
    %v4673 = vpack.c.b16 %v3801, %v3793
    %v4674 = vpack.c.b16 %v3802, %v3794
    %v4675 = vpack.c.b16 %v3803, %v3795
    %v4676 = vpack.c.b16 %v3804, %v3796
    %v4677 = vpack.c.b16 %v3805, %v3797
    %v4678 = vpack.c.b16 %v3806, %v3798
    %v4679 = vpack.c.b16 %v3807, %v3799
    %v4680 = vpack.c.b16 %v3808, %v3800
    %v4681 = vpack.c.b16 %v3817, %v3809
    %v4682 = vpack.c.b16 %v3818, %v3810
    %v4683 = vpack.c.b16 %v3819, %v3811
    %v4684 = vpack.c.b16 %v3820, %v3812
    %v4685 = vpack.c.b16 %v3821, %v3813
    %v4686 = vpack.c.b16 %v3822, %v3814
    %v4687 = vpack.c.b16 %v3823, %v3815
    %v4688 = vpack.c.b16 %v3824, %v3816
    %v4689 = vpack.c.b16 %v3833, %v3825
    %v4690 = vpack.c.b16 %v3834, %v3826
    %v4691 = vpack.c.b16 %v3835, %v3827
    %v4692 = vpack.c.b16 %v3836, %v3828
    %v4693 = vpack.c.b16 %v3837, %v3829
    %v4694 = vpack.c.b16 %v3838, %v3830
    %v4695 = vpack.c.b16 %v3839, %v3831
    %v4696 = vpack.c.b16 %v3840, %v3832
    %v4697 = vpack.c.b16 %v3849, %v3841
    %v4698 = vpack.c.b16 %v3850, %v3842
    %v4699 = vpack.c.b16 %v3851, %v3843
    %v4700 = vpack.c.b16 %v3852, %v3844
    %v4701 = vpack.c.b16 %v3853, %v3845
    %v4702 = vpack.c.b16 %v3854, %v3846
    %v4703 = vpack.c.b16 %v3855, %v3847
    %v4704 = vpack.c.b16 %v3856, %v3848
    %v4705 = vpack.c.b16 %v3865, %v3857
    %v4706 = vpack.c.b16 %v3866, %v3858
    %v4707 = vpack.c.b16 %v3867, %v3859
    %v4708 = vpack.c.b16 %v3868, %v3860
    %v4709 = vpack.c.b16 %v3869, %v3861
    %v4710 = vpack.c.b16 %v3870, %v3862
    %v4711 = vpack.c.b16 %v3871, %v3863
    %v4712 = vpack.c.b16 %v3872, %v3864
    %v4713 = vpack.c.b16 %v3881, %v3873
    %v4714 = vpack.c.b16 %v3882, %v3874
    %v4715 = vpack.c.b16 %v3883, %v3875
    %v4716 = vpack.c.b16 %v3884, %v3876
    %v4717 = vpack.c.b16 %v3885, %v3877
    %v4718 = vpack.c.b16 %v3886, %v3878
    %v4719 = vpack.c.b16 %v3887, %v3879
    %v4720 = vpack.c.b16 %v3888, %v3880
    %v4721 = vpack.c.b16 %v3897, %v3889
    %v4722 = vpack.c.b16 %v3898, %v3890
    %v4723 = vpack.c.b16 %v3899, %v3891
    %v4724 = vpack.c.b16 %v3900, %v3892
    %v4725 = vpack.c.b16 %v3901, %v3893
    %v4726 = vpack.c.b16 %v3902, %v3894
    %v4727 = vpack.c.b16 %v3903, %v3895
    %v4728 = vpack.c.b16 %v3904, %v3896
    %v4729 = vpack.c.b16 %v3913, %v3905
    %v4730 = vpack.c.b16 %v3914, %v3906
    %v4731 = vpack.c.b16 %v3915, %v3907
    %v4732 = vpack.c.b16 %v3916, %v3908
    %v4733 = vpack.c.b16 %v3917, %v3909
    %v4734 = vpack.c.b16 %v3918, %v3910
    %v4735 = vpack.c.b16 %v3919, %v3911
    %v4736 = vpack.c.b16 %v3920, %v3912
    %v4737 = vpack.c.b16 %v3929, %v3921
    %v4738 = vpack.c.b16 %v3930, %v3922
    %v4739 = vpack.c.b16 %v3931, %v3923
    %v4740 = vpack.c.b16 %v3932, %v3924
    %v4741 = vpack.c.b16 %v3933, %v3925
    %v4742 = vpack.c.b16 %v3934, %v3926
    %v4743 = vpack.c.b16 %v3935, %v3927
    %v4744 = vpack.c.b16 %v3936, %v3928
    %v4745 = vpack.c.b16 %v3945, %v3937
    %v4746 = vpack.c.b16 %v3946, %v3938
    %v4747 = vpack.c.b16 %v3947, %v3939
    %v4748 = vpack.c.b16 %v3948, %v3940
    %v4749 = vpack.c.b16 %v3949, %v3941
    %v4750 = vpack.c.b16 %v3950, %v3942
    %v4751 = vpack.c.b16 %v3951, %v3943
    %v4752 = vpack.c.b16 %v3952, %v3944
    %v4753 = vpack.c.b16 %v3961, %v3953
    %v4754 = vpack.c.b16 %v3962, %v3954
    %v4755 = vpack.c.b16 %v3963, %v3955
    %v4756 = vpack.c.b16 %v3964, %v3956
    %v4757 = vpack.c.b16 %v3965, %v3957
    %v4758 = vpack.c.b16 %v3966, %v3958
    %v4759 = vpack.c.b16 %v3967, %v3959
    %v4760 = vpack.c.b16 %v3968, %v3960
    %v4761 = vpack.c.b16 %v3977, %v3969
    %v4762 = vpack.c.b16 %v3978, %v3970
    %v4763 = vpack.c.b16 %v3979, %v3971
    %v4764 = vpack.c.b16 %v3980, %v3972
    %v4765 = vpack.c.b16 %v3981, %v3973
    %v4766 = vpack.c.b16 %v3982, %v3974
    %v4767 = vpack.c.b16 %v3983, %v3975
    %v4768 = vpack.c.b16 %v3984, %v3976
    %v4769 = vpack.c.b16 %v3993, %v3985
    %v4770 = vpack.c.b16 %v3994, %v3986
    %v4771 = vpack.c.b16 %v3995, %v3987
    %v4772 = vpack.c.b16 %v3996, %v3988
    %v4773 = vpack.c.b16 %v3997, %v3989
    %v4774 = vpack.c.b16 %v3998, %v3990
    %v4775 = vpack.c.b16 %v3999, %v3991
    %v4776 = vpack.c.b16 %v4000, %v3992
    %v4777 = vpack.c.b16 %v4009, %v4001
    %v4778 = vpack.c.b16 %v4010, %v4002
    %v4779 = vpack.c.b16 %v4011, %v4003
    %v4780 = vpack.c.b16 %v4012, %v4004
    %v4781 = vpack.c.b16 %v4013, %v4005
    %v4782 = vpack.c.b16 %v4014, %v4006
    %v4783 = vpack.c.b16 %v4015, %v4007
    %v4784 = vpack.c.b16 %v4016, %v4008
    %v4785 = vpack.c.b16 %v4025, %v4017
    %v4786 = vpack.c.b16 %v4026, %v4018
    %v4787 = vpack.c.b16 %v4027, %v4019
    %v4788 = vpack.c.b16 %v4028, %v4020
    %v4789 = vpack.c.b16 %v4029, %v4021
    %v4790 = vpack.c.b16 %v4030, %v4022
    %v4791 = vpack.c.b16 %v4031, %v4023
    %v4792 = vpack.c.b16 %v4032, %v4024
    %v4793 = vpack.c.b16 %v4041, %v4033
    %v4794 = vpack.c.b16 %v4042, %v4034
    %v4795 = vpack.c.b16 %v4043, %v4035
    %v4796 = vpack.c.b16 %v4044, %v4036
    %v4797 = vpack.c.b16 %v4045, %v4037
    %v4798 = vpack.c.b16 %v4046, %v4038
    %v4799 = vpack.c.b16 %v4047, %v4039
    %v4800 = vpack.c.b16 %v4048, %v4040
    %v4801 = vpack.c.b16 %v4057, %v4049
    %v4802 = vpack.c.b16 %v4058, %v4050
    %v4803 = vpack.c.b16 %v4059, %v4051
    %v4804 = vpack.c.b16 %v4060, %v4052
    %v4805 = vpack.c.b16 %v4061, %v4053
    %v4806 = vpack.c.b16 %v4062, %v4054
    %v4807 = vpack.c.b16 %v4063, %v4055
    %v4808 = vpack.c.b16 %v4064, %v4056
    %v4809 = vpack.c.b16 %v4073, %v4065
    %v4810 = vpack.c.b16 %v4074, %v4066
    %v4811 = vpack.c.b16 %v4075, %v4067
    %v4812 = vpack.c.b16 %v4076, %v4068
    %v4813 = vpack.c.b16 %v4077, %v4069
    %v4814 = vpack.c.b16 %v4078, %v4070
    %v4815 = vpack.c.b16 %v4079, %v4071
    %v4816 = vpack.c.b16 %v4080, %v4072
    %v4817 = vpack.c.b16 %v4089, %v4081
    %v4818 = vpack.c.b16 %v4090, %v4082
    %v4819 = vpack.c.b16 %v4091, %v4083
    %v4820 = vpack.c.b16 %v4092, %v4084
    %v4821 = vpack.c.b16 %v4093, %v4085
    %v4822 = vpack.c.b16 %v4094, %v4086
    %v4823 = vpack.c.b16 %v4095, %v4087
    %v4824 = vpack.c.b16 %v4096, %v4088
    %v4825 = vpack.c.b16 %v4105, %v4097
    %v4826 = vpack.c.b16 %v4106, %v4098
    %v4827 = vpack.c.b16 %v4107, %v4099
    %v4828 = vpack.c.b16 %v4108, %v4100
    %v4829 = vpack.c.b16 %v4109, %v4101
    %v4830 = vpack.c.b16 %v4110, %v4102
    %v4831 = vpack.c.b16 %v4111, %v4103
    %v4832 = vpack.c.b16 %v4112, %v4104
    %v4833 = vpack.c.b16 %v4121, %v4113
    %v4834 = vpack.c.b16 %v4122, %v4114
    %v4835 = vpack.c.b16 %v4123, %v4115
    %v4836 = vpack.c.b16 %v4124, %v4116
    %v4837 = vpack.c.b16 %v4125, %v4117
    %v4838 = vpack.c.b16 %v4126, %v4118
    %v4839 = vpack.c.b16 %v4127, %v4119
    %v4840 = vpack.c.b16 %v4128, %v4120
    %v4841 = vpack.c.b16 %v4137, %v4129
    %v4842 = vpack.c.b16 %v4138, %v4130
    %v4843 = vpack.c.b16 %v4139, %v4131
    %v4844 = vpack.c.b16 %v4140, %v4132
    %v4845 = vpack.c.b16 %v4141, %v4133
    %v4846 = vpack.c.b16 %v4142, %v4134
    %v4847 = vpack.c.b16 %v4143, %v4135
    %v4848 = vpack.c.b16 %v4144, %v4136
    %v4849 = vpack.c.b16 %v4153, %v4145
    %v4850 = vpack.c.b16 %v4154, %v4146
    %v4851 = vpack.c.b16 %v4155, %v4147
    %v4852 = vpack.c.b16 %v4156, %v4148
    %v4853 = vpack.c.b16 %v4157, %v4149
    %v4854 = vpack.c.b16 %v4158, %v4150
    %v4855 = vpack.c.b16 %v4159, %v4151
    %v4856 = vpack.c.b16 %v4160, %v4152
    %v4857 = vpack.c.b16 %v4169, %v4161
    %v4858 = vpack.c.b16 %v4170, %v4162
    %v4859 = vpack.c.b16 %v4171, %v4163
    %v4860 = vpack.c.b16 %v4172, %v4164
    %v4861 = vpack.c.b16 %v4173, %v4165
    %v4862 = vpack.c.b16 %v4174, %v4166
    %v4863 = vpack.c.b16 %v4175, %v4167
    %v4864 = vpack.c.b16 %v4176, %v4168
    %v4865 = vpack.c.b16 %v4185, %v4177
    %v4866 = vpack.c.b16 %v4186, %v4178
    %v4867 = vpack.c.b16 %v4187, %v4179
    %v4868 = vpack.c.b16 %v4188, %v4180
    %v4869 = vpack.c.b16 %v4189, %v4181
    %v4870 = vpack.c.b16 %v4190, %v4182
    %v4871 = vpack.c.b16 %v4191, %v4183
    %v4872 = vpack.c.b16 %v4192, %v4184
    %v4873 = vpack.c.b16 %v4201, %v4193
    %v4874 = vpack.c.b16 %v4202, %v4194
    %v4875 = vpack.c.b16 %v4203, %v4195
    %v4876 = vpack.c.b16 %v4204, %v4196
    %v4877 = vpack.c.b16 %v4205, %v4197
    %v4878 = vpack.c.b16 %v4206, %v4198
    %v4879 = vpack.c.b16 %v4207, %v4199
    %v4880 = vpack.c.b16 %v4208, %v4200
    %v4881 = vpack.c.b16 %v4217, %v4209
    %v4882 = vpack.c.b16 %v4218, %v4210
    %v4883 = vpack.c.b16 %v4219, %v4211
    %v4884 = vpack.c.b16 %v4220, %v4212
    %v4885 = vpack.c.b16 %v4221, %v4213
    %v4886 = vpack.c.b16 %v4222, %v4214
    %v4887 = vpack.c.b16 %v4223, %v4215
    %v4888 = vpack.c.b16 %v4224, %v4216
    %v4889 = vpack.c.b16 %v4233, %v4225
    %v4890 = vpack.c.b16 %v4234, %v4226
    %v4891 = vpack.c.b16 %v4235, %v4227
    %v4892 = vpack.c.b16 %v4236, %v4228
    %v4893 = vpack.c.b16 %v4237, %v4229
    %v4894 = vpack.c.b16 %v4238, %v4230
    %v4895 = vpack.c.b16 %v4239, %v4231
    %v4896 = vpack.c.b16 %v4240, %v4232
    %v4897 = vpack.c.b16 %v4249, %v4241
    %v4898 = vpack.c.b16 %v4250, %v4242
    %v4899 = vpack.c.b16 %v4251, %v4243
    %v4900 = vpack.c.b16 %v4252, %v4244
    %v4901 = vpack.c.b16 %v4253, %v4245
    %v4902 = vpack.c.b16 %v4254, %v4246
    %v4903 = vpack.c.b16 %v4255, %v4247
    %v4904 = vpack.c.b16 %v4256, %v4248
    %v4905 = vpack.c.b16 %v4265, %v4257
    %v4906 = vpack.c.b16 %v4266, %v4258
    %v4907 = vpack.c.b16 %v4267, %v4259
    %v4908 = vpack.c.b16 %v4268, %v4260
    %v4909 = vpack.c.b16 %v4269, %v4261
    %v4910 = vpack.c.b16 %v4270, %v4262
    %v4911 = vpack.c.b16 %v4271, %v4263
    %v4912 = vpack.c.b16 %v4272, %v4264
    %v4913 = vpack.c.b16 %v4281, %v4273
    %v4914 = vpack.c.b16 %v4282, %v4274
    %v4915 = vpack.c.b16 %v4283, %v4275
    %v4916 = vpack.c.b16 %v4284, %v4276
    %v4917 = vpack.c.b16 %v4285, %v4277
    %v4918 = vpack.c.b16 %v4286, %v4278
    %v4919 = vpack.c.b16 %v4287, %v4279
    %v4920 = vpack.c.b16 %v4288, %v4280
    %v4921 = vpack.c.b16 %v4297, %v4289
    %v4922 = vpack.c.b16 %v4298, %v4290
    %v4923 = vpack.c.b16 %v4299, %v4291
    %v4924 = vpack.c.b16 %v4300, %v4292
    %v4925 = vpack.c.b16 %v4301, %v4293
    %v4926 = vpack.c.b16 %v4302, %v4294
    %v4927 = vpack.c.b16 %v4303, %v4295
    %v4928 = vpack.c.b16 %v4304, %v4296
    %v4929 = vpack.c.b16 %v4313, %v4305
    %v4930 = vpack.c.b16 %v4314, %v4306
    %v4931 = vpack.c.b16 %v4315, %v4307
    %v4932 = vpack.c.b16 %v4316, %v4308
    %v4933 = vpack.c.b16 %v4317, %v4309
    %v4934 = vpack.c.b16 %v4318, %v4310
    %v4935 = vpack.c.b16 %v4319, %v4311
    %v4936 = vpack.c.b16 %v4320, %v4312
    %v4937 = vpack.c.b16 %v4329, %v4321
    %v4938 = vpack.c.b16 %v4330, %v4322
    %v4939 = vpack.c.b16 %v4331, %v4323
    %v4940 = vpack.c.b16 %v4332, %v4324
    %v4941 = vpack.c.b16 %v4333, %v4325
    %v4942 = vpack.c.b16 %v4334, %v4326
    %v4943 = vpack.c.b16 %v4335, %v4327
    %v4944 = vpack.c.b16 %v4336, %v4328
    %v4945 = vpack.c.b16 %v4345, %v4337
    %v4946 = vpack.c.b16 %v4346, %v4338
    %v4947 = vpack.c.b16 %v4347, %v4339
    %v4948 = vpack.c.b16 %v4348, %v4340
    %v4949 = vpack.c.b16 %v4349, %v4341
    %v4950 = vpack.c.b16 %v4350, %v4342
    %v4951 = vpack.c.b16 %v4351, %v4343
    %v4952 = vpack.c.b16 %v4352, %v4344
    %v4953 = vpack.c.b16 %v4361, %v4353
    %v4954 = vpack.c.b16 %v4362, %v4354
    %v4955 = vpack.c.b16 %v4363, %v4355
    %v4956 = vpack.c.b16 %v4364, %v4356
    %v4957 = vpack.c.b16 %v4365, %v4357
    %v4958 = vpack.c.b16 %v4366, %v4358
    %v4959 = vpack.c.b16 %v4367, %v4359
    %v4960 = vpack.c.b16 %v4368, %v4360
    %v4961 = vpack.c.b16 %v4377, %v4369
    %v4962 = vpack.c.b16 %v4378, %v4370
    %v4963 = vpack.c.b16 %v4379, %v4371
    %v4964 = vpack.c.b16 %v4380, %v4372
    %v4965 = vpack.c.b16 %v4381, %v4373
    %v4966 = vpack.c.b16 %v4382, %v4374
    %v4967 = vpack.c.b16 %v4383, %v4375
    %v4968 = vpack.c.b16 %v4384, %v4376
    %v4969 = vpack.c.b16 %v4393, %v4385
    %v4970 = vpack.c.b16 %v4394, %v4386
    %v4971 = vpack.c.b16 %v4395, %v4387
    %v4972 = vpack.c.b16 %v4396, %v4388
    %v4973 = vpack.c.b16 %v4397, %v4389
    %v4974 = vpack.c.b16 %v4398, %v4390
    %v4975 = vpack.c.b16 %v4399, %v4391
    %v4976 = vpack.c.b16 %v4400, %v4392
    %v4977 = vpack.c.b16 %v4409, %v4401
    %v4978 = vpack.c.b16 %v4410, %v4402
    %v4979 = vpack.c.b16 %v4411, %v4403
    %v4980 = vpack.c.b16 %v4412, %v4404
    %v4981 = vpack.c.b16 %v4413, %v4405
    %v4982 = vpack.c.b16 %v4414, %v4406
    %v4983 = vpack.c.b16 %v4415, %v4407
    %v4984 = vpack.c.b16 %v4416, %v4408
    %v4985 = vpack.c.b16 %v4425, %v4417
    %v4986 = vpack.c.b16 %v4426, %v4418
    %v4987 = vpack.c.b16 %v4427, %v4419
    %v4988 = vpack.c.b16 %v4428, %v4420
    %v4989 = vpack.c.b16 %v4429, %v4421
    %v4990 = vpack.c.b16 %v4430, %v4422
    %v4991 = vpack.c.b16 %v4431, %v4423
    %v4992 = vpack.c.b16 %v4432, %v4424
    %v4993 = vpack.c.b16 %v4441, %v4433
    %v4994 = vpack.c.b16 %v4442, %v4434
    %v4995 = vpack.c.b16 %v4443, %v4435
    %v4996 = vpack.c.b16 %v4444, %v4436
    %v4997 = vpack.c.b16 %v4445, %v4437
    %v4998 = vpack.c.b16 %v4446, %v4438
    %v4999 = vpack.c.b16 %v4447, %v4439
    %v5000 = vpack.c.b16 %v4448, %v4440
    %v5001 = vpack.c.b16 %v4457, %v4449
    %v5002 = vpack.c.b16 %v4458, %v4450
    %v5003 = vpack.c.b16 %v4459, %v4451
    %v5004 = vpack.c.b16 %v4460, %v4452
    %v5005 = vpack.c.b16 %v4461, %v4453
    %v5006 = vpack.c.b16 %v4462, %v4454
    %v5007 = vpack.c.b16 %v4463, %v4455
    %v5008 = vpack.c.b16 %v4464, %v4456
    %v5009 = vpack.c.b16 %v4473, %v4465
    %v5010 = vpack.c.b16 %v4474, %v4466
    %v5011 = vpack.c.b16 %v4475, %v4467
    %v5012 = vpack.c.b16 %v4476, %v4468
    %v5013 = vpack.c.b16 %v4477, %v4469
    %v5014 = vpack.c.b16 %v4478, %v4470
    %v5015 = vpack.c.b16 %v4479, %v4471
    %v5016 = vpack.c.b16 %v4480, %v4472
    %v5017 = vpack.c.b16 %v4489, %v4481
    %v5018 = vpack.c.b16 %v4490, %v4482
    %v5019 = vpack.c.b16 %v4491, %v4483
    %v5020 = vpack.c.b16 %v4492, %v4484
    %v5021 = vpack.c.b16 %v4493, %v4485
    %v5022 = vpack.c.b16 %v4494, %v4486
    %v5023 = vpack.c.b16 %v4495, %v4487
    %v5024 = vpack.c.b16 %v4496, %v4488
    %v5025 = vpack.c.b16 %v4505, %v4497
    %v5026 = vpack.c.b16 %v4506, %v4498
    %v5027 = vpack.c.b16 %v4507, %v4499
    %v5028 = vpack.c.b16 %v4508, %v4500
    %v5029 = vpack.c.b16 %v4509, %v4501
    %v5030 = vpack.c.b16 %v4510, %v4502
    %v5031 = vpack.c.b16 %v4511, %v4503
    %v5032 = vpack.c.b16 %v4512, %v4504
    %v5033 = vpack.c.b16 %v4521, %v4513
    %v5034 = vpack.c.b16 %v4522, %v4514
    %v5035 = vpack.c.b16 %v4523, %v4515
    %v5036 = vpack.c.b16 %v4524, %v4516
    %v5037 = vpack.c.b16 %v4525, %v4517
    %v5038 = vpack.c.b16 %v4526, %v4518
    %v5039 = vpack.c.b16 %v4527, %v4519
    %v5040 = vpack.c.b16 %v4528, %v4520
    %5553 = vmatprep.subr.bf16.mxu0 %v4586
    %5554 = vmatpush1.bf16.msra.mxu0 %v4585
    %5555 = vmatprep.subr.bf16.mxu0 %v4578
    %5556 = vmatpush1.bf16.msra.mxu0 %v4577
    %5557 = vmatprep.subr.bf16.mxu0 %v4570
    %5558 = vmatpush1.bf16.msra.mxu0 %v4569
    %5559 = vmatprep.subr.bf16.mxu0 %v4562
    %5560 = vmatpush1.bf16.msra.mxu0 %v4561
    %5561 = vmatprep.subr.bf16.mxu0 %v4554
    %5562 = vmatpush1.bf16.msra.mxu0 %v4553
    %5563 = vmatprep.subr.bf16.mxu0 %v4546
    %5564 = vmatpush1.bf16.msra.mxu0 %v4545
    %5565 = vmatprep.subr.bf16.mxu0 %v4538
    %5566 = vmatpush1.bf16.msra.mxu0 %v4537
    %5567 = vmatprep.subr.bf16.mxu0 %v4530
    %5568 = vmatpush1.bf16.msra.mxu0 %v4529
    %5569 = vmatprep.subr.bf16.mxu0 %v4650
    %5570 = vmatpush2.bf16.msra.mxu0 %v4649
    %5571 = vmatprep.subr.bf16.mxu0 %v4642
    %5572 = vmatpush2.bf16.msra.mxu0 %v4641
    %5573 = vmatprep.subr.bf16.mxu0 %v4634
    %5574 = vmatpush2.bf16.msra.mxu0 %v4633
    %5575 = vmatprep.subr.bf16.mxu0 %v4626
    %5576 = vmatpush2.bf16.msra.mxu0 %v4625
    %5577 = vmatprep.subr.bf16.mxu0 %v4618
    %5578 = vmatpush2.bf16.msra.mxu0 %v4617
    %5579 = vmatprep.subr.bf16.mxu0 %v4610
    %5580 = vmatpush2.bf16.msra.mxu0 %v4609
    %5581 = vmatprep.subr.bf16.mxu0 %v4602
    %5582 = vmatpush2.bf16.msra.mxu0 %v4601
    %5583 = vmatprep.subr.bf16.mxu0 %v4594
    %5584 = vmatpush2.bf16.msra.mxu0 %v4593
    %5585 = vmatprep.mubr.bf16.mxu0 %v2432
    %5586 = vmatmul.mubr.bf16.gmra.mxu0 %v2431
    %v5587 = vpop.f32.mrf.mxu0
    %v5588 = vadd.f32 %v2956, %v5587
    %v5589 = vpop.f32.mrf.mxu0
    %v5590 = vadd.f32 %v2960, %v5589
    %v5591 = vpop.f32.mrf.mxu0
    %v5592 = vadd.f32 %v2956, %v5591
    %v5593 = vpop.f32.mrf.mxu0
    %v5594 = vadd.f32 %v2960, %v5593
    %5595 = vdwg.mxu0
    %5596 = vmatprep.subr.bf16.mxu0 %v4714
    %5597 = vmatpush1.bf16.msra.mxu0 %v4713
    %5598 = vmatprep.subr.bf16.mxu0 %v4706
    %5599 = vmatpush1.bf16.msra.mxu0 %v4705
    %5600 = vmatprep.subr.bf16.mxu0 %v4698
    %5601 = vmatpush1.bf16.msra.mxu0 %v4697
    %5602 = vmatprep.subr.bf16.mxu0 %v4690
    %5603 = vmatpush1.bf16.msra.mxu0 %v4689
    %5604 = vmatprep.subr.bf16.mxu0 %v4682
    %5605 = vmatpush1.bf16.msra.mxu0 %v4681
    %5606 = vmatprep.subr.bf16.mxu0 %v4674
    %5607 = vmatpush1.bf16.msra.mxu0 %v4673
    %5608 = vmatprep.subr.bf16.mxu0 %v4666
    %5609 = vmatpush1.bf16.msra.mxu0 %v4665
    %5610 = vmatprep.subr.bf16.mxu0 %v4658
    %5611 = vmatpush1.bf16.msra.mxu0 %v4657
    %5612 = vmatprep.subr.bf16.mxu0 %v4778
    %5613 = vmatpush2.bf16.msra.mxu0 %v4777
    %5614 = vmatprep.subr.bf16.mxu0 %v4770
    %5615 = vmatpush2.bf16.msra.mxu0 %v4769
    %5616 = vmatprep.subr.bf16.mxu0 %v4762
    %5617 = vmatpush2.bf16.msra.mxu0 %v4761
    %5618 = vmatprep.subr.bf16.mxu0 %v4754
    %5619 = vmatpush2.bf16.msra.mxu0 %v4753
    %5620 = vmatprep.subr.bf16.mxu0 %v4746
    %5621 = vmatpush2.bf16.msra.mxu0 %v4745
    %5622 = vmatprep.subr.bf16.mxu0 %v4738
    %5623 = vmatpush2.bf16.msra.mxu0 %v4737
    %5624 = vmatprep.subr.bf16.mxu0 %v4730
    %5625 = vmatpush2.bf16.msra.mxu0 %v4729
    %5626 = vmatprep.subr.bf16.mxu0 %v4722
    %5627 = vmatpush2.bf16.msra.mxu0 %v4721
    %5628 = vmatprep.mubr.bf16.mxu0 %v2434
    %5629 = vmatmul.mubr.bf16.gmra.mxu0 %v2433
    %v5630 = vpop.f32.mrf.mxu0
    %v5631 = vadd.f32 %v5588, %v5630
    %v5632 = vpop.f32.mrf.mxu0
    %v5633 = vadd.f32 %v5590, %v5632
    %v5634 = vpop.f32.mrf.mxu0
    %v5635 = vadd.f32 %v5592, %v5634
    %v5636 = vpop.f32.mrf.mxu0
    %v5637 = vadd.f32 %v5594, %v5636
    %5638 = vdwg.mxu0
    %5639 = vmatprep.subr.bf16.mxu0 %v4842
    %5640 = vmatpush1.bf16.msra.mxu0 %v4841
    %5641 = vmatprep.subr.bf16.mxu0 %v4834
    %5642 = vmatpush1.bf16.msra.mxu0 %v4833
    %5643 = vmatprep.subr.bf16.mxu0 %v4826
    %5644 = vmatpush1.bf16.msra.mxu0 %v4825
    %5645 = vmatprep.subr.bf16.mxu0 %v4818
    %5646 = vmatpush1.bf16.msra.mxu0 %v4817
    %5647 = vmatprep.subr.bf16.mxu0 %v4810
    %5648 = vmatpush1.bf16.msra.mxu0 %v4809
    %5649 = vmatprep.subr.bf16.mxu0 %v4802
    %5650 = vmatpush1.bf16.msra.mxu0 %v4801
    %5651 = vmatprep.subr.bf16.mxu0 %v4794
    %5652 = vmatpush1.bf16.msra.mxu0 %v4793
    %5653 = vmatprep.subr.bf16.mxu0 %v4786
    %5654 = vmatpush1.bf16.msra.mxu0 %v4785
    %5655 = vmatprep.subr.bf16.mxu0 %v4906
    %5656 = vmatpush2.bf16.msra.mxu0 %v4905
    %5657 = vmatprep.subr.bf16.mxu0 %v4898
    %5658 = vmatpush2.bf16.msra.mxu0 %v4897
    %5659 = vmatprep.subr.bf16.mxu0 %v4890
    %5660 = vmatpush2.bf16.msra.mxu0 %v4889
    %5661 = vmatprep.subr.bf16.mxu0 %v4882
    %5662 = vmatpush2.bf16.msra.mxu0 %v4881
    %5663 = vmatprep.subr.bf16.mxu0 %v4874
    %5664 = vmatpush2.bf16.msra.mxu0 %v4873
    %5665 = vmatprep.subr.bf16.mxu0 %v4866
    %5666 = vmatpush2.bf16.msra.mxu0 %v4865
    %5667 = vmatprep.subr.bf16.mxu0 %v4858
    %5668 = vmatpush2.bf16.msra.mxu0 %v4857
    %5669 = vmatprep.subr.bf16.mxu0 %v4850
    %5670 = vmatpush2.bf16.msra.mxu0 %v4849
    %5671 = vmatprep.mubr.bf16.mxu0 %v2436
    %5672 = vmatmul.mubr.bf16.gmra.mxu0 %v2435
    %v5673 = vpop.f32.mrf.mxu0
    %v5674 = vadd.f32 %v5631, %v5673
    %v5675 = vpop.f32.mrf.mxu0
    %v5676 = vadd.f32 %v5633, %v5675
    %v5677 = vpop.f32.mrf.mxu0
    %v5678 = vadd.f32 %v5635, %v5677
    %v5679 = vpop.f32.mrf.mxu0
    %v5680 = vadd.f32 %v5637, %v5679
    %5681 = vdwg.mxu0
    %5682 = vmatprep.subr.bf16.mxu0 %v4970
    %5683 = vmatpush1.bf16.msra.mxu0 %v4969
    %5684 = vmatprep.subr.bf16.mxu0 %v4962
    %5685 = vmatpush1.bf16.msra.mxu0 %v4961
    %5686 = vmatprep.subr.bf16.mxu0 %v4954
    %5687 = vmatpush1.bf16.msra.mxu0 %v4953
    %5688 = vmatprep.subr.bf16.mxu0 %v4946
    %5689 = vmatpush1.bf16.msra.mxu0 %v4945
    %5690 = vmatprep.subr.bf16.mxu0 %v4938
    %5691 = vmatpush1.bf16.msra.mxu0 %v4937
    %5692 = vmatprep.subr.bf16.mxu0 %v4930
    %5693 = vmatpush1.bf16.msra.mxu0 %v4929
    %5694 = vmatprep.subr.bf16.mxu0 %v4922
    %5695 = vmatpush1.bf16.msra.mxu0 %v4921
    %5696 = vmatprep.subr.bf16.mxu0 %v4914
    %5697 = vmatpush1.bf16.msra.mxu0 %v4913
    %5698 = vmatprep.subr.bf16.mxu0 %v5034
    %5699 = vmatpush2.bf16.msra.mxu0 %v5033
    %5700 = vmatprep.subr.bf16.mxu0 %v5026
    %5701 = vmatpush2.bf16.msra.mxu0 %v5025
    %5702 = vmatprep.subr.bf16.mxu0 %v5018
    %5703 = vmatpush2.bf16.msra.mxu0 %v5017
    %5704 = vmatprep.subr.bf16.mxu0 %v5010
    %5705 = vmatpush2.bf16.msra.mxu0 %v5009
    %5706 = vmatprep.subr.bf16.mxu0 %v5002
    %5707 = vmatpush2.bf16.msra.mxu0 %v5001
    %5708 = vmatprep.subr.bf16.mxu0 %v4994
    %5709 = vmatpush2.bf16.msra.mxu0 %v4993
    %5710 = vmatprep.subr.bf16.mxu0 %v4986
    %5711 = vmatpush2.bf16.msra.mxu0 %v4985
    %5712 = vmatprep.subr.bf16.mxu0 %v4978
    %5713 = vmatpush2.bf16.msra.mxu0 %v4977
    %5714 = vmatprep.mubr.bf16.mxu0 %v2438
    %5715 = vmatmul.mubr.bf16.gmra.mxu0 %v2437
    %v5716 = vpop.f32.mrf.mxu0
    %v5717 = vadd.f32 %v5674, %v5716
    %v5718 = vpop.f32.mrf.mxu0
    %v5719 = vadd.f32 %v5676, %v5718
    %v5720 = vpop.f32.mrf.mxu0
    %v5721 = vadd.f32 %v5678, %v5720
    %v5722 = vpop.f32.mrf.mxu0
    %v5723 = vadd.f32 %v5680, %v5722
    %5724 = vdwg.mxu0
    %5725 = vmatprep.subr.bf16.mxu0 %v4588
    %5726 = vmatpush1.bf16.msra.mxu0 %v4587
    %5727 = vmatprep.subr.bf16.mxu0 %v4580
    %5728 = vmatpush1.bf16.msra.mxu0 %v4579
    %5729 = vmatprep.subr.bf16.mxu0 %v4572
    %5730 = vmatpush1.bf16.msra.mxu0 %v4571
    %5731 = vmatprep.subr.bf16.mxu0 %v4564
    %5732 = vmatpush1.bf16.msra.mxu0 %v4563
    %5733 = vmatprep.subr.bf16.mxu0 %v4556
    %5734 = vmatpush1.bf16.msra.mxu0 %v4555
    %5735 = vmatprep.subr.bf16.mxu0 %v4548
    %5736 = vmatpush1.bf16.msra.mxu0 %v4547
    %5737 = vmatprep.subr.bf16.mxu0 %v4540
    %5738 = vmatpush1.bf16.msra.mxu0 %v4539
    %5739 = vmatprep.subr.bf16.mxu0 %v4532
    %5740 = vmatpush1.bf16.msra.mxu0 %v4531
    %5741 = vmatprep.subr.bf16.mxu0 %v4652
    %5742 = vmatpush2.bf16.msra.mxu0 %v4651
    %5743 = vmatprep.subr.bf16.mxu0 %v4644
    %5744 = vmatpush2.bf16.msra.mxu0 %v4643
    %5745 = vmatprep.subr.bf16.mxu0 %v4636
    %5746 = vmatpush2.bf16.msra.mxu0 %v4635
    %5747 = vmatprep.subr.bf16.mxu0 %v4628
    %5748 = vmatpush2.bf16.msra.mxu0 %v4627
    %5749 = vmatprep.subr.bf16.mxu0 %v4620
    %5750 = vmatpush2.bf16.msra.mxu0 %v4619
    %5751 = vmatprep.subr.bf16.mxu0 %v4612
    %5752 = vmatpush2.bf16.msra.mxu0 %v4611
    %5753 = vmatprep.subr.bf16.mxu0 %v4604
    %5754 = vmatpush2.bf16.msra.mxu0 %v4603
    %5755 = vmatprep.subr.bf16.mxu0 %v4596
    %5756 = vmatpush2.bf16.msra.mxu0 %v4595
    %5757 = vmatprep.mubr.bf16.mxu0 %v2432
    %5758 = vmatmul.mubr.bf16.gmra.mxu0 %v2431
    %v5759 = vpop.f32.mrf.mxu0
    %v5760 = vadd.f32 %v2964, %v5759
    %v5761 = vpop.f32.mrf.mxu0
    %v5762 = vadd.f32 %v2968, %v5761
    %v5763 = vpop.f32.mrf.mxu0
    %v5764 = vadd.f32 %v2964, %v5763
    %v5765 = vpop.f32.mrf.mxu0
    %v5766 = vadd.f32 %v2968, %v5765
    %5767 = vdwg.mxu0
    %5768 = vmatprep.subr.bf16.mxu0 %v4716
    %5769 = vmatpush1.bf16.msra.mxu0 %v4715
    %5770 = vmatprep.subr.bf16.mxu0 %v4708
    %5771 = vmatpush1.bf16.msra.mxu0 %v4707
    %5772 = vmatprep.subr.bf16.mxu0 %v4700
    %5773 = vmatpush1.bf16.msra.mxu0 %v4699
    %5774 = vmatprep.subr.bf16.mxu0 %v4692
    %5775 = vmatpush1.bf16.msra.mxu0 %v4691
    %5776 = vmatprep.subr.bf16.mxu0 %v4684
    %5777 = vmatpush1.bf16.msra.mxu0 %v4683
    %5778 = vmatprep.subr.bf16.mxu0 %v4676
    %5779 = vmatpush1.bf16.msra.mxu0 %v4675
    %5780 = vmatprep.subr.bf16.mxu0 %v4668
    %5781 = vmatpush1.bf16.msra.mxu0 %v4667
    %5782 = vmatprep.subr.bf16.mxu0 %v4660
    %5783 = vmatpush1.bf16.msra.mxu0 %v4659
    %5784 = vmatprep.subr.bf16.mxu0 %v4780
    %5785 = vmatpush2.bf16.msra.mxu0 %v4779
    %5786 = vmatprep.subr.bf16.mxu0 %v4772
    %5787 = vmatpush2.bf16.msra.mxu0 %v4771
    %5788 = vmatprep.subr.bf16.mxu0 %v4764
    %5789 = vmatpush2.bf16.msra.mxu0 %v4763
    %5790 = vmatprep.subr.bf16.mxu0 %v4756
    %5791 = vmatpush2.bf16.msra.mxu0 %v4755
    %5792 = vmatprep.subr.bf16.mxu0 %v4748
    %5793 = vmatpush2.bf16.msra.mxu0 %v4747
    %5794 = vmatprep.subr.bf16.mxu0 %v4740
    %5795 = vmatpush2.bf16.msra.mxu0 %v4739
    %5796 = vmatprep.subr.bf16.mxu0 %v4732
    %5797 = vmatpush2.bf16.msra.mxu0 %v4731
    %5798 = vmatprep.subr.bf16.mxu0 %v4724
    %5799 = vmatpush2.bf16.msra.mxu0 %v4723
    %5800 = vmatprep.mubr.bf16.mxu0 %v2434
    %5801 = vmatmul.mubr.bf16.gmra.mxu0 %v2433
    %v5802 = vpop.f32.mrf.mxu0
    %v5803 = vadd.f32 %v5760, %v5802
    %v5804 = vpop.f32.mrf.mxu0
    %v5805 = vadd.f32 %v5762, %v5804
    %v5806 = vpop.f32.mrf.mxu0
    %v5807 = vadd.f32 %v5764, %v5806
    %v5808 = vpop.f32.mrf.mxu0
    %v5809 = vadd.f32 %v5766, %v5808
    %5810 = vdwg.mxu0
    %5811 = vmatprep.subr.bf16.mxu0 %v4844
    %5812 = vmatpush1.bf16.msra.mxu0 %v4843
    %5813 = vmatprep.subr.bf16.mxu0 %v4836
    %5814 = vmatpush1.bf16.msra.mxu0 %v4835
    %5815 = vmatprep.subr.bf16.mxu0 %v4828
    %5816 = vmatpush1.bf16.msra.mxu0 %v4827
    %5817 = vmatprep.subr.bf16.mxu0 %v4820
    %5818 = vmatpush1.bf16.msra.mxu0 %v4819
    %5819 = vmatprep.subr.bf16.mxu0 %v4812
    %5820 = vmatpush1.bf16.msra.mxu0 %v4811
    %5821 = vmatprep.subr.bf16.mxu0 %v4804
    %5822 = vmatpush1.bf16.msra.mxu0 %v4803
    %5823 = vmatprep.subr.bf16.mxu0 %v4796
    %5824 = vmatpush1.bf16.msra.mxu0 %v4795
    %5825 = vmatprep.subr.bf16.mxu0 %v4788
    %5826 = vmatpush1.bf16.msra.mxu0 %v4787
    %5827 = vmatprep.subr.bf16.mxu0 %v4908
    %5828 = vmatpush2.bf16.msra.mxu0 %v4907
    %5829 = vmatprep.subr.bf16.mxu0 %v4900
    %5830 = vmatpush2.bf16.msra.mxu0 %v4899
    %5831 = vmatprep.subr.bf16.mxu0 %v4892
    %5832 = vmatpush2.bf16.msra.mxu0 %v4891
    %5833 = vmatprep.subr.bf16.mxu0 %v4884
    %5834 = vmatpush2.bf16.msra.mxu0 %v4883
    %5835 = vmatprep.subr.bf16.mxu0 %v4876
    %5836 = vmatpush2.bf16.msra.mxu0 %v4875
    %5837 = vmatprep.subr.bf16.mxu0 %v4868
    %5838 = vmatpush2.bf16.msra.mxu0 %v4867
    %5839 = vmatprep.subr.bf16.mxu0 %v4860
    %5840 = vmatpush2.bf16.msra.mxu0 %v4859
    %5841 = vmatprep.subr.bf16.mxu0 %v4852
    %5842 = vmatpush2.bf16.msra.mxu0 %v4851
    %5843 = vmatprep.mubr.bf16.mxu0 %v2436
    %5844 = vmatmul.mubr.bf16.gmra.mxu0 %v2435
    %v5845 = vpop.f32.mrf.mxu0
    %v5846 = vadd.f32 %v5803, %v5845
    %v5847 = vpop.f32.mrf.mxu0
    %v5848 = vadd.f32 %v5805, %v5847
    %v5849 = vpop.f32.mrf.mxu0
    %v5850 = vadd.f32 %v5807, %v5849
    %v5851 = vpop.f32.mrf.mxu0
    %v5852 = vadd.f32 %v5809, %v5851
    %5853 = vdwg.mxu0
    %5854 = vmatprep.subr.bf16.mxu0 %v4972
    %5855 = vmatpush1.bf16.msra.mxu0 %v4971
    %5856 = vmatprep.subr.bf16.mxu0 %v4964
    %5857 = vmatpush1.bf16.msra.mxu0 %v4963
    %5858 = vmatprep.subr.bf16.mxu0 %v4956
    %5859 = vmatpush1.bf16.msra.mxu0 %v4955
    %5860 = vmatprep.subr.bf16.mxu0 %v4948
    %5861 = vmatpush1.bf16.msra.mxu0 %v4947
    %5862 = vmatprep.subr.bf16.mxu0 %v4940
    %5863 = vmatpush1.bf16.msra.mxu0 %v4939
    %5864 = vmatprep.subr.bf16.mxu0 %v4932
    %5865 = vmatpush1.bf16.msra.mxu0 %v4931
    %5866 = vmatprep.subr.bf16.mxu0 %v4924
    %5867 = vmatpush1.bf16.msra.mxu0 %v4923
    %5868 = vmatprep.subr.bf16.mxu0 %v4916
    %5869 = vmatpush1.bf16.msra.mxu0 %v4915
    %5870 = vmatprep.subr.bf16.mxu0 %v5036
    %5871 = vmatpush2.bf16.msra.mxu0 %v5035
    %5872 = vmatprep.subr.bf16.mxu0 %v5028
    %5873 = vmatpush2.bf16.msra.mxu0 %v5027
    %5874 = vmatprep.subr.bf16.mxu0 %v5020
    %5875 = vmatpush2.bf16.msra.mxu0 %v5019
    %5876 = vmatprep.subr.bf16.mxu0 %v5012
    %5877 = vmatpush2.bf16.msra.mxu0 %v5011
    %5878 = vmatprep.subr.bf16.mxu0 %v5004
    %5879 = vmatpush2.bf16.msra.mxu0 %v5003
    %5880 = vmatprep.subr.bf16.mxu0 %v4996
    %5881 = vmatpush2.bf16.msra.mxu0 %v4995
    %5882 = vmatprep.subr.bf16.mxu0 %v4988
    %5883 = vmatpush2.bf16.msra.mxu0 %v4987
    %5884 = vmatprep.subr.bf16.mxu0 %v4980
    %5885 = vmatpush2.bf16.msra.mxu0 %v4979
    %5886 = vmatprep.mubr.bf16.mxu0 %v2438
    %5887 = vmatmul.mubr.bf16.gmra.mxu0 %v2437
    %v5888 = vpop.f32.mrf.mxu0
    %v5889 = vadd.f32 %v5846, %v5888
    %v5890 = vpop.f32.mrf.mxu0
    %v5891 = vadd.f32 %v5848, %v5890
    %v5892 = vpop.f32.mrf.mxu0
    %v5893 = vadd.f32 %v5850, %v5892
    %v5894 = vpop.f32.mrf.mxu0
    %v5895 = vadd.f32 %v5852, %v5894
    %5896 = vdwg.mxu0
    %5897 = vmatprep.subr.bf16.mxu0 %v4590
    %5898 = vmatpush1.bf16.msra.mxu0 %v4589
    %5899 = vmatprep.subr.bf16.mxu0 %v4582
    %5900 = vmatpush1.bf16.msra.mxu0 %v4581
    %5901 = vmatprep.subr.bf16.mxu0 %v4574
    %5902 = vmatpush1.bf16.msra.mxu0 %v4573
    %5903 = vmatprep.subr.bf16.mxu0 %v4566
    %5904 = vmatpush1.bf16.msra.mxu0 %v4565
    %5905 = vmatprep.subr.bf16.mxu0 %v4558
    %5906 = vmatpush1.bf16.msra.mxu0 %v4557
    %5907 = vmatprep.subr.bf16.mxu0 %v4550
    %5908 = vmatpush1.bf16.msra.mxu0 %v4549
    %5909 = vmatprep.subr.bf16.mxu0 %v4542
    %5910 = vmatpush1.bf16.msra.mxu0 %v4541
    %5911 = vmatprep.subr.bf16.mxu0 %v4534
    %5912 = vmatpush1.bf16.msra.mxu0 %v4533
    %5913 = vmatprep.subr.bf16.mxu0 %v4654
    %5914 = vmatpush2.bf16.msra.mxu0 %v4653
    %5915 = vmatprep.subr.bf16.mxu0 %v4646
    %5916 = vmatpush2.bf16.msra.mxu0 %v4645
    %5917 = vmatprep.subr.bf16.mxu0 %v4638
    %5918 = vmatpush2.bf16.msra.mxu0 %v4637
    %5919 = vmatprep.subr.bf16.mxu0 %v4630
    %5920 = vmatpush2.bf16.msra.mxu0 %v4629
    %5921 = vmatprep.subr.bf16.mxu0 %v4622
    %5922 = vmatpush2.bf16.msra.mxu0 %v4621
    %5923 = vmatprep.subr.bf16.mxu0 %v4614
    %5924 = vmatpush2.bf16.msra.mxu0 %v4613
    %5925 = vmatprep.subr.bf16.mxu0 %v4606
    %5926 = vmatpush2.bf16.msra.mxu0 %v4605
    %5927 = vmatprep.subr.bf16.mxu0 %v4598
    %5928 = vmatpush2.bf16.msra.mxu0 %v4597
    %5929 = vmatprep.mubr.bf16.mxu0 %v2432
    %5930 = vmatmul.mubr.bf16.gmra.mxu0 %v2431
    %v5931 = vpop.f32.mrf.mxu0
    %v5932 = vadd.f32 %v2972, %v5931
    %v5933 = vpop.f32.mrf.mxu0
    %v5934 = vadd.f32 %v2976, %v5933
    %v5935 = vpop.f32.mrf.mxu0
    %v5936 = vadd.f32 %v2972, %v5935
    %v5937 = vpop.f32.mrf.mxu0
    %v5938 = vadd.f32 %v2976, %v5937
    %5939 = vdwg.mxu0
    %5940 = vmatprep.subr.bf16.mxu0 %v4718
    %5941 = vmatpush1.bf16.msra.mxu0 %v4717
    %5942 = vmatprep.subr.bf16.mxu0 %v4710
    %5943 = vmatpush1.bf16.msra.mxu0 %v4709
    %5944 = vmatprep.subr.bf16.mxu0 %v4702
    %5945 = vmatpush1.bf16.msra.mxu0 %v4701
    %5946 = vmatprep.subr.bf16.mxu0 %v4694
    %5947 = vmatpush1.bf16.msra.mxu0 %v4693
    %5948 = vmatprep.subr.bf16.mxu0 %v4686
    %5949 = vmatpush1.bf16.msra.mxu0 %v4685
    %5950 = vmatprep.subr.bf16.mxu0 %v4678
    %5951 = vmatpush1.bf16.msra.mxu0 %v4677
    %5952 = vmatprep.subr.bf16.mxu0 %v4670
    %5953 = vmatpush1.bf16.msra.mxu0 %v4669
    %5954 = vmatprep.subr.bf16.mxu0 %v4662
    %5955 = vmatpush1.bf16.msra.mxu0 %v4661
    %5956 = vmatprep.subr.bf16.mxu0 %v4782
    %5957 = vmatpush2.bf16.msra.mxu0 %v4781
    %5958 = vmatprep.subr.bf16.mxu0 %v4774
    %5959 = vmatpush2.bf16.msra.mxu0 %v4773
    %5960 = vmatprep.subr.bf16.mxu0 %v4766
    %5961 = vmatpush2.bf16.msra.mxu0 %v4765
    %5962 = vmatprep.subr.bf16.mxu0 %v4758
    %5963 = vmatpush2.bf16.msra.mxu0 %v4757
    %5964 = vmatprep.subr.bf16.mxu0 %v4750
    %5965 = vmatpush2.bf16.msra.mxu0 %v4749
    %5966 = vmatprep.subr.bf16.mxu0 %v4742
    %5967 = vmatpush2.bf16.msra.mxu0 %v4741
    %5968 = vmatprep.subr.bf16.mxu0 %v4734
    %5969 = vmatpush2.bf16.msra.mxu0 %v4733
    %5970 = vmatprep.subr.bf16.mxu0 %v4726
    %5971 = vmatpush2.bf16.msra.mxu0 %v4725
    %5972 = vmatprep.mubr.bf16.mxu0 %v2434
    %5973 = vmatmul.mubr.bf16.gmra.mxu0 %v2433
    %v5974 = vpop.f32.mrf.mxu0
    %v5975 = vadd.f32 %v5932, %v5974
    %v5976 = vpop.f32.mrf.mxu0
    %v5977 = vadd.f32 %v5934, %v5976
    %v5978 = vpop.f32.mrf.mxu0
    %v5979 = vadd.f32 %v5936, %v5978
    %v5980 = vpop.f32.mrf.mxu0
    %v5981 = vadd.f32 %v5938, %v5980
    %5982 = vdwg.mxu0
    %5983 = vmatprep.subr.bf16.mxu0 %v4846
    %5984 = vmatpush1.bf16.msra.mxu0 %v4845
    %5985 = vmatprep.subr.bf16.mxu0 %v4838
    %5986 = vmatpush1.bf16.msra.mxu0 %v4837
    %5987 = vmatprep.subr.bf16.mxu0 %v4830
    %5988 = vmatpush1.bf16.msra.mxu0 %v4829
    %5989 = vmatprep.subr.bf16.mxu0 %v4822
    %5990 = vmatpush1.bf16.msra.mxu0 %v4821
    %5991 = vmatprep.subr.bf16.mxu0 %v4814
    %5992 = vmatpush1.bf16.msra.mxu0 %v4813
    %5993 = vmatprep.subr.bf16.mxu0 %v4806
    %5994 = vmatpush1.bf16.msra.mxu0 %v4805
    %5995 = vmatprep.subr.bf16.mxu0 %v4798
    %5996 = vmatpush1.bf16.msra.mxu0 %v4797
    %5997 = vmatprep.subr.bf16.mxu0 %v4790
    %5998 = vmatpush1.bf16.msra.mxu0 %v4789
    %5999 = vmatprep.subr.bf16.mxu0 %v4910
    %6000 = vmatpush2.bf16.msra.mxu0 %v4909
    %6001 = vmatprep.subr.bf16.mxu0 %v4902
    %6002 = vmatpush2.bf16.msra.mxu0 %v4901
    %6003 = vmatprep.subr.bf16.mxu0 %v4894
    %6004 = vmatpush2.bf16.msra.mxu0 %v4893
    %6005 = vmatprep.subr.bf16.mxu0 %v4886
    %6006 = vmatpush2.bf16.msra.mxu0 %v4885
    %6007 = vmatprep.subr.bf16.mxu0 %v4878
    %6008 = vmatpush2.bf16.msra.mxu0 %v4877
    %6009 = vmatprep.subr.bf16.mxu0 %v4870
    %6010 = vmatpush2.bf16.msra.mxu0 %v4869
    %6011 = vmatprep.subr.bf16.mxu0 %v4862
    %6012 = vmatpush2.bf16.msra.mxu0 %v4861
    %6013 = vmatprep.subr.bf16.mxu0 %v4854
    %6014 = vmatpush2.bf16.msra.mxu0 %v4853
    %6015 = vmatprep.mubr.bf16.mxu0 %v2436
    %6016 = vmatmul.mubr.bf16.gmra.mxu0 %v2435
    %v6017 = vpop.f32.mrf.mxu0
    %v6018 = vadd.f32 %v5975, %v6017
    %v6019 = vpop.f32.mrf.mxu0
    %v6020 = vadd.f32 %v5977, %v6019
    %v6021 = vpop.f32.mrf.mxu0
    %v6022 = vadd.f32 %v5979, %v6021
    %v6023 = vpop.f32.mrf.mxu0
    %v6024 = vadd.f32 %v5981, %v6023
    %6025 = vdwg.mxu0
    %6026 = vmatprep.subr.bf16.mxu0 %v4974
    %6027 = vmatpush1.bf16.msra.mxu0 %v4973
    %6028 = vmatprep.subr.bf16.mxu0 %v4966
    %6029 = vmatpush1.bf16.msra.mxu0 %v4965
    %6030 = vmatprep.subr.bf16.mxu0 %v4958
    %6031 = vmatpush1.bf16.msra.mxu0 %v4957
    %6032 = vmatprep.subr.bf16.mxu0 %v4950
    %6033 = vmatpush1.bf16.msra.mxu0 %v4949
    %6034 = vmatprep.subr.bf16.mxu0 %v4942
    %6035 = vmatpush1.bf16.msra.mxu0 %v4941
    %6036 = vmatprep.subr.bf16.mxu0 %v4934
    %6037 = vmatpush1.bf16.msra.mxu0 %v4933
    %6038 = vmatprep.subr.bf16.mxu0 %v4926
    %6039 = vmatpush1.bf16.msra.mxu0 %v4925
    %6040 = vmatprep.subr.bf16.mxu0 %v4918
    %6041 = vmatpush1.bf16.msra.mxu0 %v4917
    %6042 = vmatprep.subr.bf16.mxu0 %v5038
    %6043 = vmatpush2.bf16.msra.mxu0 %v5037
    %6044 = vmatprep.subr.bf16.mxu0 %v5030
    %6045 = vmatpush2.bf16.msra.mxu0 %v5029
    %6046 = vmatprep.subr.bf16.mxu0 %v5022
    %6047 = vmatpush2.bf16.msra.mxu0 %v5021
    %6048 = vmatprep.subr.bf16.mxu0 %v5014
    %6049 = vmatpush2.bf16.msra.mxu0 %v5013
    %6050 = vmatprep.subr.bf16.mxu0 %v5006
    %6051 = vmatpush2.bf16.msra.mxu0 %v5005
    %6052 = vmatprep.subr.bf16.mxu0 %v4998
    %6053 = vmatpush2.bf16.msra.mxu0 %v4997
    %6054 = vmatprep.subr.bf16.mxu0 %v4990
    %6055 = vmatpush2.bf16.msra.mxu0 %v4989
    %6056 = vmatprep.subr.bf16.mxu0 %v4982
    %6057 = vmatpush2.bf16.msra.mxu0 %v4981
    %6058 = vmatprep.mubr.bf16.mxu0 %v2438
    %6059 = vmatmul.mubr.bf16.gmra.mxu0 %v2437
    %v6060 = vpop.f32.mrf.mxu0
    %v6061 = vadd.f32 %v6018, %v6060
    %v6062 = vpop.f32.mrf.mxu0
    %v6063 = vadd.f32 %v6020, %v6062
    %v6064 = vpop.f32.mrf.mxu0
    %v6065 = vadd.f32 %v6022, %v6064
    %v6066 = vpop.f32.mrf.mxu0
    %v6067 = vadd.f32 %v6024, %v6066
    %6068 = vdwg.mxu0
    %6069 = vmatprep.subr.bf16.mxu0 %v4592
    %6070 = vmatpush1.bf16.msra.mxu0 %v4591
    %6071 = vmatprep.subr.bf16.mxu0 %v4584
    %6072 = vmatpush1.bf16.msra.mxu0 %v4583
    %6073 = vmatprep.subr.bf16.mxu0 %v4576
    %6074 = vmatpush1.bf16.msra.mxu0 %v4575
    %6075 = vmatprep.subr.bf16.mxu0 %v4568
    %6076 = vmatpush1.bf16.msra.mxu0 %v4567
    %6077 = vmatprep.subr.bf16.mxu0 %v4560
    %6078 = vmatpush1.bf16.msra.mxu0 %v4559
    %6079 = vmatprep.subr.bf16.mxu0 %v4552
    %6080 = vmatpush1.bf16.msra.mxu0 %v4551
    %6081 = vmatprep.subr.bf16.mxu0 %v4544
    %6082 = vmatpush1.bf16.msra.mxu0 %v4543
    %6083 = vmatprep.subr.bf16.mxu0 %v4536
    %6084 = vmatpush1.bf16.msra.mxu0 %v4535
    %6085 = vmatprep.subr.bf16.mxu0 %v4656
    %6086 = vmatpush2.bf16.msra.mxu0 %v4655
    %6087 = vmatprep.subr.bf16.mxu0 %v4648
    %6088 = vmatpush2.bf16.msra.mxu0 %v4647
    %6089 = vmatprep.subr.bf16.mxu0 %v4640
    %6090 = vmatpush2.bf16.msra.mxu0 %v4639
    %6091 = vmatprep.subr.bf16.mxu0 %v4632
    %6092 = vmatpush2.bf16.msra.mxu0 %v4631
    %6093 = vmatprep.subr.bf16.mxu0 %v4624
    %6094 = vmatpush2.bf16.msra.mxu0 %v4623
    %6095 = vmatprep.subr.bf16.mxu0 %v4616
    %6096 = vmatpush2.bf16.msra.mxu0 %v4615
    %6097 = vmatprep.subr.bf16.mxu0 %v4608
    %6098 = vmatpush2.bf16.msra.mxu0 %v4607
    %6099 = vmatprep.subr.bf16.mxu0 %v4600
    %6100 = vmatpush2.bf16.msra.mxu0 %v4599
    %6101 = vmatprep.mubr.bf16.mxu0 %v2432
    %6102 = vmatmul.mubr.bf16.gmra.mxu0 %v2431
    %v6103 = vpop.f32.mrf.mxu0
    %v6104 = vadd.f32 %v2980, %v6103
    %v6105 = vpop.f32.mrf.mxu0
    %v6106 = vadd.f32 %v2984, %v6105
    %v6107 = vpop.f32.mrf.mxu0
    %v6108 = vadd.f32 %v2980, %v6107
    %v6109 = vpop.f32.mrf.mxu0
    %v6110 = vadd.f32 %v2984, %v6109
    %6111 = vdwg.mxu0
    %6112 = vmatprep.subr.bf16.mxu0 %v4720
    %6113 = vmatpush1.bf16.msra.mxu0 %v4719
    %6114 = vmatprep.subr.bf16.mxu0 %v4712
    %6115 = vmatpush1.bf16.msra.mxu0 %v4711
    %6116 = vmatprep.subr.bf16.mxu0 %v4704
    %6117 = vmatpush1.bf16.msra.mxu0 %v4703
    %6118 = vmatprep.subr.bf16.mxu0 %v4696
    %6119 = vmatpush1.bf16.msra.mxu0 %v4695
    %6120 = vmatprep.subr.bf16.mxu0 %v4688
    %6121 = vmatpush1.bf16.msra.mxu0 %v4687
    %6122 = vmatprep.subr.bf16.mxu0 %v4680
    %6123 = vmatpush1.bf16.msra.mxu0 %v4679
    %6124 = vmatprep.subr.bf16.mxu0 %v4672
    %6125 = vmatpush1.bf16.msra.mxu0 %v4671
    %6126 = vmatprep.subr.bf16.mxu0 %v4664
    %6127 = vmatpush1.bf16.msra.mxu0 %v4663
    %6128 = vmatprep.subr.bf16.mxu0 %v4784
    %6129 = vmatpush2.bf16.msra.mxu0 %v4783
    %6130 = vmatprep.subr.bf16.mxu0 %v4776
    %6131 = vmatpush2.bf16.msra.mxu0 %v4775
    %6132 = vmatprep.subr.bf16.mxu0 %v4768
    %6133 = vmatpush2.bf16.msra.mxu0 %v4767
    %6134 = vmatprep.subr.bf16.mxu0 %v4760
    %6135 = vmatpush2.bf16.msra.mxu0 %v4759
    %6136 = vmatprep.subr.bf16.mxu0 %v4752
    %6137 = vmatpush2.bf16.msra.mxu0 %v4751
    %6138 = vmatprep.subr.bf16.mxu0 %v4744
    %6139 = vmatpush2.bf16.msra.mxu0 %v4743
    %6140 = vmatprep.subr.bf16.mxu0 %v4736
    %6141 = vmatpush2.bf16.msra.mxu0 %v4735
    %6142 = vmatprep.subr.bf16.mxu0 %v4728
    %6143 = vmatpush2.bf16.msra.mxu0 %v4727
    %6144 = vmatprep.mubr.bf16.mxu0 %v2434
    %6145 = vmatmul.mubr.bf16.gmra.mxu0 %v2433
    %v6146 = vpop.f32.mrf.mxu0
    %v6147 = vadd.f32 %v6104, %v6146
    %v6148 = vpop.f32.mrf.mxu0
    %v6149 = vadd.f32 %v6106, %v6148
    %v6150 = vpop.f32.mrf.mxu0
    %v6151 = vadd.f32 %v6108, %v6150
    %v6152 = vpop.f32.mrf.mxu0
    %v6153 = vadd.f32 %v6110, %v6152
    %6154 = vdwg.mxu0
    %6155 = vmatprep.subr.bf16.mxu0 %v4848
    %6156 = vmatpush1.bf16.msra.mxu0 %v4847
    %6157 = vmatprep.subr.bf16.mxu0 %v4840
    %6158 = vmatpush1.bf16.msra.mxu0 %v4839
    %6159 = vmatprep.subr.bf16.mxu0 %v4832
    %6160 = vmatpush1.bf16.msra.mxu0 %v4831
    %6161 = vmatprep.subr.bf16.mxu0 %v4824
    %6162 = vmatpush1.bf16.msra.mxu0 %v4823
    %6163 = vmatprep.subr.bf16.mxu0 %v4816
    %6164 = vmatpush1.bf16.msra.mxu0 %v4815
    %6165 = vmatprep.subr.bf16.mxu0 %v4808
    %6166 = vmatpush1.bf16.msra.mxu0 %v4807
    %6167 = vmatprep.subr.bf16.mxu0 %v4800
    %6168 = vmatpush1.bf16.msra.mxu0 %v4799
    %6169 = vmatprep.subr.bf16.mxu0 %v4792
    %6170 = vmatpush1.bf16.msra.mxu0 %v4791
    %6171 = vmatprep.subr.bf16.mxu0 %v4912
    %6172 = vmatpush2.bf16.msra.mxu0 %v4911
    %6173 = vmatprep.subr.bf16.mxu0 %v4904
    %6174 = vmatpush2.bf16.msra.mxu0 %v4903
    %6175 = vmatprep.subr.bf16.mxu0 %v4896
    %6176 = vmatpush2.bf16.msra.mxu0 %v4895
    %6177 = vmatprep.subr.bf16.mxu0 %v4888
    %6178 = vmatpush2.bf16.msra.mxu0 %v4887
    %6179 = vmatprep.subr.bf16.mxu0 %v4880
    %6180 = vmatpush2.bf16.msra.mxu0 %v4879
    %6181 = vmatprep.subr.bf16.mxu0 %v4872
    %6182 = vmatpush2.bf16.msra.mxu0 %v4871
    %6183 = vmatprep.subr.bf16.mxu0 %v4864
    %6184 = vmatpush2.bf16.msra.mxu0 %v4863
    %6185 = vmatprep.subr.bf16.mxu0 %v4856
    %6186 = vmatpush2.bf16.msra.mxu0 %v4855
    %6187 = vmatprep.mubr.bf16.mxu0 %v2436
    %6188 = vmatmul.mubr.bf16.gmra.mxu0 %v2435
    %v6189 = vpop.f32.mrf.mxu0
    %v6190 = vadd.f32 %v6147, %v6189
    %v6191 = vpop.f32.mrf.mxu0
    %v6192 = vadd.f32 %v6149, %v6191
    %v6193 = vpop.f32.mrf.mxu0
    %v6194 = vadd.f32 %v6151, %v6193
    %v6195 = vpop.f32.mrf.mxu0
    %v6196 = vadd.f32 %v6153, %v6195
    %6197 = vdwg.mxu0
    %6198 = vmatprep.subr.bf16.mxu0 %v4976
    %6199 = vmatpush1.bf16.msra.mxu0 %v4975
    %6200 = vmatprep.subr.bf16.mxu0 %v4968
    %6201 = vmatpush1.bf16.msra.mxu0 %v4967
    %6202 = vmatprep.subr.bf16.mxu0 %v4960
    %6203 = vmatpush1.bf16.msra.mxu0 %v4959
    %6204 = vmatprep.subr.bf16.mxu0 %v4952
    %6205 = vmatpush1.bf16.msra.mxu0 %v4951
    %6206 = vmatprep.subr.bf16.mxu0 %v4944
    %6207 = vmatpush1.bf16.msra.mxu0 %v4943
    %6208 = vmatprep.subr.bf16.mxu0 %v4936
    %6209 = vmatpush1.bf16.msra.mxu0 %v4935
    %6210 = vmatprep.subr.bf16.mxu0 %v4928
    %6211 = vmatpush1.bf16.msra.mxu0 %v4927
    %6212 = vmatprep.subr.bf16.mxu0 %v4920
    %6213 = vmatpush1.bf16.msra.mxu0 %v4919
    %6214 = vmatprep.subr.bf16.mxu0 %v5040
    %6215 = vmatpush2.bf16.msra.mxu0 %v5039
    %6216 = vmatprep.subr.bf16.mxu0 %v5032
    %6217 = vmatpush2.bf16.msra.mxu0 %v5031
    %6218 = vmatprep.subr.bf16.mxu0 %v5024
    %6219 = vmatpush2.bf16.msra.mxu0 %v5023
    %6220 = vmatprep.subr.bf16.mxu0 %v5016
    %6221 = vmatpush2.bf16.msra.mxu0 %v5015
    %6222 = vmatprep.subr.bf16.mxu0 %v5008
    %6223 = vmatpush2.bf16.msra.mxu0 %v5007
    %6224 = vmatprep.subr.bf16.mxu0 %v5000
    %6225 = vmatpush2.bf16.msra.mxu0 %v4999
    %6226 = vmatprep.subr.bf16.mxu0 %v4992
    %6227 = vmatpush2.bf16.msra.mxu0 %v4991
    %6228 = vmatprep.subr.bf16.mxu0 %v4984
    %6229 = vmatpush2.bf16.msra.mxu0 %v4983
    %6230 = vmatprep.mubr.bf16.mxu0 %v2438
    %6231 = vmatmul.mubr.bf16.gmra.mxu0 %v2437
    %v6232 = vpop.f32.mrf.mxu0
    %v6233 = vadd.f32 %v6190, %v6232
    %v6234 = vpop.f32.mrf.mxu0
    %v6235 = vadd.f32 %v6192, %v6234
    %v6236 = vpop.f32.mrf.mxu0
    %v6237 = vadd.f32 %v6194, %v6236
    %v6238 = vpop.f32.mrf.mxu0
    %v6239 = vadd.f32 %v6196, %v6238
    %6240 = vdwg.mxu0
    %v6241 = vpack.c.bf16 %v5721, %v5717
    %v6242 = vpack.c.bf16 %v5723, %v5719
    %v6243 = vpack.c.bf16 %v5893, %v5889
    %v6244 = vpack.c.bf16 %v5895, %v5891
    %v6245 = vpack.c.bf16 %v6065, %v6061
    %v6246 = vpack.c.bf16 %v6067, %v6063
    %v6247 = vpack.c.bf16 %v6237, %v6233
    %v6248 = vpack.c.bf16 %v6239, %v6235
    %v6249 = vtanh.bf16.pop %v6241
    %v6250 = vtanh.bf16.pop %v6242
    %v6251 = vtanh.bf16.pop %v6243
    %v6252 = vtanh.bf16.pop %v6244
    %v6253 = vtanh.bf16.pop %v6245
    %v6254 = vtanh.bf16.pop %v6246
    %v6255 = vtanh.bf16.pop %v6247
    %v6256 = vtanh.bf16.pop %v6248
    %v6257 = vunpack.c.l.bf16 %v6249
    %v6258 = vunpack.c.l.bf16 %v6250
    %v6259 = vunpack.c.l.bf16 %v6251
    %v6260 = vunpack.c.l.bf16 %v6252
    %v6261 = vunpack.c.l.bf16 %v6253
    %v6262 = vunpack.c.l.bf16 %v6254
    %v6263 = vunpack.c.l.bf16 %v6255
    %v6264 = vunpack.c.l.bf16 %v6256
    %v6265 = vunpack.c.h.bf16 %v6249
    %v6266 = vunpack.c.h.bf16 %v6250
    %v6267 = vunpack.c.h.bf16 %v6251
    %v6268 = vunpack.c.h.bf16 %v6252
    %v6269 = vunpack.c.h.bf16 %v6253
    %v6270 = vunpack.c.h.bf16 %v6254
    %v6271 = vunpack.c.h.bf16 %v6255
    %v6272 = vunpack.c.h.bf16 %v6256
    %6273 = vst [vmem:[#allocation16] sm:$0xff] %v6257
    %6274 = vst [vmem:[#allocation16 + $0x8] sm:$0xff] %v6258
    %6275 = vst [vmem:[#allocation16 + $0x10] sm:$0xff] %v6259
    %6276 = vst [vmem:[#allocation16 + $0x18] sm:$0xff] %v6260
    %6277 = vst [vmem:[#allocation16 + $0x20] sm:$0xff] %v6261
    %6278 = vst [vmem:[#allocation16 + $0x28] sm:$0xff] %v6262
    %6279 = vst [vmem:[#allocation16 + $0x30] sm:$0xff] %v6263
    %6280 = vst [vmem:[#allocation16 + $0x38] sm:$0xff] %v6264
    %6281 = vst [vmem:[#allocation16 + $0x40] sm:$0xff] %v6265
    %6282 = vst [vmem:[#allocation16 + $0x48] sm:$0xff] %v6266
    %6283 = vst [vmem:[#allocation16 + $0x50] sm:$0xff] %v6267
    %6284 = vst [vmem:[#allocation16 + $0x58] sm:$0xff] %v6268
    %6285 = vst [vmem:[#allocation16 + $0x60] sm:$0xff] %v6269
    %6286 = vst [vmem:[#allocation16 + $0x68] sm:$0xff] %v6270
    %6287 = vst [vmem:[#allocation16 + $0x70] sm:$0xff] %v6271
    %6288 = vst [vmem:[#allocation16 + $0x78] sm:$0xff] %v6272
    // Predicated region
    $region70: #{tpu_custom_call.1} parent=1 // pred_check
      _
    $region71: #{tpu_custom_call.1} parent=1 // pred_check_branch
      %6290 = sbr.rel (0) target = $region73
    $region72: #{tpu_custom_call.1} parent=1 // pred_region
      %s6292 = ssub.s32 2048, 2048
      %6293 = vsyncadd [#allocation4], %s6292
      %s6294 = sshll.u32 [#allocation16], 4
      %s6295 = int_to_ptr.vmem [resolvable:$true] %s6294
      %6300 = dma.vmem_to_hbm [thread:$0]  %s6295, 2048, %s9, [#allocation4], 1024, 1024, 64
    $region73: #{tpu_custom_call.1} parent=1 // pred_fallthru
      _
    // Predicated region
    $region74: #{tpu_custom_call.1} parent=1 // pred_check
      _
    $region75: #{tpu_custom_call.1} parent=1 // pred_check_branch
      %6302 = sbr.rel (0) target = $region77
    $region76: #{tpu_custom_call.1} parent=1 // pred_region
      %6303 = dma.done [#allocation4], 2048
    $region77: #{tpu_custom_call.1} parent=1 // pred_fallthru
      _
    %6304 = vsyncpa [#allocation3], 1
    %6305 = vsyncpa [#allocation6], 1
    %6306 = vsyncpa [#allocation9], 1
    %6307 = vsyncpa [#allocation12], 1
    %6308 = vsyncpa [#allocation15], 1
    %6309 = vsyncpa [#allocation4], 1

</llo_original>
